<compile_context>
chip_gen: v7x
topology: tpu7x:2x2x1
jax: 0.10.0
libtpu: 0.0.40
codegen_flags: <defaults>
</compile_context>

<pallas_src>
import jax
import jax.numpy as jnp
from jax.experimental import pallas as pl
from jax.experimental.pallas import tpu as pltpu


def _leaky(x, slope=0.01):
    # nn.LeakyReLU() default negative_slope = 0.01
    return jnp.where(x > 0, x, slope * x)


def residual_block_kernel(xm_ref, xt_ref, xb_ref, w1_ref, b1_ref, w2_ref,
                          b2_ref, o_ref):
    # xm_ref: (1, TH, W, Cin)   main rows of this H-tile
    # xt_ref: (1, 1,  W, Cin)   row above the tile (clamped at the image top)
    # xb_ref: (1, 1,  W, Cin)   row below the tile (clamped at the image bottom)
    # w1_ref: (Cin, Cemb)       1x1 conv weight, BN1 scale pre-folded (compute dtype)
    # b1_ref: (1, Cemb)         folded BN1 bias (f32)
    # w2_ref: (3, 3*Cemb, Cout) 3x3 conv weight, rows = kx*Cemb + cin, BN2 scale folded
    # b2_ref: (1, Cout)         folded BN2 bias (f32)
    # o_ref : (1, TH, W, Cout)
    _, TH, W, Cin = xm_ref.shape
    Cemb = w1_ref.shape[1]
    Cout = w2_ref.shape[2]
    Hh = TH + 2
    cdt = w1_ref.dtype                       # MXU compute dtype (bf16 or f32)

    t = pl.program_id(1)
    nt = pl.num_programs(1)

    xm = xm_ref[0]                           # (TH, W, Cin), input dtype
    w1 = w1_ref[...]
    b1 = b1_ref[...]

    # ---- conv1: 1x1 conv == channel matmul on the MXU (BN1 scale in w1) ----
    def conv1(rows2d):                       # (R, Cin) -> (R, Cemb), f32
        return _leaky(jnp.dot(rows2d.astype(cdt), w1,
                              preferred_element_type=jnp.float32) + b1)

    hm = conv1(xm.reshape(TH * W, Cin)).astype(cdt)       # (TH*W, Cemb)
    ht = conv1(xt_ref[0, 0]).astype(cdt)                  # (W, Cemb)  row above
    hb = conv1(xb_ref[0, 0]).astype(cdt)                  # (W, Cemb)  row below

    # At the image top/bottom the halo row is conv2's *zero padding* in h-space
    # (must be exactly 0, not leaky(b1)).  Tiny per-row selects, gated on t.
    ht = jnp.where(t == 0, jnp.zeros_like(ht), ht)
    hb = jnp.where(t == nt - 1, jnp.zeros_like(hb), hb)

    # Halo-expanded conv1 activation, (TH+2, W, Cemb), in compute dtype.
    h3 = jnp.concatenate(
        [ht.reshape(1, W, Cemb), hm.reshape(TH, W, Cemb), hb.reshape(1, W, Cemb)],
        axis=0)

    # ---- conv2: 3x3, pad 1.  im2col along kx only -> 3 matmuls, K = 3*Cemb.
    # W-direction zero padding is built with explicit zero columns in compute
    # dtype (half the copy bytes of the previous f32 zeros+set+concat build).
    zcol = jnp.zeros((Hh, 1, Cemb), cdt)
    left = jnp.concatenate([zcol, h3[:, :W - 1, :]], axis=1)   # neighbor x-1
    right = jnp.concatenate([h3[:, 1:, :], zcol], axis=1)      # neighbor x+1
    hcat = jnp.concatenate([left, h3, right], axis=-1)         # (Hh, W, 3*Cemb)

    # ky shifts = leading-dim slices taken *before* flattening (no misaligned
    # sublane slice of the flattened slab).
    acc = jnp.dot(hcat[0:TH].reshape(TH * W, 3 * Cemb), w2_ref[0],
                  preferred_element_type=jnp.float32)
    acc = acc + jnp.dot(hcat[1:TH + 1].reshape(TH * W, 3 * Cemb), w2_ref[1],
                        preferred_element_type=jnp.float32)
    acc = acc + jnp.dot(hcat[2:TH + 2].reshape(TH * W, 3 * Cemb), w2_ref[2],
                        preferred_element_type=jnp.float32)
    y = _leaky(acc + b2_ref[...]).reshape(TH, W, Cout)

    # ---- residual add in f32, store ----
    o_ref[0] = (xm.astype(jnp.float32) + y).astype(o_ref.dtype)


def _vmem_estimate(tile_h, W, Cin, Cemb, Cout, cdt_bytes, io_bytes):
    """Rough per-grid-step VMEM footprint (pipeline buffers + kernel values)."""
    Hh = tile_h + 2
    est = 0
    est += 2 * tile_h * W * Cin * io_bytes          # x main block, double-buffered
    est += 2 * 2 * W * Cin * io_bytes               # halo row blocks
    est += 2 * tile_h * W * Cout * io_bytes         # output block, double-buffered
    est += (Cin * Cemb + 9 * Cemb * Cout) * cdt_bytes + (Cemb + Cout) * 4
    est += Hh * W * Cemb * (4 + cdt_bytes)          # conv1 f32 out + cdt copy
    est += 2 * Hh * W * 3 * Cemb * cdt_bytes        # im2col slab + shift temps
    est += 2 * tile_h * W * Cout * 4                # conv2 accumulator + y
    return est


def _pick_tile_h(H, W, Cin, Cemb, Cout, cdt_bytes, io_bytes,
                 budget_bytes=40 * 1024 * 1024):
    # Largest divisor of H whose tile fits the VMEM budget: big tiles amortize
    # the 2-row halo recompute, per-step pipeline overhead and fill the MXU M
    # dimension.  Budget is conservative for v7x (64 MiB VMEM per TC).
    best = 1
    for d in range(1, H + 1):
        if H % d == 0 and _vmem_estimate(d, W, Cin, Cemb, Cout,
                                         cdt_bytes, io_bytes) <= budget_bytes:
            best = d
    return best


def residual_block_nhwc(x, w1, s1, b1, w2_hwio, s2, b2, *,
                        tile_h=None, compute_dtype=jnp.bfloat16):
    """Residual_Block forward (eval-mode BN), NHWC layout.

    x      : (N, H, W, Cin)
    w1     : (Cin, Cemb)          1x1 conv weight
    w2_hwio: (3, 3, Cemb, Cout)   3x3 conv weight (ky, kx, cin, cout)
    s1,b1  : (Cemb,)  folded BN1 scale / bias
    s2,b2  : (Cout,)  folded BN2 scale / bias

    With compute_dtype=bfloat16 accumulation stays f32 but inputs/weights are
    rounded: expect ~1e-2 relative error vs an f32 reference.
    """
    N, H, W, Cin = x.shape
    Cemb = w1.shape[1]
    Cout = w2_hwio.shape[3]
    assert Cout == Cin, "residual add requires filters_out == filters_in"

    cdt_bytes = jnp.dtype(compute_dtype).itemsize
    io_bytes = jnp.dtype(x.dtype).itemsize
    if tile_h is None:
        tile_h = _pick_tile_h(H, W, Cin, Cemb, Cout, cdt_bytes, io_bytes)
    if H % tile_h != 0:
        raise ValueError(f"tile_h={tile_h} must divide H={H} "
                         f"(pass tile_h=None for automatic selection)")
    nt = H // tile_h

    # Fold the BN scales into the conv weights; biases are applied in-kernel.
    w1f = (w1 * s1.reshape(1, -1)).astype(compute_dtype)
    w2f = (w2_hwio * s2.reshape(1, 1, 1, -1)).reshape(3, 3 * Cemb, Cout)
    w2f = w2f.astype(compute_dtype)
    b1f = b1.reshape(1, -1).astype(jnp.float32)
    b2f = b2.reshape(1, -1).astype(jnp.float32)

    est = _vmem_estimate(tile_h, W, Cin, Cemb, Cout, cdt_bytes, io_bytes)
    vmem_limit = int(min(max(2 * est, 32 * 1024 * 1024), 64 * 1024 * 1024))

    cost = pl.CostEstimate(
        flops=2 * N * H * W * (Cin * Cemb + 9 * Cemb * Cout),
        transcendentals=0,
        bytes_accessed=int(N * H * W * Cin * io_bytes * (1 + 2.0 / tile_h)
                           + N * H * W * Cout * io_bytes
                           + (Cin * Cemb + 9 * Cemb * Cout) * cdt_bytes))

    # The 2-row conv halo is fetched as two extra 1-row blocks of the *same*
    # (unpadded) input array — no padded / gathered copy of x in HBM.  The
    # clamped edge rows are zeroed in h-space inside the kernel.
    main_spec = pl.BlockSpec((1, tile_h, W, Cin), lambda n, t: (n, t, 0, 0))
    top_spec = pl.BlockSpec(
        (1, 1, W, Cin), lambda n, t: (n, jnp.maximum(t * tile_h - 1, 0), 0, 0))
    bot_spec = pl.BlockSpec(
        (1, 1, W, Cin), lambda n, t: (n, jnp.minimum((t + 1) * tile_h, H - 1), 0, 0))
    out_spec = pl.BlockSpec((1, tile_h, W, Cout), lambda n, t: (n, t, 0, 0))

    def run(weight_pipeline_mode):
        kw = {} if weight_pipeline_mode is None else {
            "pipeline_mode": weight_pipeline_mode}
        # Grid-invariant weights/biases: constant index map, single buffer.
        const_specs = [
            pl.BlockSpec((Cin, Cemb), lambda n, t: (0, 0), **kw),
            pl.BlockSpec((1, Cemb), lambda n, t: (0, 0), **kw),
            pl.BlockSpec((3, 3 * Cemb, Cout), lambda n, t: (0, 0, 0), **kw),
            pl.BlockSpec((1, Cout), lambda n, t: (0, 0), **kw),
        ]
        return pl.pallas_call(
            residual_block_kernel,
            out_shape=jax.ShapeDtypeStruct((N, H, W, Cout), x.dtype),
            grid_spec=pltpu.PrefetchScalarGridSpec(
                num_scalar_prefetch=0,
                grid=(N, nt),
                in_specs=[main_spec, top_spec, bot_spec] + const_specs,
                out_specs=out_spec),
            compiler_params=pltpu.CompilerParams(
                dimension_semantics=("parallel", "parallel"),
                vmem_limit_bytes=vmem_limit),
            cost_estimate=cost,
        )(x, x, x, w1f, b1f, w2f, b2f)

    try:
        return run(pl.Buffered(1))
    except Exception:
        # JAX versions without BlockSpec.pipeline_mode / Buffered(1) support:
        # fall back to default double-buffered weight blocks (only costs VMEM).
        return run(None)


def residual_block(x_nchw, w1, s1, b1, w2_hwio, s2, b2, *,
                   tile_h=None, compute_dtype=jnp.bfloat16):
    """NCHW convenience wrapper (PyTorch-layout parity).

    Production code should call residual_block_nhwc directly and keep the
    surrounding model in NHWC: each transpose here is a full-tensor HBM pass.
    """
    x = jnp.transpose(x_nchw, (0, 2, 3, 1))
    out = residual_block_nhwc(x, w1, s1, b1, w2_hwio, s2, b2,
                              tile_h=tile_h, compute_dtype=compute_dtype)
    return jnp.transpose(out, (0, 3, 1, 2))


def fold_bn(gamma, beta, running_mean, running_var, eps=1e-5):
    scale = gamma / jnp.sqrt(running_var + eps)
    bias = beta - running_mean * scale
    return scale, bias


def make_params(key, filters_in, filters_embed, filters_out):
    ks = jax.random.split(key, 10)
    # conv1 weight, PyTorch shape (Cemb, Cin, 1, 1) -> (Cin, Cemb)
    w1_pt = 0.1 * jax.random.normal(ks[0], (filters_embed, filters_in, 1, 1),
                                    jnp.float32)
    w1 = jnp.transpose(w1_pt[:, :, 0, 0], (1, 0))
    # conv2 weight, PyTorch shape (Cout, Cemb, 3, 3) -> HWIO (3, 3, Cemb, Cout)
    w2_pt = 0.1 * jax.random.normal(ks[1], (filters_out, filters_embed, 3, 3),
                                    jnp.float32)
    w2_hwio = jnp.transpose(w2_pt, (2, 3, 1, 0))
    # BN1 params (eval-mode running stats)
    g1 = jax.random.uniform(ks[2], (filters_embed,), minval=0.5, maxval=1.5)
    be1 = 0.1 * jax.random.normal(ks[3], (filters_embed,))
    m1 = 0.1 * jax.random.normal(ks[4], (filters_embed,))
    v1 = jax.random.uniform(ks[5], (filters_embed,), minval=0.5, maxval=1.5)
    s1, b1 = fold_bn(g1, be1, m1, v1)
    # BN2 params
    g2 = jax.random.uniform(ks[6], (filters_out,), minval=0.5, maxval=1.5)
    be2 = 0.1 * jax.random.normal(ks[7], (filters_out,))
    m2 = 0.1 * jax.random.normal(ks[8], (filters_out,))
    v2 = jax.random.uniform(ks[9], (filters_out,), minval=0.5, maxval=1.5)
    s2, b2 = fold_bn(g2, be2, m2, v2)
    return w1, w2_hwio, s1, b1, s2, b2, w1_pt, w2_pt


def reference(x_nchw, w1_pt, s1, b1, w2_pt, s2, b2):
    """Pure-JAX NHWC reference (same eval-mode BN folding)."""
    x = jnp.transpose(x_nchw, (0, 2, 3, 1))
    w1_hwio = jnp.transpose(w1_pt, (2, 3, 1, 0))  # (1,1,Cin,Cemb)
    w2_hwio = jnp.transpose(w2_pt, (2, 3, 1, 0))  # (3,3,Cemb,Cout)
    dn = ('NHWC', 'HWIO', 'NHWC')
    h = jax.lax.conv_general_dilated(x, w1_hwio, (1, 1), 'VALID',
                                     dimension_numbers=dn)
    h = _leaky(h * s1.reshape(1, 1, 1, -1) + b1.reshape(1, 1, 1, -1))
    y = jax.lax.conv_general_dilated(h, w2_hwio, (1, 1), ((1, 1), (1, 1)),
                                     dimension_numbers=dn)
    y = _leaky(y * s2.reshape(1, 1, 1, -1) + b2.reshape(1, 1, 1, -1))
    return jnp.transpose(x + y, (0, 3, 1, 2))


if __name__ == "__main__":
    key = jax.random.PRNGKey(0)
    k_x, k_p = jax.random.split(key)

    N, Cin, H, W = 2, 4, 16, 16        # small NCHW input, matches PyTorch conv
    Cemb, Cout = 8, 4                  # filters_embed, filters_out (== filters_in)

    x = jax.random.normal(k_x, (N, Cin, H, W), jnp.float32)
    w1, w2_hwio, s1, b1, s2, b2, w1_pt, w2_pt = make_params(k_p, Cin, Cemb, Cout)

    ref = reference(x, w1_pt, s1, b1, w2_pt, s2, b2)

    # f32 MXU path with an explicit 2-tile grid: exercises interior-tile halos
    # and edge masking; tight tolerance.
    out_f32 = residual_block(x, w1, s1, b1, w2_hwio, s2, b2,
                             tile_h=8, compute_dtype=jnp.float32)
    out_f32 = jax.block_until_ready(out_f32)
    assert out_f32.shape == (N, Cout, H, W)
    assert jnp.allclose(out_f32, ref, rtol=1e-4, atol=1e-4), \
        "f32 mismatch vs JAX reference"

    # bf16 MXU path (production default) with automatic tile selection;
    # inputs/weights are rounded to bf16 so use a looser tolerance.
    out_bf16 = residual_block(x, w1, s1, b1, w2_hwio, s2, b2)
    out_bf16 = jax.block_until_ready(out_bf16)
    assert jnp.allclose(out_bf16, ref, rtol=2e-2, atol=2e-2), \
        "bf16 mismatch vs JAX reference"

    print("KERNEL_OK")
</pallas_src>

<mosaic_0001>
module attributes {stable_mosaic.version = 11 : i64} {
  func.func @residual_block_kernel(%arg0: i32, %arg1: i32, %arg2: memref<1x8x16x4xf32, #tpu.memory_space<vmem>>, %arg3: memref<1x1x16x4xf32, #tpu.memory_space<vmem>>, %arg4: memref<1x1x16x4xf32, #tpu.memory_space<vmem>>, %arg5: memref<4x8xf32, #tpu.memory_space<vmem>>, %arg6: memref<1x8xf32, #tpu.memory_space<vmem>>, %arg7: memref<3x24x4xf32, #tpu.memory_space<vmem>>, %arg8: memref<1x4xf32, #tpu.memory_space<vmem>>, %arg9: memref<1x8x16x4xf32, #tpu.memory_space<vmem>>) attributes {dimension_semantics = [#tpu.dimension_semantics<parallel>, #tpu.dimension_semantics<parallel>], iteration_bounds = array<i64: 2, 2>, scalar_prefetch = 0 : i64, scratch_operands = 0 : i64, tpu.core_type = #tpu.core_type<tc>, window_params = [{transform_indices = @transform_0, window_bounds = array<i64: 1, 8, 16, 4>}, {transform_indices = @transform_1, window_bounds = array<i64: 1, 1, 16, 4>}, {transform_indices = @transform_2, window_bounds = array<i64: 1, 1, 16, 4>}, {pipeline_mode = #tpu.pipeline_mode<synchronous>, transform_indices = @transform_3, window_bounds = array<i64: 4, 8>}, {pipeline_mode = #tpu.pipeline_mode<synchronous>, transform_indices = @transform_4, window_bounds = array<i64: 1, 8>}, {pipeline_mode = #tpu.pipeline_mode<synchronous>, transform_indices = @transform_5, window_bounds = array<i64: 3, 24, 4>}, {pipeline_mode = #tpu.pipeline_mode<synchronous>, transform_indices = @transform_6, window_bounds = array<i64: 1, 4>}, {transform_indices = @transform_7, window_bounds = array<i64: 1, 8, 16, 4>}]} {
    %c0 = arith.constant 0 : index
    %c0_0 = arith.constant 0 : index
    %c0_1 = arith.constant 0 : index
    %c0_2 = arith.constant 0 : index
    %0 = vector.load %arg2[%c0, %c0_0, %c0_1, %c0_2] : memref<1x8x16x4xf32, #tpu.memory_space<vmem>>, vector<1x8x16x4xf32>
    %1 = vector.shape_cast %0 : vector<1x8x16x4xf32> to vector<8x16x4xf32>
    %c0_3 = arith.constant 0 : index
    %c0_4 = arith.constant 0 : index
    %2 = vector.load %arg5[%c0_3, %c0_4] : memref<4x8xf32, #tpu.memory_space<vmem>>, vector<4x8xf32>
    %c0_5 = arith.constant 0 : index
    %c0_6 = arith.constant 0 : index
    %3 = vector.load %arg6[%c0_5, %c0_6] : memref<1x8xf32, #tpu.memory_space<vmem>>, vector<1x8xf32>
    %4 = vector.shape_cast %1 : vector<8x16x4xf32> to vector<128x4xf32>
    %cst = arith.constant dense<0.000000e+00> : vector<128x8xf32>
    %5 = tpu.matmul %4, %2, %cst {dimension_numbers = #tpu.dot_dimension_numbers<[1], [0], [0], [1], [0, 0, 1, 1], [], []>} : vector<128x4xf32>, vector<4x8xf32>, vector<128x8xf32> -> vector<128x8xf32>
    %6 = vector.broadcast %3 : vector<1x8xf32> to vector<128x8xf32>
    %7 = arith.addf %5, %6 : vector<128x8xf32>
    %cst_7 = arith.constant 0.000000e+00 : f32
    %8 = vector.broadcast %cst_7 : f32 to vector<128x8xf32>
    %9 = arith.cmpf ogt, %7, %8 : vector<128x8xf32>
    %cst_8 = arith.constant 0.00999999977 : f32
    %10 = vector.broadcast %cst_8 : f32 to vector<128x8xf32>
    %11 = arith.mulf %10, %7 : vector<128x8xf32>
    %12 = arith.select %9, %7, %11 : vector<128x8xi1>, vector<128x8xf32>
    %c0_9 = arith.constant 0 : index
    %c0_10 = arith.constant 0 : index
    %c0_11 = arith.constant 0 : index
    %c0_12 = arith.constant 0 : index
    %13 = vector.load %arg3[%c0_9, %c0_10, %c0_11, %c0_12] : memref<1x1x16x4xf32, #tpu.memory_space<vmem>>, vector<1x1x16x4xf32>
    %14 = vector.shape_cast %13 : vector<1x1x16x4xf32> to vector<16x4xf32>
    %cst_13 = arith.constant dense<0.000000e+00> : vector<16x8xf32>
    %15 = tpu.matmul %14, %2, %cst_13 {dimension_numbers = #tpu.dot_dimension_numbers<[1], [0], [0], [1], [0, 0, 1, 1], [], []>} : vector<16x4xf32>, vector<4x8xf32>, vector<16x8xf32> -> vector<16x8xf32>
    %16 = vector.broadcast %3 : vector<1x8xf32> to vector<16x8xf32>
    %17 = arith.addf %15, %16 : vector<16x8xf32>
    %cst_14 = arith.constant 0.000000e+00 : f32
    %18 = vector.broadcast %cst_14 : f32 to vector<16x8xf32>
    %19 = arith.cmpf ogt, %17, %18 : vector<16x8xf32>
    %cst_15 = arith.constant 0.00999999977 : f32
    %20 = vector.broadcast %cst_15 : f32 to vector<16x8xf32>
    %21 = arith.mulf %20, %17 : vector<16x8xf32>
    %22 = arith.select %19, %17, %21 : vector<16x8xi1>, vector<16x8xf32>
    %c0_16 = arith.constant 0 : index
    %c0_17 = arith.constant 0 : index
    %c0_18 = arith.constant 0 : index
    %c0_19 = arith.constant 0 : index
    %23 = vector.load %arg4[%c0_16, %c0_17, %c0_18, %c0_19] : memref<1x1x16x4xf32, #tpu.memory_space<vmem>>, vector<1x1x16x4xf32>
    %24 = vector.shape_cast %23 : vector<1x1x16x4xf32> to vector<16x4xf32>
    %cst_20 = arith.constant dense<0.000000e+00> : vector<16x8xf32>
    %25 = tpu.matmul %24, %2, %cst_20 {dimension_numbers = #tpu.dot_dimension_numbers<[1], [0], [0], [1], [0, 0, 1, 1], [], []>} : vector<16x4xf32>, vector<4x8xf32>, vector<16x8xf32> -> vector<16x8xf32>
    %26 = vector.broadcast %3 : vector<1x8xf32> to vector<16x8xf32>
    %27 = arith.addf %25, %26 : vector<16x8xf32>
    %cst_21 = arith.constant 0.000000e+00 : f32
    %28 = vector.broadcast %cst_21 : f32 to vector<16x8xf32>
    %29 = arith.cmpf ogt, %27, %28 : vector<16x8xf32>
    %cst_22 = arith.constant 0.00999999977 : f32
    %30 = vector.broadcast %cst_22 : f32 to vector<16x8xf32>
    %31 = arith.mulf %30, %27 : vector<16x8xf32>
    %32 = arith.select %29, %27, %31 : vector<16x8xi1>, vector<16x8xf32>
    %c0_i32 = arith.constant 0 : i32
    %33 = arith.cmpi eq, %arg1, %c0_i32 : i32
    %cst_23 = arith.constant 0.000000e+00 : f32
    %34 = vector.broadcast %cst_23 : f32 to vector<16x8xf32>
    %35 = arith.select %33, %34, %22 : vector<16x8xf32>
    %c1_i32 = arith.constant 1 : i32
    %36 = arith.cmpi eq, %arg1, %c1_i32 : i32
    %cst_24 = arith.constant 0.000000e+00 : f32
    %37 = vector.broadcast %cst_24 : f32 to vector<16x8xf32>
    %38 = arith.select %36, %37, %32 : vector<16x8xf32>
    %39 = vector.shape_cast %35 : vector<16x8xf32> to vector<1x16x8xf32>
    %40 = vector.shape_cast %12 : vector<128x8xf32> to vector<8x16x8xf32>
    %41 = vector.shape_cast %38 : vector<16x8xf32> to vector<1x16x8xf32>
    %42 = tpu.concatenate %39, %40, %41 in 0 : vector<1x16x8xf32>, vector<8x16x8xf32>, vector<1x16x8xf32> -> vector<10x16x8xf32>
    %cst_25 = arith.constant 0.000000e+00 : f32
    %43 = vector.broadcast %cst_25 : f32 to vector<10x1x8xf32>
    %44 = vector.extract_strided_slice %42 {offsets = [0, 0, 0], sizes = [10, 15, 8], strides = [1, 1, 1]} : vector<10x16x8xf32> to vector<10x15x8xf32>
    %45 = tpu.concatenate %43, %44 in 1 : vector<10x1x8xf32>, vector<10x15x8xf32> -> vector<10x16x8xf32>
    %46 = vector.extract_strided_slice %42 {offsets = [0, 1, 0], sizes = [10, 15, 8], strides = [1, 1, 1]} : vector<10x16x8xf32> to vector<10x15x8xf32>
    %47 = tpu.concatenate %46, %43 in 1 : vector<10x15x8xf32>, vector<10x1x8xf32> -> vector<10x16x8xf32>
    %48 = tpu.concatenate %45, %42, %47 in 2 : vector<10x16x8xf32>, vector<10x16x8xf32>, vector<10x16x8xf32> -> vector<10x16x24xf32>
    %49 = vector.extract_strided_slice %48 {offsets = [0, 0, 0], sizes = [8, 16, 24], strides = [1, 1, 1]} : vector<10x16x24xf32> to vector<8x16x24xf32>
    %50 = vector.shape_cast %49 : vector<8x16x24xf32> to vector<128x24xf32>
    %c0_26 = arith.constant 0 : index
    %c0_27 = arith.constant 0 : index
    %c0_28 = arith.constant 0 : index
    %51 = vector.load %arg7[%c0_26, %c0_27, %c0_28] : memref<3x24x4xf32, #tpu.memory_space<vmem>>, vector<1x24x4xf32>
    %52 = vector.shape_cast %51 : vector<1x24x4xf32> to vector<24x4xf32>
    %cst_29 = arith.constant dense<0.000000e+00> : vector<128x4xf32>
    %53 = tpu.matmul %50, %52, %cst_29 {dimension_numbers = #tpu.dot_dimension_numbers<[1], [0], [0], [1], [0, 0, 1, 1], [], []>} : vector<128x24xf32>, vector<24x4xf32>, vector<128x4xf32> -> vector<128x4xf32>
    %54 = vector.extract_strided_slice %48 {offsets = [1, 0, 0], sizes = [8, 16, 24], strides = [1, 1, 1]} : vector<10x16x24xf32> to vector<8x16x24xf32>
    %55 = vector.shape_cast %54 : vector<8x16x24xf32> to vector<128x24xf32>
    %c1 = arith.constant 1 : index
    %c0_30 = arith.constant 0 : index
    %c0_31 = arith.constant 0 : index
    %56 = vector.load %arg7[%c1, %c0_30, %c0_31] : memref<3x24x4xf32, #tpu.memory_space<vmem>>, vector<1x24x4xf32>
    %57 = vector.shape_cast %56 : vector<1x24x4xf32> to vector<24x4xf32>
    %cst_32 = arith.constant dense<0.000000e+00> : vector<128x4xf32>
    %58 = tpu.matmul %55, %57, %cst_32 {dimension_numbers = #tpu.dot_dimension_numbers<[1], [0], [0], [1], [0, 0, 1, 1], [], []>} : vector<128x24xf32>, vector<24x4xf32>, vector<128x4xf32> -> vector<128x4xf32>
    %59 = arith.addf %53, %58 : vector<128x4xf32>
    %60 = vector.extract_strided_slice %48 {offsets = [2, 0, 0], sizes = [8, 16, 24], strides = [1, 1, 1]} : vector<10x16x24xf32> to vector<8x16x24xf32>
    %61 = vector.shape_cast %60 : vector<8x16x24xf32> to vector<128x24xf32>
    %c2 = arith.constant 2 : index
    %c0_33 = arith.constant 0 : index
    %c0_34 = arith.constant 0 : index
    %62 = vector.load %arg7[%c2, %c0_33, %c0_34] : memref<3x24x4xf32, #tpu.memory_space<vmem>>, vector<1x24x4xf32>
    %63 = vector.shape_cast %62 : vector<1x24x4xf32> to vector<24x4xf32>
    %cst_35 = arith.constant dense<0.000000e+00> : vector<128x4xf32>
    %64 = tpu.matmul %61, %63, %cst_35 {dimension_numbers = #tpu.dot_dimension_numbers<[1], [0], [0], [1], [0, 0, 1, 1], [], []>} : vector<128x24xf32>, vector<24x4xf32>, vector<128x4xf32> -> vector<128x4xf32>
    %65 = arith.addf %59, %64 : vector<128x4xf32>
    %c0_36 = arith.constant 0 : index
    %c0_37 = arith.constant 0 : index
    %66 = vector.load %arg8[%c0_36, %c0_37] : memref<1x4xf32, #tpu.memory_space<vmem>>, vector<1x4xf32>
    %67 = vector.broadcast %66 : vector<1x4xf32> to vector<128x4xf32>
    %68 = arith.addf %65, %67 : vector<128x4xf32>
    %cst_38 = arith.constant 0.000000e+00 : f32
    %69 = vector.broadcast %cst_38 : f32 to vector<128x4xf32>
    %70 = arith.cmpf ogt, %68, %69 : vector<128x4xf32>
    %cst_39 = arith.constant 0.00999999977 : f32
    %71 = vector.broadcast %cst_39 : f32 to vector<128x4xf32>
    %72 = arith.mulf %71, %68 : vector<128x4xf32>
    %73 = arith.select %70, %68, %72 : vector<128x4xi1>, vector<128x4xf32>
    %74 = vector.shape_cast %73 : vector<128x4xf32> to vector<8x16x4xf32>
    %75 = arith.addf %1, %74 : vector<8x16x4xf32>
    %c0_40 = arith.constant 0 : index
    %c0_41 = arith.constant 0 : index
    %c0_42 = arith.constant 0 : index
    %c0_43 = arith.constant 0 : index
    %76 = vector.load %arg9[%c0_40, %c0_41, %c0_42, %c0_43] : memref<1x8x16x4xf32, #tpu.memory_space<vmem>>, vector<1x8x16x4xf32>
    %77 = vector.shape_cast %76 : vector<1x8x16x4xf32> to vector<8x16x4xf32>
    %78 = vector.shape_cast %75 : vector<8x16x4xf32> to vector<1x8x16x4xf32>
    tpu.vector_store %arg9[%c0_40, %c0_41, %c0_42, %c0_43], %78 {strides = array<i32>} : memref<1x8x16x4xf32, #tpu.memory_space<vmem>>, vector<1x8x16x4xf32>,
    return
  }
  func.func @transform_0(%arg0: i32, %arg1: i32) -> (i32, i32, i32, i32) {
    %c0_i32 = arith.constant 0 : i32
    %c0_i32_0 = arith.constant 0 : i32
    %c0_i32_1 = arith.constant 0 : i32
    return %arg0, %arg1, %c0_i32, %c0_i32_0 : i32, i32, i32, i32
  }
  func.func @transform_1(%arg0: i32, %arg1: i32) -> (i32, i32, i32, i32) {
    %c8_i32 = arith.constant 8 : i32
    %0 = arith.muli %arg1, %c8_i32 : i32
    %c1_i32 = arith.constant 1 : i32
    %1 = arith.subi %0, %c1_i32 : i32
    %c0_i32 = arith.constant 0 : i32
    %2 = arith.maxsi %1, %c0_i32 : i32
    %c0_i32_0 = arith.constant 0 : i32
    %c0_i32_1 = arith.constant 0 : i32
    %c0_i32_2 = arith.constant 0 : i32
    return %arg0, %2, %c0_i32_0, %c0_i32_1 : i32, i32, i32, i32
  }
  func.func @transform_2(%arg0: i32, %arg1: i32) -> (i32, i32, i32, i32) {
    %c1_i32 = arith.constant 1 : i32
    %0 = arith.addi %arg1, %c1_i32 : i32
    %c8_i32 = arith.constant 8 : i32
    %1 = arith.muli %0, %c8_i32 : i32
    %c15_i32 = arith.constant 15 : i32
    %2 = arith.minsi %1, %c15_i32 : i32
    %c0_i32 = arith.constant 0 : i32
    %c0_i32_0 = arith.constant 0 : i32
    %c0_i32_1 = arith.constant 0 : i32
    return %arg0, %2, %c0_i32, %c0_i32_0 : i32, i32, i32, i32
  }
  func.func @transform_3(%arg0: i32, %arg1: i32) -> (i32, i32) {
    %c0_i32 = arith.constant 0 : i32
    %c0_i32_0 = arith.constant 0 : i32
    %c0_i32_1 = arith.constant 0 : i32
    return %c0_i32, %c0_i32_0 : i32, i32
  }
  func.func @transform_4(%arg0: i32, %arg1: i32) -> (i32, i32) {
    %c0_i32 = arith.constant 0 : i32
    %c0_i32_0 = arith.constant 0 : i32
    %c0_i32_1 = arith.constant 0 : i32
    return %c0_i32, %c0_i32_0 : i32, i32
  }
  func.func @transform_5(%arg0: i32, %arg1: i32) -> (i32, i32, i32) {
    %c0_i32 = arith.constant 0 : i32
    %c0_i32_0 = arith.constant 0 : i32
    %c0_i32_1 = arith.constant 0 : i32
    %c0_i32_2 = arith.constant 0 : i32
    return %c0_i32, %c0_i32_0, %c0_i32_1 : i32, i32, i32
  }
  func.func @transform_6(%arg0: i32, %arg1: i32) -> (i32, i32) {
    %c0_i32 = arith.constant 0 : i32
    %c0_i32_0 = arith.constant 0 : i32
    %c0_i32_1 = arith.constant 0 : i32
    return %c0_i32, %c0_i32_0 : i32, i32
  }
  func.func @transform_7(%arg0: i32, %arg1: i32) -> (i32, i32, i32, i32) {
    %c0_i32 = arith.constant 0 : i32
    %c0_i32_0 = arith.constant 0 : i32
    %c0_i32_1 = arith.constant 0 : i32
    return %arg0, %arg1, %c0_i32, %c0_i32_0 : i32, i32, i32, i32
  }
}

module attributes {stable_mosaic.version = 11 : i64} {
  func.func @residual_block_kernel(%arg0: i32, %arg1: i32, %arg2: memref<1x8x16x4xf32, #tpu.memory_space<vmem>>, %arg3: memref<1x1x16x4xf32, #tpu.memory_space<vmem>>, %arg4: memref<1x1x16x4xf32, #tpu.memory_space<vmem>>, %arg5: memref<4x8xf32, #tpu.memory_space<vmem>>, %arg6: memref<1x8xf32, #tpu.memory_space<vmem>>, %arg7: memref<3x24x4xf32, #tpu.memory_space<vmem>>, %arg8: memref<1x4xf32, #tpu.memory_space<vmem>>, %arg9: memref<1x8x16x4xf32, #tpu.memory_space<vmem>>) attributes {dimension_semantics = [#tpu.dimension_semantics<parallel>, #tpu.dimension_semantics<parallel>], iteration_bounds = array<i64: 2, 2>, scalar_prefetch = 0 : i64, scratch_operands = 0 : i64, tpu.core_type = #tpu.core_type<tc>, window_params = [{transform_indices = @transform_0, window_bounds = array<i64: 1, 8, 16, 4>}, {transform_indices = @transform_1, window_bounds = array<i64: 1, 1, 16, 4>}, {transform_indices = @transform_2, window_bounds = array<i64: 1, 1, 16, 4>}, {pipeline_mode = #tpu.pipeline_mode<synchronous>, transform_indices = @transform_3, window_bounds = array<i64: 4, 8>}, {pipeline_mode = #tpu.pipeline_mode<synchronous>, transform_indices = @transform_4, window_bounds = array<i64: 1, 8>}, {pipeline_mode = #tpu.pipeline_mode<synchronous>, transform_indices = @transform_5, window_bounds = array<i64: 3, 24, 4>}, {pipeline_mode = #tpu.pipeline_mode<synchronous>, transform_indices = @transform_6, window_bounds = array<i64: 1, 4>}, {transform_indices = @transform_7, window_bounds = array<i64: 1, 8, 16, 4>}]} {
    %c0 = arith.constant 0 : index
    %c0_0 = arith.constant 0 : index
    %c0_1 = arith.constant 0 : index
    %c0_2 = arith.constant 0 : index
    %0 = vector.load %arg2[%c0, %c0_0, %c0_1, %c0_2] : memref<1x8x16x4xf32, #tpu.memory_space<vmem>>, vector<1x8x16x4xf32>
    %1 = vector.shape_cast %0 : vector<1x8x16x4xf32> to vector<8x16x4xf32>
    %c0_3 = arith.constant 0 : index
    %c0_4 = arith.constant 0 : index
    %2 = vector.load %arg5[%c0_3, %c0_4] : memref<4x8xf32, #tpu.memory_space<vmem>>, vector<4x8xf32>
    %c0_5 = arith.constant 0 : index
    %c0_6 = arith.constant 0 : index
    %3 = vector.load %arg6[%c0_5, %c0_6] : memref<1x8xf32, #tpu.memory_space<vmem>>, vector<1x8xf32>
    %4 = vector.shape_cast %1 : vector<8x16x4xf32> to vector<128x4xf32>
    %cst = arith.constant dense<0.000000e+00> : vector<128x8xf32>
    %5 = tpu.matmul %4, %2, %cst {dimension_numbers = #tpu.dot_dimension_numbers<[1], [0], [0], [1], [0, 0, 1, 1], [], []>} : vector<128x4xf32>, vector<4x8xf32>, vector<128x8xf32> -> vector<128x8xf32>
    %6 = vector.broadcast %3 : vector<1x8xf32> to vector<128x8xf32>
    %7 = arith.addf %5, %6 : vector<128x8xf32>
    %cst_7 = arith.constant 0.000000e+00 : f32
    %8 = vector.broadcast %cst_7 : f32 to vector<128x8xf32>
    %9 = arith.cmpf ogt, %7, %8 : vector<128x8xf32>
    %cst_8 = arith.constant 0.00999999977 : f32
    %10 = vector.broadcast %cst_8 : f32 to vector<128x8xf32>
    %11 = arith.mulf %10, %7 : vector<128x8xf32>
    %12 = arith.select %9, %7, %11 : vector<128x8xi1>, vector<128x8xf32>
    %c0_9 = arith.constant 0 : index
    %c0_10 = arith.constant 0 : index
    %c0_11 = arith.constant 0 : index
    %c0_12 = arith.constant 0 : index
    %13 = vector.load %arg3[%c0_9, %c0_10, %c0_11, %c0_12] : memref<1x1x16x4xf32, #tpu.memory_space<vmem>>, vector<1x1x16x4xf32>
    %14 = vector.shape_cast %13 : vector<1x1x16x4xf32> to vector<16x4xf32>
    %cst_13 = arith.constant dense<0.000000e+00> : vector<16x8xf32>
    %15 = tpu.matmul %14, %2, %cst_13 {dimension_numbers = #tpu.dot_dimension_numbers<[1], [0], [0], [1], [0, 0, 1, 1], [], []>} : vector<16x4xf32>, vector<4x8xf32>, vector<16x8xf32> -> vector<16x8xf32>
    %16 = vector.broadcast %3 : vector<1x8xf32> to vector<16x8xf32>
    %17 = arith.addf %15, %16 : vector<16x8xf32>
    %cst_14 = arith.constant 0.000000e+00 : f32
    %18 = vector.broadcast %cst_14 : f32 to vector<16x8xf32>
    %19 = arith.cmpf ogt, %17, %18 : vector<16x8xf32>
    %cst_15 = arith.constant 0.00999999977 : f32
    %20 = vector.broadcast %cst_15 : f32 to vector<16x8xf32>
    %21 = arith.mulf %20, %17 : vector<16x8xf32>
    %22 = arith.select %19, %17, %21 : vector<16x8xi1>, vector<16x8xf32>
    %c0_16 = arith.constant 0 : index
    %c0_17 = arith.constant 0 : index
    %c0_18 = arith.constant 0 : index
    %c0_19 = arith.constant 0 : index
    %23 = vector.load %arg4[%c0_16, %c0_17, %c0_18, %c0_19] : memref<1x1x16x4xf32, #tpu.memory_space<vmem>>, vector<1x1x16x4xf32>
    %24 = vector.shape_cast %23 : vector<1x1x16x4xf32> to vector<16x4xf32>
    %cst_20 = arith.constant dense<0.000000e+00> : vector<16x8xf32>
    %25 = tpu.matmul %24, %2, %cst_20 {dimension_numbers = #tpu.dot_dimension_numbers<[1], [0], [0], [1], [0, 0, 1, 1], [], []>} : vector<16x4xf32>, vector<4x8xf32>, vector<16x8xf32> -> vector<16x8xf32>
    %26 = vector.broadcast %3 : vector<1x8xf32> to vector<16x8xf32>
    %27 = arith.addf %25, %26 : vector<16x8xf32>
    %cst_21 = arith.constant 0.000000e+00 : f32
    %28 = vector.broadcast %cst_21 : f32 to vector<16x8xf32>
    %29 = arith.cmpf ogt, %27, %28 : vector<16x8xf32>
    %cst_22 = arith.constant 0.00999999977 : f32
    %30 = vector.broadcast %cst_22 : f32 to vector<16x8xf32>
    %31 = arith.mulf %30, %27 : vector<16x8xf32>
    %32 = arith.select %29, %27, %31 : vector<16x8xi1>, vector<16x8xf32>
    %c0_i32 = arith.constant 0 : i32
    %33 = arith.cmpi eq, %arg1, %c0_i32 : i32
    %cst_23 = arith.constant 0.000000e+00 : f32
    %34 = vector.broadcast %cst_23 : f32 to vector<16x8xf32>
    %35 = arith.select %33, %34, %22 : vector<16x8xf32>
    %c1_i32 = arith.constant 1 : i32
    %36 = arith.cmpi eq, %arg1, %c1_i32 : i32
    %cst_24 = arith.constant 0.000000e+00 : f32
    %37 = vector.broadcast %cst_24 : f32 to vector<16x8xf32>
    %38 = arith.select %36, %37, %32 : vector<16x8xf32>
    %39 = vector.shape_cast %35 : vector<16x8xf32> to vector<1x16x8xf32>
    %40 = vector.shape_cast %12 : vector<128x8xf32> to vector<8x16x8xf32>
    %41 = vector.shape_cast %38 : vector<16x8xf32> to vector<1x16x8xf32>
    %42 = tpu.concatenate %39, %40, %41 in 0 : vector<1x16x8xf32>, vector<8x16x8xf32>, vector<1x16x8xf32> -> vector<10x16x8xf32>
    %cst_25 = arith.constant 0.000000e+00 : f32
    %43 = vector.broadcast %cst_25 : f32 to vector<10x1x8xf32>
    %44 = vector.extract_strided_slice %42 {offsets = [0, 0, 0], sizes = [10, 15, 8], strides = [1, 1, 1]} : vector<10x16x8xf32> to vector<10x15x8xf32>
    %45 = tpu.concatenate %43, %44 in 1 : vector<10x1x8xf32>, vector<10x15x8xf32> -> vector<10x16x8xf32>
    %46 = vector.extract_strided_slice %42 {offsets = [0, 1, 0], sizes = [10, 15, 8], strides = [1, 1, 1]} : vector<10x16x8xf32> to vector<10x15x8xf32>
    %47 = tpu.concatenate %46, %43 in 1 : vector<10x15x8xf32>, vector<10x1x8xf32> -> vector<10x16x8xf32>
    %48 = tpu.concatenate %45, %42, %47 in 2 : vector<10x16x8xf32>, vector<10x16x8xf32>, vector<10x16x8xf32> -> vector<10x16x24xf32>
    %49 = vector.extract_strided_slice %48 {offsets = [0, 0, 0], sizes = [8, 16, 24], strides = [1, 1, 1]} : vector<10x16x24xf32> to vector<8x16x24xf32>
    %50 = vector.shape_cast %49 : vector<8x16x24xf32> to vector<128x24xf32>
    %c0_26 = arith.constant 0 : index
    %c0_27 = arith.constant 0 : index
    %c0_28 = arith.constant 0 : index
    %51 = vector.load %arg7[%c0_26, %c0_27, %c0_28] : memref<3x24x4xf32, #tpu.memory_space<vmem>>, vector<1x24x4xf32>
    %52 = vector.shape_cast %51 : vector<1x24x4xf32> to vector<24x4xf32>
    %cst_29 = arith.constant dense<0.000000e+00> : vector<128x4xf32>
    %53 = tpu.matmul %50, %52, %cst_29 {dimension_numbers = #tpu.dot_dimension_numbers<[1], [0], [0], [1], [0, 0, 1, 1], [], []>} : vector<128x24xf32>, vector<24x4xf32>, vector<128x4xf32> -> vector<128x4xf32>
    %54 = vector.extract_strided_slice %48 {offsets = [1, 0, 0], sizes = [8, 16, 24], strides = [1, 1, 1]} : vector<10x16x24xf32> to vector<8x16x24xf32>
    %55 = vector.shape_cast %54 : vector<8x16x24xf32> to vector<128x24xf32>
    %c1 = arith.constant 1 : index
    %c0_30 = arith.constant 0 : index
    %c0_31 = arith.constant 0 : index
    %56 = vector.load %arg7[%c1, %c0_30, %c0_31] : memref<3x24x4xf32, #tpu.memory_space<vmem>>, vector<1x24x4xf32>
    %57 = vector.shape_cast %56 : vector<1x24x4xf32> to vector<24x4xf32>
    %cst_32 = arith.constant dense<0.000000e+00> : vector<128x4xf32>
    %58 = tpu.matmul %55, %57, %cst_32 {dimension_numbers = #tpu.dot_dimension_numbers<[1], [0], [0], [1], [0, 0, 1, 1], [], []>} : vector<128x24xf32>, vector<24x4xf32>, vector<128x4xf32> -> vector<128x4xf32>
    %59 = arith.addf %53, %58 : vector<128x4xf32>
    %60 = vector.extract_strided_slice %48 {offsets = [2, 0, 0], sizes = [8, 16, 24], strides = [1, 1, 1]} : vector<10x16x24xf32> to vector<8x16x24xf32>
    %61 = vector.shape_cast %60 : vector<8x16x24xf32> to vector<128x24xf32>
    %c2 = arith.constant 2 : index
    %c0_33 = arith.constant 0 : index
    %c0_34 = arith.constant 0 : index
    %62 = vector.load %arg7[%c2, %c0_33, %c0_34] : memref<3x24x4xf32, #tpu.memory_space<vmem>>, vector<1x24x4xf32>
    %63 = vector.shape_cast %62 : vector<1x24x4xf32> to vector<24x4xf32>
    %cst_35 = arith.constant dense<0.000000e+00> : vector<128x4xf32>
    %64 = tpu.matmul %61, %63, %cst_35 {dimension_numbers = #tpu.dot_dimension_numbers<[1], [0], [0], [1], [0, 0, 1, 1], [], []>} : vector<128x24xf32>, vector<24x4xf32>, vector<128x4xf32> -> vector<128x4xf32>
    %65 = arith.addf %59, %64 : vector<128x4xf32>
    %c0_36 = arith.constant 0 : index
    %c0_37 = arith.constant 0 : index
    %66 = vector.load %arg8[%c0_36, %c0_37] : memref<1x4xf32, #tpu.memory_space<vmem>>, vector<1x4xf32>
    %67 = vector.broadcast %66 : vector<1x4xf32> to vector<128x4xf32>
    %68 = arith.addf %65, %67 : vector<128x4xf32>
    %cst_38 = arith.constant 0.000000e+00 : f32
    %69 = vector.broadcast %cst_38 : f32 to vector<128x4xf32>
    %70 = arith.cmpf ogt, %68, %69 : vector<128x4xf32>
    %cst_39 = arith.constant 0.00999999977 : f32
    %71 = vector.broadcast %cst_39 : f32 to vector<128x4xf32>
    %72 = arith.mulf %71, %68 : vector<128x4xf32>
    %73 = arith.select %70, %68, %72 : vector<128x4xi1>, vector<128x4xf32>
    %74 = vector.shape_cast %73 : vector<128x4xf32> to vector<8x16x4xf32>
    %75 = arith.addf %1, %74 : vector<8x16x4xf32>
    %c0_40 = arith.constant 0 : index
    %c0_41 = arith.constant 0 : index
    %c0_42 = arith.constant 0 : index
    %c0_43 = arith.constant 0 : index
    %76 = vector.load %arg9[%c0_40, %c0_41, %c0_42, %c0_43] : memref<1x8x16x4xf32, #tpu.memory_space<vmem>>, vector<1x8x16x4xf32>
    %77 = vector.shape_cast %76 : vector<1x8x16x4xf32> to vector<8x16x4xf32>
    %78 = vector.shape_cast %75 : vector<8x16x4xf32> to vector<1x8x16x4xf32>
    tpu.vector_store %arg9[%c0_40, %c0_41, %c0_42, %c0_43], %78 {strides = array<i32>} : memref<1x8x16x4xf32, #tpu.memory_space<vmem>>, vector<1x8x16x4xf32>,
    return
  }
  func.func @transform_0(%arg0: i32, %arg1: i32) -> (i32, i32, i32, i32) {
    %c0_i32 = arith.constant 0 : i32
    %c0_i32_0 = arith.constant 0 : i32
    %c0_i32_1 = arith.constant 0 : i32
    return %arg0, %arg1, %c0_i32, %c0_i32_0 : i32, i32, i32, i32
  }
  func.func @transform_1(%arg0: i32, %arg1: i32) -> (i32, i32, i32, i32) {
    %c8_i32 = arith.constant 8 : i32
    %0 = arith.muli %arg1, %c8_i32 : i32
    %c1_i32 = arith.constant 1 : i32
    %1 = arith.subi %0, %c1_i32 : i32
    %c0_i32 = arith.constant 0 : i32
    %2 = arith.maxsi %1, %c0_i32 : i32
    %c0_i32_0 = arith.constant 0 : i32
    %c0_i32_1 = arith.constant 0 : i32
    %c0_i32_2 = arith.constant 0 : i32
    return %arg0, %2, %c0_i32_0, %c0_i32_1 : i32, i32, i32, i32
  }
  func.func @transform_2(%arg0: i32, %arg1: i32) -> (i32, i32, i32, i32) {
    %c1_i32 = arith.constant 1 : i32
    %0 = arith.addi %arg1, %c1_i32 : i32
    %c8_i32 = arith.constant 8 : i32
    %1 = arith.muli %0, %c8_i32 : i32
    %c15_i32 = arith.constant 15 : i32
    %2 = arith.minsi %1, %c15_i32 : i32
    %c0_i32 = arith.constant 0 : i32
    %c0_i32_0 = arith.constant 0 : i32
    %c0_i32_1 = arith.constant 0 : i32
    return %arg0, %2, %c0_i32, %c0_i32_0 : i32, i32, i32, i32
  }
  func.func @transform_3(%arg0: i32, %arg1: i32) -> (i32, i32) {
    %c0_i32 = arith.constant 0 : i32
    %c0_i32_0 = arith.constant 0 : i32
    %c0_i32_1 = arith.constant 0 : i32
    return %c0_i32, %c0_i32_0 : i32, i32
  }
  func.func @transform_4(%arg0: i32, %arg1: i32) -> (i32, i32) {
    %c0_i32 = arith.constant 0 : i32
    %c0_i32_0 = arith.constant 0 : i32
    %c0_i32_1 = arith.constant 0 : i32
    return %c0_i32, %c0_i32_0 : i32, i32
  }
  func.func @transform_5(%arg0: i32, %arg1: i32) -> (i32, i32, i32) {
    %c0_i32 = arith.constant 0 : i32
    %c0_i32_0 = arith.constant 0 : i32
    %c0_i32_1 = arith.constant 0 : i32
    %c0_i32_2 = arith.constant 0 : i32
    return %c0_i32, %c0_i32_0, %c0_i32_1 : i32, i32, i32
  }
  func.func @transform_6(%arg0: i32, %arg1: i32) -> (i32, i32) {
    %c0_i32 = arith.constant 0 : i32
    %c0_i32_0 = arith.constant 0 : i32
    %c0_i32_1 = arith.constant 0 : i32
    return %c0_i32, %c0_i32_0 : i32, i32
  }
  func.func @transform_7(%arg0: i32, %arg1: i32) -> (i32, i32, i32, i32) {
    %c0_i32 = arith.constant 0 : i32
    %c0_i32_0 = arith.constant 0 : i32
    %c0_i32_1 = arith.constant 0 : i32
    return %arg0, %arg1, %c0_i32, %c0_i32_0 : i32, i32, i32, i32
  }
}

</mosaic_0001>

<llo_original>
// kernel: tpu_custom_call.1
$region0: #{tpu_custom_call.1}
  #allocation0 [shape = 'u32[]', space=smem, size = 0x4, offset = 0x4, fixed_abs, tag = 'smem constant byte address 0x4 - core index']
  #allocation1 [shape = 'u32[144,128]{1,0:T(1,128)}', space=vmem, size = 0x12000, scoped, tag = 'internal scratch']
  %s0 = inlined_call_operand.vmem [shape: f32[2,16,16,4], index: 0, kind: input, shape index: {}]
  %s1 = inlined_call_operand.vmem [shape: f32[2,16,16,4], index: 1, kind: input, shape index: {}]
  %s2 = inlined_call_operand.vmem [shape: f32[2,16,16,4], index: 2, kind: input, shape index: {}]
  %s3 = inlined_call_operand.vmem [shape: f32[4,8], index: 3, kind: input, shape index: {}]
  %s4 = inlined_call_operand.vmem [shape: f32[1,8], index: 4, kind: input, shape index: {}]
  %s5 = inlined_call_operand.vmem [shape: f32[3,24,4], index: 5, kind: input, shape index: {}]
  %s6 = inlined_call_operand.vmem [shape: f32[1,4], index: 6, kind: input, shape index: {}]
  %s7 = inlined_call_operand.vmem [shape: f32[2,16,16,4], index: 7, kind: output, shape index: {}]
  %s8 = sld [smem:[#allocation0]]
  $region61: #{tpu_custom_call.1} parent=0
    _
  %s10 = ssub.s32 1, %s8
  %s11 = scalar_select 0, %s10, %s8
  loop: start=0, step=1, limit=6
  $region2: #{tpu_custom_call.1} parent=0 // loop_pre_header
    _
  $region3: #{tpu_custom_call.1} parent=0 // loop_header
    %s13 = sphi 0, %s17
    %p14 = scmp.ge.s32.totalorder %s13, 6
    %s20 = sphi 0, %s32
    %s21 = sphi 0, %s28
    %s22 = sphi 0, %s20
    %s23 = sphi 0, %s21
    %s24 = sphi 0, %s22
    %s25 = sphi 0, %s23
    %s37 = sphi 0, %s39
    %s40 = sphi 0, %s37
    %s41 = sphi 0, %s40
    %s57 = sphi 0, %s41
    %s73 = sphi 0, %s75
    %s76 = sphi 0, %s73
    %s77 = sphi 0, %s76
    %s93 = sphi 0, %s77
    %s109 = sphi 0, %s111
    %s112 = sphi 0, %s109
    %s113 = sphi 0, %s112
    %s129 = sphi 0, %s113
    %s133 = sphi 0, %s133
    %s135 = sphi 0, %s133
    %s136 = sphi 0, %s135
    %s150 = sphi 0, %s136
    %s154 = sphi 0, %s154
    %s156 = sphi 0, %s154
    %s157 = sphi 0, %s156
    %s171 = sphi 0, %s157
    %s175 = sphi 0, %s175
    %s177 = sphi 0, %s175
    %s178 = sphi 0, %s177
    %s192 = sphi 0, %s178
    %s196 = sphi 0, %s196
    %s198 = sphi 0, %s196
    %s199 = sphi 0, %s198
    %s213 = sphi 0, %s199
    %s221 = sphi 0, %s223
    %s224 = sphi 0, %s221
    %s225 = sphi 0, %s224
    %s241 = sphi 0, %s225
  $region4: #{tpu_custom_call.1} parent=0 // loop_header_branch
    %16 = sbr.rel (%p14) target = $region8
  $region5: #{tpu_custom_call.1} parent=0 // loop_body
    %s18 = ssub.s32 %s13, 1
    %s19 = ssub.s32 %s13, 2
    %s26 = sadd.s32 1, %s21
    %p27 = scmp.ge.s32.totalorder %s26, 2
    %s28 = scalar_select %p27, 0, %s26
    %s29 = sadd.s32 1, %s20
    %s30 = scalar_select %p27, %s29, %s20
    %p31 = scmp.ge.s32.totalorder %s30, 2
    %s32 = scalar_select %p31, 0, %s30
    %s33 = ssub.s32 %s20, %s32
    %s34 = ssub.s32 %s21, %s28
    %s35 = sor.u32 %s33, %s34
    %p36 = scmp.eq.s32.totalorder %s35, 0
    %s38 = sadd.s32 %s37, 1
    %s39 = scalar_select %p36, %s37, %s38
    %p42 = pneg %p36
    %p43 = scmp.eq.s32.totalorder %s13, 3
    %p44 = por %p42, %p43
    %p45 = scmp.ne.s32.totalorder %s37, %s40
    %p46 = scmp.eq.s32.totalorder %s13, 0
    %p47 = por %p45, %p46
    %p48 = scmp.ne.s32.totalorder %s37, %s40
    %p49 = scmp.eq.s32.totalorder %s18, 3
    %p50 = por %p48, %p49
    %p51 = scmp.ne.s32.totalorder %s40, %s41
    %p52 = scmp.eq.s32.totalorder %s18, 0
    %p53 = por %p51, %p52
    %p54 = scmp.ne.s32.totalorder %s40, %s41
    %p55 = scmp.eq.s32.totalorder %s19, 3
    %p56 = por %p54, %p55
    %p58 = scmp.ne.s32.totalorder %s41, %s57
    %p59 = scmp.eq.s32.totalorder %s19, 0
    %p60 = por %p58, %p59
    %s61 = smul.u32 %s21, 8
    %s62 = ssub.s32 %s61, 1
    %p63 = scmp.gt.s32.totalorder %s62, 0
    %s64 = scalar_select %p63, %s62, 0
    %s65 = smul.u32 %s28, 8
    %s66 = ssub.s32 %s65, 1
    %p67 = scmp.gt.s32.totalorder %s66, 0
    %s68 = scalar_select %p67, %s66, 0
    %s69 = ssub.s32 %s20, %s32
    %s70 = ssub.s32 %s64, %s68
    %s71 = sor.u32 %s69, %s70
    %p72 = scmp.eq.s32.totalorder %s71, 0
    %s74 = sadd.s32 %s73, 1
    %s75 = scalar_select %p72, %s73, %s74
    %p78 = pneg %p72
    %p79 = scmp.eq.s32.totalorder %s13, 3
    %p80 = por %p78, %p79
    %p81 = scmp.ne.s32.totalorder %s73, %s76
    %p82 = scmp.eq.s32.totalorder %s13, 0
    %p83 = por %p81, %p82
    %p84 = scmp.ne.s32.totalorder %s73, %s76
    %p85 = scmp.eq.s32.totalorder %s18, 3
    %p86 = por %p84, %p85
    %p87 = scmp.ne.s32.totalorder %s76, %s77
    %p88 = scmp.eq.s32.totalorder %s18, 0
    %p89 = por %p87, %p88
    %p90 = scmp.ne.s32.totalorder %s76, %s77
    %p91 = scmp.eq.s32.totalorder %s19, 3
    %p92 = por %p90, %p91
    %p94 = scmp.ne.s32.totalorder %s77, %s93
    %p95 = scmp.eq.s32.totalorder %s19, 0
    %p96 = por %p94, %p95
    %s97 = sadd.s32 %s21, 1
    %s98 = smul.u32 %s97, 8
    %p99 = scmp.lt.s32.totalorder %s98, 15
    %s100 = scalar_select %p99, %s98, 15
    %s101 = sadd.s32 %s28, 1
    %s102 = smul.u32 %s101, 8
    %p103 = scmp.lt.s32.totalorder %s102, 15
    %s104 = scalar_select %p103, %s102, 15
    %s105 = ssub.s32 %s20, %s32
    %s106 = ssub.s32 %s100, %s104
    %s107 = sor.u32 %s105, %s106
    %p108 = scmp.eq.s32.totalorder %s107, 0
    %s110 = sadd.s32 %s109, 1
    %s111 = scalar_select %p108, %s109, %s110
    %p114 = pneg %p108
    %p115 = scmp.eq.s32.totalorder %s13, 3
    %p116 = por %p114, %p115
    %p117 = scmp.ne.s32.totalorder %s109, %s112
    %p118 = scmp.eq.s32.totalorder %s13, 0
    %p119 = por %p117, %p118
    %p120 = scmp.ne.s32.totalorder %s109, %s112
    %p121 = scmp.eq.s32.totalorder %s18, 3
    %p122 = por %p120, %p121
    %p123 = scmp.ne.s32.totalorder %s112, %s113
    %p124 = scmp.eq.s32.totalorder %s18, 0
    %p125 = por %p123, %p124
    %p126 = scmp.ne.s32.totalorder %s112, %s113
    %p127 = scmp.eq.s32.totalorder %s19, 3
    %p128 = por %p126, %p127
    %p130 = scmp.ne.s32.totalorder %s113, %s129
    %p131 = scmp.eq.s32.totalorder %s19, 0
    %p132 = por %p130, %p131
    %s134 = sadd.s32 %s133, 1
    %p137 = scmp.eq.s32.totalorder %s13, 3
    %p138 = scmp.ne.s32.totalorder %s133, %s135
    %p139 = scmp.eq.s32.totalorder %s13, 0
    %p140 = por %p138, %p139
    %p141 = scmp.ne.s32.totalorder %s133, %s135
    %p142 = scmp.eq.s32.totalorder %s18, 3
    %p143 = por %p141, %p142
    %p144 = scmp.ne.s32.totalorder %s135, %s136
    %p145 = scmp.eq.s32.totalorder %s18, 0
    %p146 = por %p144, %p145
    %p147 = scmp.ne.s32.totalorder %s135, %s136
    %p148 = scmp.eq.s32.totalorder %s19, 3
    %p149 = por %p147, %p148
    %p151 = scmp.ne.s32.totalorder %s136, %s150
    %p152 = scmp.eq.s32.totalorder %s19, 0
    %p153 = por %p151, %p152
    %s155 = sadd.s32 %s154, 1
    %p158 = scmp.eq.s32.totalorder %s13, 3
    %p159 = scmp.ne.s32.totalorder %s154, %s156
    %p160 = scmp.eq.s32.totalorder %s13, 0
    %p161 = por %p159, %p160
    %p162 = scmp.ne.s32.totalorder %s154, %s156
    %p163 = scmp.eq.s32.totalorder %s18, 3
    %p164 = por %p162, %p163
    %p165 = scmp.ne.s32.totalorder %s156, %s157
    %p166 = scmp.eq.s32.totalorder %s18, 0
    %p167 = por %p165, %p166
    %p168 = scmp.ne.s32.totalorder %s156, %s157
    %p169 = scmp.eq.s32.totalorder %s19, 3
    %p170 = por %p168, %p169
    %p172 = scmp.ne.s32.totalorder %s157, %s171
    %p173 = scmp.eq.s32.totalorder %s19, 0
    %p174 = por %p172, %p173
    %s176 = sadd.s32 %s175, 1
    %p179 = scmp.eq.s32.totalorder %s13, 3
    %p180 = scmp.ne.s32.totalorder %s175, %s177
    %p181 = scmp.eq.s32.totalorder %s13, 0
    %p182 = por %p180, %p181
    %p183 = scmp.ne.s32.totalorder %s175, %s177
    %p184 = scmp.eq.s32.totalorder %s18, 3
    %p185 = por %p183, %p184
    %p186 = scmp.ne.s32.totalorder %s177, %s178
    %p187 = scmp.eq.s32.totalorder %s18, 0
    %p188 = por %p186, %p187
    %p189 = scmp.ne.s32.totalorder %s177, %s178
    %p190 = scmp.eq.s32.totalorder %s19, 3
    %p191 = por %p189, %p190
    %p193 = scmp.ne.s32.totalorder %s178, %s192
    %p194 = scmp.eq.s32.totalorder %s19, 0
    %p195 = por %p193, %p194
    %s197 = sadd.s32 %s196, 1
    %p200 = scmp.eq.s32.totalorder %s13, 3
    %p201 = scmp.ne.s32.totalorder %s196, %s198
    %p202 = scmp.eq.s32.totalorder %s13, 0
    %p203 = por %p201, %p202
    %p204 = scmp.ne.s32.totalorder %s196, %s198
    %p205 = scmp.eq.s32.totalorder %s18, 3
    %p206 = por %p204, %p205
    %p207 = scmp.ne.s32.totalorder %s198, %s199
    %p208 = scmp.eq.s32.totalorder %s18, 0
    %p209 = por %p207, %p208
    %p210 = scmp.ne.s32.totalorder %s198, %s199
    %p211 = scmp.eq.s32.totalorder %s19, 3
    %p212 = por %p210, %p211
    %p214 = scmp.ne.s32.totalorder %s199, %s213
    %p215 = scmp.eq.s32.totalorder %s19, 0
    %p216 = por %p214, %p215
    %s217 = ssub.s32 %s20, %s32
    %s218 = ssub.s32 %s21, %s28
    %s219 = sor.u32 %s217, %s218
    %p220 = scmp.eq.s32.totalorder %s219, 0
    %s222 = sadd.s32 %s221, 1
    %s223 = scalar_select %p220, %s221, %s222
    %p226 = pneg %p220
    %p227 = scmp.eq.s32.totalorder %s13, 3
    %p228 = por %p226, %p227
    %p229 = scmp.ne.s32.totalorder %s221, %s224
    %p230 = scmp.eq.s32.totalorder %s13, 0
    %p231 = por %p229, %p230
    %p232 = scmp.ne.s32.totalorder %s221, %s224
    %p233 = scmp.eq.s32.totalorder %s18, 3
    %p234 = por %p232, %p233
    %p235 = scmp.ne.s32.totalorder %s224, %s225
    %p236 = scmp.eq.s32.totalorder %s18, 0
    %p237 = por %p235, %p236
    %p238 = scmp.ne.s32.totalorder %s224, %s225
    %p239 = scmp.eq.s32.totalorder %s19, 3
    %p240 = por %p238, %p239
    %p242 = scmp.ne.s32.totalorder %s225, %s241
    %p243 = scmp.eq.s32.totalorder %s19, 0
    %p244 = por %p242, %p243
    %p245 = scmp.le.s32.totalorder 1, %s13
    %p246 = scmp.lt.s32.totalorder %s13, 5
    %p247 = pnand %p245, %p246
    %p248 = pneg %p247
    // Predicated region
    $region9: #{tpu_custom_call.1} parent=5 // pred_check
      _
    $region10: #{tpu_custom_call.1} parent=5 // pred_check_branch
      %250 = sbr.rel (%p247) target = $region12
    $region11: #{tpu_custom_call.1} parent=5 // pred_region
      %s251 = ssub.s32 %s13, 1
      // Predicated region
      $region13: #{tpu_custom_call.1} parent=11 // pred_check
        %p252 = pneg %p146
      $region14: #{tpu_custom_call.1} parent=11 // pred_check_branch
        %254 = sbr.rel (%p252) target = $region16
      $region15: #{tpu_custom_call.1} parent=11 // pred_region
        _
      $region16: #{tpu_custom_call.1} parent=11 // pred_fallthru
        _
      // Predicated region
      $region17: #{tpu_custom_call.1} parent=11 // pred_check
        %p255 = pneg %p167
      $region18: #{tpu_custom_call.1} parent=11 // pred_check_branch
        %257 = sbr.rel (%p255) target = $region20
      $region19: #{tpu_custom_call.1} parent=11 // pred_region
        _
      $region20: #{tpu_custom_call.1} parent=11 // pred_fallthru
        _
      // Predicated region
      $region21: #{tpu_custom_call.1} parent=11 // pred_check
        %p258 = pneg %p188
      $region22: #{tpu_custom_call.1} parent=11 // pred_check_branch
        %260 = sbr.rel (%p258) target = $region24
      $region23: #{tpu_custom_call.1} parent=11 // pred_region
        _
      $region24: #{tpu_custom_call.1} parent=11 // pred_fallthru
        _
      // Predicated region
      $region25: #{tpu_custom_call.1} parent=11 // pred_check
        %p261 = pneg %p209
      $region26: #{tpu_custom_call.1} parent=11 // pred_check_branch
        %263 = sbr.rel (%p261) target = $region28
      $region27: #{tpu_custom_call.1} parent=11 // pred_region
        _
      $region28: #{tpu_custom_call.1} parent=11 // pred_fallthru
        _
    $region12: #{tpu_custom_call.1} parent=5 // pred_fallthru
      _
    %p264 = scmp.lt.s32.totalorder %s13, 4
    // Predicated region
    $region29: #{tpu_custom_call.1} parent=5 // pred_check
      %p265 = pneg %p264
    $region30: #{tpu_custom_call.1} parent=5 // pred_check_branch
      %267 = sbr.rel (%p265) target = $region32
    $region31: #{tpu_custom_call.1} parent=5 // pred_region
      // Predicated region
      $region33: #{tpu_custom_call.1} parent=31 // pred_check
        %p268 = pneg %p47
      $region34: #{tpu_custom_call.1} parent=31 // pred_check_branch
        %270 = sbr.rel (%p268) target = $region36
      $region35: #{tpu_custom_call.1} parent=31 // pred_region
        %s271 = smul.u32 8, %s21
        %p272 = scmp.lt.s32.totalorder %s20, 1
        %s273 = scalar_select %p272, %s20, 1
        %p274 = scmp.lt.s32.totalorder %s271, 15
        %s275 = scalar_select %p274, %s271, 15
        %s276 = smul.addr %s275, 2
        %s277 = smul.addr %s273, 32
        %s278 = sadd.s32 %s276, %s277
        %s279 = smul.addr %s278, 8
        %s280 = scalar_lea.vmem %s0, %s279
        %s281 = smul.u32 8, %s21
      $region36: #{tpu_custom_call.1} parent=31 // pred_fallthru
        _
      // Predicated region
      $region37: #{tpu_custom_call.1} parent=31 // pred_check
        %p282 = pneg %p83
      $region38: #{tpu_custom_call.1} parent=31 // pred_check_branch
        %284 = sbr.rel (%p282) target = $region40
      $region39: #{tpu_custom_call.1} parent=31 // pred_region
        %s285 = smul.u32 %s21, 8
        %s286 = ssub.s32 %s285, 1
        %p287 = scmp.gt.s32.totalorder %s286, 0
        %s288 = scalar_select %p287, %s286, 0
        %p289 = scmp.lt.s32.totalorder %s20, 1
        %s290 = scalar_select %p289, %s20, 1
        %p291 = scmp.lt.s32.totalorder %s288, 15
        %s292 = scalar_select %p291, %s288, 15
        %s293 = smul.addr %s292, 2
        %s294 = smul.addr %s290, 32
        %s295 = sadd.s32 %s293, %s294
        %s296 = smul.addr %s295, 8
        %s297 = scalar_lea.vmem %s1, %s296
        %s298 = smul.u32 %s21, 8
        %s299 = ssub.s32 %s298, 1
        %p300 = scmp.gt.s32.totalorder %s299, 0
        %s301 = scalar_select %p300, %s299, 0
      $region40: #{tpu_custom_call.1} parent=31 // pred_fallthru
        _
      // Predicated region
      $region41: #{tpu_custom_call.1} parent=31 // pred_check
        %p302 = pneg %p119
      $region42: #{tpu_custom_call.1} parent=31 // pred_check_branch
        %304 = sbr.rel (%p302) target = $region44
      $region43: #{tpu_custom_call.1} parent=31 // pred_region
        %s305 = sadd.s32 %s21, 1
        %s306 = smul.u32 %s305, 8
        %p307 = scmp.lt.s32.totalorder %s306, 15
        %s308 = scalar_select %p307, %s306, 15
        %p309 = scmp.lt.s32.totalorder %s20, 1
        %s310 = scalar_select %p309, %s20, 1
        %p311 = scmp.lt.s32.totalorder %s308, 15
        %s312 = scalar_select %p311, %s308, 15
        %s313 = smul.addr %s312, 2
        %s314 = smul.addr %s310, 32
        %s315 = sadd.s32 %s313, %s314
        %s316 = smul.addr %s315, 8
        %s317 = scalar_lea.vmem %s2, %s316
        %s318 = sadd.s32 %s21, 1
        %s319 = smul.u32 %s318, 8
        %p320 = scmp.lt.s32.totalorder %s319, 15
        %s321 = scalar_select %p320, %s319, 15
      $region44: #{tpu_custom_call.1} parent=31 // pred_fallthru
        _
    $region32: #{tpu_custom_call.1} parent=5 // pred_fallthru
      _
    %p322 = scmp.le.s32.totalorder 1, %s13
    %p323 = scmp.lt.s32.totalorder %s13, 5
    %p324 = pnand %p322, %p323
    %p325 = pneg %p324
    // Predicated region
    $region45: #{tpu_custom_call.1} parent=5 // pred_check
      _
    $region46: #{tpu_custom_call.1} parent=5 // pred_check_branch
      %327 = sbr.rel (%p324) target = $region48
    $region47: #{tpu_custom_call.1} parent=5 // pred_region
      %s328 = ssub.s32 %s13, 1
      %s329 = smul.u32 8, %s23
      %p330 = scmp.lt.s32.totalorder %s22, 1
      %s331 = scalar_select %p330, %s22, 1
      %p332 = scmp.lt.s32.totalorder %s329, 15
      %s333 = scalar_select %p332, %s329, 15
      %s334 = smul.addr %s333, 2
      %s335 = smul.addr %s331, 32
      %s336 = sadd.s32 %s334, %s335
      %s337 = smul.addr %s336, 8
      %s338 = scalar_lea.vmem %s0, %s337
      %p339 = pneg %p53
      %p340 = pneg %p50
      %s341 = smul.u32 %s23, 8
      %s342 = ssub.s32 %s341, 1
      %p343 = scmp.gt.s32.totalorder %s342, 0
      %s344 = scalar_select %p343, %s342, 0
      %p345 = scmp.lt.s32.totalorder %s22, 1
      %s346 = scalar_select %p345, %s22, 1
      %p347 = scmp.lt.s32.totalorder %s344, 15
      %s348 = scalar_select %p347, %s344, 15
      %s349 = smul.addr %s348, 2
      %s350 = smul.addr %s346, 32
      %s351 = sadd.s32 %s349, %s350
      %s352 = smul.addr %s351, 8
      %s353 = scalar_lea.vmem %s1, %s352
      %p354 = pneg %p89
      %p355 = pneg %p86
      %s356 = sadd.s32 %s23, 1
      %s357 = smul.u32 %s356, 8
      %p358 = scmp.lt.s32.totalorder %s357, 15
      %s359 = scalar_select %p358, %s357, 15
      %p360 = scmp.lt.s32.totalorder %s22, 1
      %s361 = scalar_select %p360, %s22, 1
      %p362 = scmp.lt.s32.totalorder %s359, 15
      %s363 = scalar_select %p362, %s359, 15
      %s364 = smul.addr %s363, 2
      %s365 = smul.addr %s361, 32
      %s366 = sadd.s32 %s364, %s365
      %s367 = smul.addr %s366, 8
      %s368 = scalar_lea.vmem %s2, %s367
      %p369 = pneg %p125
      %p370 = pneg %p122
      %p371 = pneg %p146
      %p372 = pneg %p143
      %p373 = pneg %p167
      %p374 = pneg %p164
      %p375 = pneg %p188
      %p376 = pneg %p185
      %p377 = pneg %p209
      %p378 = pneg %p206
      %p379 = pneg %p237
      %p380 = pneg %p234
      %s381 = smul.u32 8, %s23
      %p382 = scmp.lt.s32.totalorder %s22, 1
      %s383 = scalar_select %p382, %s22, 1
      %p384 = scmp.lt.s32.totalorder %s381, 15
      %s385 = scalar_select %p384, %s381, 15
      %s386 = smul.addr %s385, 2
      %s387 = smul.addr %s383, 32
      %s388 = sadd.s32 %s386, %s387
      %s389 = smul.addr %s388, 8
      %s390 = scalar_lea.vmem %s7, %s389
      %s391 = smul.u32 8, %s23
      %p392 = scmp.lt.s32.totalorder %s22, 1
      %s393 = scalar_select %p392, %s22, 1
      %p394 = scmp.lt.s32.totalorder %s391, 15
      %s395 = scalar_select %p394, %s391, 15
      %s396 = smul.addr %s395, 2
      %s397 = smul.addr %s393, 32
      %s398 = sadd.s32 %s396, %s397
      %s399 = smul.addr %s398, 8
      %s400 = scalar_lea.vmem %s0, %s399
      %s401 = smul.u32 8, %s23
      %s402 = smul.u32 %s23, 8
      %s403 = ssub.s32 %s402, 1
      %p404 = scmp.gt.s32.totalorder %s403, 0
      %s405 = scalar_select %p404, %s403, 0
      %p406 = scmp.lt.s32.totalorder %s22, 1
      %s407 = scalar_select %p406, %s22, 1
      %p408 = scmp.lt.s32.totalorder %s405, 15
      %s409 = scalar_select %p408, %s405, 15
      %s410 = smul.addr %s409, 2
      %s411 = smul.addr %s407, 32
      %s412 = sadd.s32 %s410, %s411
      %s413 = smul.addr %s412, 8
      %s414 = scalar_lea.vmem %s1, %s413
      %s415 = smul.u32 %s23, 8
      %s416 = ssub.s32 %s415, 1
      %p417 = scmp.gt.s32.totalorder %s416, 0
      %s418 = scalar_select %p417, %s416, 0
      %s419 = sadd.s32 %s23, 1
      %s420 = smul.u32 %s419, 8
      %p421 = scmp.lt.s32.totalorder %s420, 15
      %s422 = scalar_select %p421, %s420, 15
      %p423 = scmp.lt.s32.totalorder %s22, 1
      %s424 = scalar_select %p423, %s22, 1
      %p425 = scmp.lt.s32.totalorder %s422, 15
      %s426 = scalar_select %p425, %s422, 15
      %s427 = smul.addr %s426, 2
      %s428 = smul.addr %s424, 32
      %s429 = sadd.s32 %s427, %s428
      %s430 = smul.addr %s429, 8
      %s431 = scalar_lea.vmem %s2, %s430
      %s432 = sadd.s32 %s23, 1
      %s433 = smul.u32 %s432, 8
      %p434 = scmp.lt.s32.totalorder %s433, 15
      %s435 = scalar_select %p434, %s433, 15
      %s436 = smul.u32 8, %s23
      %p437 = scmp.lt.s32.totalorder %s22, 1
      %s438 = scalar_select %p437, %s22, 1
      %p439 = scmp.lt.s32.totalorder %s436, 15
      %s440 = scalar_select %p439, %s436, 15
      %s441 = smul.addr %s440, 2
      %s442 = smul.addr %s438, 32
      %s443 = sadd.s32 %s441, %s442
      %s444 = smul.addr %s443, 8
      %s445 = scalar_lea.vmem %s7, %s444
      %s446 = smul.u32 8, %s23
      %v447 = vld [vmem:[%s400] sm:$0xff]
      %v448 = vld [vmem:[%s400 + $0x8] sm:$0xff]
      %v449 = vld [vmem:[%s400 + $0x10] sm:$0xff]
      %v450 = vld [vmem:[%s400 + $0x18] sm:$0xff]
      %v451 = vld [vmem:[%s400 + $0x20] sm:$0xff]
      %v452 = vld [vmem:[%s400 + $0x28] sm:$0xff]
      %v453 = vld [vmem:[%s400 + $0x30] sm:$0xff]
      %v454 = vld [vmem:[%s400 + $0x38] sm:$0xff]
      %v455 = vld [vmem:[%s400 + $0x40] sm:$0xff]
      %v456 = vld [vmem:[%s400 + $0x48] sm:$0xff]
      %v457 = vld [vmem:[%s400 + $0x50] sm:$0xff]
      %v458 = vld [vmem:[%s400 + $0x58] sm:$0xff]
      %v459 = vld [vmem:[%s400 + $0x60] sm:$0xff]
      %v460 = vld [vmem:[%s400 + $0x68] sm:$0xff]
      %v461 = vld [vmem:[%s400 + $0x70] sm:$0xff]
      %v462 = vld [vmem:[%s400 + $0x78] sm:$0xff]
      %v463 = vld [vmem:[%s3] sm:$0xf]
      %v464 = vld [vmem:[%s4] sm:$0x1]
      %v466 = vlaneseq
      %v467 = vshrl.u32 %v466, 7
      %v468 = vsub.s32 0, %v467
      %v469 = vrot.slane %v464, %v468
      %vm471 = vcmask 31744
      %v473 = vsel %vm471, %v447, 0
      %v476 = vsel %vm471, %v448, 0
      %v479 = vsel %vm471, %v449, 0
      %v482 = vsel %vm471, %v450, 0
      %v485 = vsel %vm471, %v451, 0
      %v488 = vsel %vm471, %v452, 0
      %v491 = vsel %vm471, %v453, 0
      %v494 = vsel %vm471, %v454, 0
      %v497 = vsel %vm471, %v455, 0
      %v500 = vsel %vm471, %v456, 0
      %v503 = vsel %vm471, %v457, 0
      %v506 = vsel %vm471, %v458, 0
      %v509 = vsel %vm471, %v459, 0
      %v512 = vsel %vm471, %v460, 0
      %v515 = vsel %vm471, %v461, 0
      %v518 = vsel %vm471, %v462, 0
      %vm520 = vcmask 1043456
      %v522 = vsel %vm520, %v463, 0
      %524 = vmatprep.subr.mxu0 0.0
      %525 = vmatpush1.msra.mxu0 %v522
      %526 = vmatprep.subr.mxu0 0.0
      %527 = vmatpush1.msra.mxu0 0.0
      %528 = vmatprep.subr.mxu0 0.0
      %529 = vmatpush1.msra.mxu0 0.0
      %530 = vmatprep.subr.mxu0 0.0
      %531 = vmatpush1.msra.mxu0 0.0
      %532 = vmatprep.subr.mxu0 0.0
      %533 = vmatpush1.msra.mxu0 0.0
      %534 = vmatprep.subr.mxu0 0.0
      %535 = vmatpush1.msra.mxu0 0.0
      %536 = vmatprep.subr.mxu0 0.0
      %537 = vmatpush1.msra.mxu0 0.0
      %538 = vmatprep.subr.mxu0 0.0
      %539 = vmatpush1.msra.mxu0 0.0
      %540 = vmatprep.subr.mxu0 0.0
      %541 = vmatpush1.msra.mxu0 0.0
      %542 = vmatprep.subr.mxu0 0.0
      %543 = vmatpush1.msra.mxu0 0.0
      %544 = vmatprep.subr.mxu0 0.0
      %545 = vmatpush1.msra.mxu0 0.0
      %546 = vmatprep.subr.mxu0 0.0
      %547 = vmatpush1.msra.mxu0 0.0
      %548 = vmatprep.subr.mxu0 0.0
      %549 = vmatpush1.msra.mxu0 0.0
      %550 = vmatprep.subr.mxu0 0.0
      %551 = vmatpush1.msra.mxu0 0.0
      %552 = vmatprep.subr.mxu0 0.0
      %553 = vmatpush1.msra.mxu0 0.0
      %554 = vmatprep.subr.mxu0 0.0
      %555 = vmatpush1.msra.mxu0 0.0
      %556 = vmatprep.subr.mxu0 0.0
      %557 = vmatpush1.msra.mxu0 0.0
      %558 = vmatprep.subr.mxu0 0.0
      %559 = vmatpush1.msra.mxu0 0.0
      %560 = vmatprep.subr.mxu0 0.0
      %561 = vmatpush1.msra.mxu0 0.0
      %562 = vmatprep.subr.mxu0 0.0
      %563 = vmatpush1.msra.mxu0 0.0
      %564 = vmatprep.subr.mxu0 0.0
      %565 = vmatpush1.msra.mxu0 0.0
      %566 = vmatprep.subr.mxu0 0.0
      %567 = vmatpush1.msra.mxu0 0.0
      %568 = vmatprep.subr.mxu0 0.0
      %569 = vmatpush1.msra.mxu0 0.0
      %570 = vmatprep.subr.mxu0 0.0
      %571 = vmatpush1.msra.mxu0 0.0
      %572 = vmatprep.subr.mxu0 0.0
      %573 = vmatpush1.msra.mxu0 0.0
      %574 = vmatprep.subr.mxu0 0.0
      %575 = vmatpush1.msra.mxu0 0.0
      %576 = vmatprep.subr.mxu0 0.0
      %577 = vmatpush1.msra.mxu0 0.0
      %578 = vmatprep.subr.mxu0 0.0
      %579 = vmatpush1.msra.mxu0 0.0
      %580 = vmatprep.subr.mxu0 0.0
      %581 = vmatpush1.msra.mxu0 0.0
      %582 = vmatprep.subr.mxu0 0.0
      %583 = vmatpush1.msra.mxu0 0.0
      %584 = vmatprep.subr.mxu0 0.0
      %585 = vmatpush1.msra.mxu0 0.0
      %586 = vmatprep.subr.mxu0 0.0
      %587 = vmatpush1.msra.mxu0 0.0
      %588 = vmatprep.mubr.f32.mxu0 0.0
      %589 = vmatmul.mubr.f32.gmra.mrb[0].mxu0 %v473
      %v590 = vpop.f32.mrb[0].mxu0
      %v591 = vadd.f32 %v469, %v590
      %v592 = vpop.f32.mrb[0].mxu0
      %593 = vmatprep.mubr.f32.mxu0 0.0
      %594 = vmatmul.mubr.f32.gmra.mrb[0].mxu0 %v476
      %v595 = vpop.f32.mrb[0].mxu0
      %v596 = vadd.f32 %v469, %v595
      %v597 = vpop.f32.mrb[0].mxu0
      %598 = vmatprep.mubr.f32.mxu0 0.0
      %599 = vmatmul.mubr.f32.gmra.mrb[0].mxu0 %v479
      %v600 = vpop.f32.mrb[0].mxu0
      %v601 = vadd.f32 %v469, %v600
      %v602 = vpop.f32.mrb[0].mxu0
      %603 = vmatprep.mubr.f32.mxu0 0.0
      %604 = vmatmul.mubr.f32.gmra.mrb[0].mxu0 %v482
      %v605 = vpop.f32.mrb[0].mxu0
      %v606 = vadd.f32 %v469, %v605
      %v607 = vpop.f32.mrb[0].mxu0
      %608 = vmatprep.mubr.f32.mxu0 0.0
      %609 = vmatmul.mubr.f32.gmra.mrb[0].mxu0 %v485
      %v610 = vpop.f32.mrb[0].mxu0
      %v611 = vadd.f32 %v469, %v610
      %v612 = vpop.f32.mrb[0].mxu0
      %613 = vmatprep.mubr.f32.mxu0 0.0
      %614 = vmatmul.mubr.f32.gmra.mrb[0].mxu0 %v488
      %v615 = vpop.f32.mrb[0].mxu0
      %v616 = vadd.f32 %v469, %v615
      %v617 = vpop.f32.mrb[0].mxu0
      %618 = vmatprep.mubr.f32.mxu0 0.0
      %619 = vmatmul.mubr.f32.gmra.mrb[0].mxu0 %v491
      %v620 = vpop.f32.mrb[0].mxu0
      %v621 = vadd.f32 %v469, %v620
      %v622 = vpop.f32.mrb[0].mxu0
      %623 = vmatprep.mubr.f32.mxu0 0.0
      %624 = vmatmul.mubr.f32.gmra.mrb[0].mxu0 %v494
      %v625 = vpop.f32.mrb[0].mxu0
      %v626 = vadd.f32 %v469, %v625
      %v627 = vpop.f32.mrb[0].mxu0
      %628 = vmatprep.mubr.f32.mxu0 0.0
      %629 = vmatmul.mubr.f32.gmra.mrb[0].mxu0 %v497
      %v630 = vpop.f32.mrb[0].mxu0
      %v631 = vadd.f32 %v469, %v630
      %v632 = vpop.f32.mrb[0].mxu0
      %633 = vmatprep.mubr.f32.mxu0 0.0
      %634 = vmatmul.mubr.f32.gmra.mrb[0].mxu0 %v500
      %v635 = vpop.f32.mrb[0].mxu0
      %v636 = vadd.f32 %v469, %v635
      %v637 = vpop.f32.mrb[0].mxu0
      %638 = vmatprep.mubr.f32.mxu0 0.0
      %639 = vmatmul.mubr.f32.gmra.mrb[0].mxu0 %v503
      %v640 = vpop.f32.mrb[0].mxu0
      %v641 = vadd.f32 %v469, %v640
      %v642 = vpop.f32.mrb[0].mxu0
      %643 = vmatprep.mubr.f32.mxu0 0.0
      %644 = vmatmul.mubr.f32.gmra.mrb[0].mxu0 %v506
      %v645 = vpop.f32.mrb[0].mxu0
      %v646 = vadd.f32 %v469, %v645
      %v647 = vpop.f32.mrb[0].mxu0
      %648 = vmatprep.mubr.f32.mxu0 0.0
      %649 = vmatmul.mubr.f32.gmra.mrb[0].mxu0 %v509
      %v650 = vpop.f32.mrb[0].mxu0
      %v651 = vadd.f32 %v469, %v650
      %v652 = vpop.f32.mrb[0].mxu0
      %653 = vmatprep.mubr.f32.mxu0 0.0
      %654 = vmatmul.mubr.f32.gmra.mrb[0].mxu0 %v512
      %v655 = vpop.f32.mrb[0].mxu0
      %v656 = vadd.f32 %v469, %v655
      %v657 = vpop.f32.mrb[0].mxu0
      %658 = vmatprep.mubr.f32.mxu0 0.0
      %659 = vmatmul.mubr.f32.gmra.mrb[0].mxu0 %v515
      %v660 = vpop.f32.mrb[0].mxu0
      %v661 = vadd.f32 %v469, %v660
      %v662 = vpop.f32.mrb[0].mxu0
      %663 = vmatprep.mubr.f32.mxu0 0.0
      %664 = vmatmul.mubr.f32.gmra.mrb[0].mxu0 %v518
      %v665 = vpop.f32.mrb[0].mxu0
      %v666 = vadd.f32 %v469, %v665
      %v667 = vpop.f32.mrb[0].mxu0
      %668 = vdwg.mxu0
      %vm669 = vcmp.gt.f32.partialorder %v591, 0.0
      %vm670 = vcmp.gt.f32.partialorder %v596, 0.0
      %vm671 = vcmp.gt.f32.partialorder %v601, 0.0
      %vm672 = vcmp.gt.f32.partialorder %v606, 0.0
      %vm673 = vcmp.gt.f32.partialorder %v611, 0.0
      %vm674 = vcmp.gt.f32.partialorder %v616, 0.0
      %vm675 = vcmp.gt.f32.partialorder %v621, 0.0
      %vm676 = vcmp.gt.f32.partialorder %v626, 0.0
      %vm677 = vcmp.gt.f32.partialorder %v631, 0.0
      %vm678 = vcmp.gt.f32.partialorder %v636, 0.0
      %vm679 = vcmp.gt.f32.partialorder %v641, 0.0
      %vm680 = vcmp.gt.f32.partialorder %v646, 0.0
      %vm681 = vcmp.gt.f32.partialorder %v651, 0.0
      %vm682 = vcmp.gt.f32.partialorder %v656, 0.0
      %vm683 = vcmp.gt.f32.partialorder %v661, 0.0
      %vm684 = vcmp.gt.f32.partialorder %v666, 0.0
      %v685 = vmul.f32 %v591, 0.01
      %v686 = vmul.f32 %v596, 0.01
      %v687 = vmul.f32 %v601, 0.01
      %v688 = vmul.f32 %v606, 0.01
      %v689 = vmul.f32 %v611, 0.01
      %v690 = vmul.f32 %v616, 0.01
      %v691 = vmul.f32 %v621, 0.01
      %v692 = vmul.f32 %v626, 0.01
      %v693 = vmul.f32 %v631, 0.01
      %v694 = vmul.f32 %v636, 0.01
      %v695 = vmul.f32 %v641, 0.01
      %v696 = vmul.f32 %v646, 0.01
      %v697 = vmul.f32 %v651, 0.01
      %v698 = vmul.f32 %v656, 0.01
      %v699 = vmul.f32 %v661, 0.01
      %v700 = vmul.f32 %v666, 0.01
      %v701 = vsel %vm669, %v591, %v685
      %v702 = vsel %vm670, %v596, %v686
      %v703 = vsel %vm671, %v601, %v687
      %v704 = vsel %vm672, %v606, %v688
      %v705 = vsel %vm673, %v611, %v689
      %v706 = vsel %vm674, %v616, %v690
      %v707 = vsel %vm675, %v621, %v691
      %v708 = vsel %vm676, %v626, %v692
      %v709 = vsel %vm677, %v631, %v693
      %v710 = vsel %vm678, %v636, %v694
      %v711 = vsel %vm679, %v641, %v695
      %v712 = vsel %vm680, %v646, %v696
      %v713 = vsel %vm681, %v651, %v697
      %v714 = vsel %vm682, %v656, %v698
      %v715 = vsel %vm683, %v661, %v699
      %v716 = vsel %vm684, %v666, %v700
      %v717 = vld [vmem:[%s414] sm:$0xff]
      %v718 = vld [vmem:[%s414 + $0x8] sm:$0xff]
      %v720 = vsel %vm471, %v717, 0
      %v723 = vsel %vm471, %v718, 0
      %725 = vmatprep.subr.mxu0 0.0
      %726 = vmatpush1.msra.mxu0 %v522
      %727 = vmatprep.subr.mxu0 0.0
      %728 = vmatpush1.msra.mxu0 0.0
      %729 = vmatprep.subr.mxu0 0.0
      %730 = vmatpush1.msra.mxu0 0.0
      %731 = vmatprep.subr.mxu0 0.0
      %732 = vmatpush1.msra.mxu0 0.0
      %733 = vmatprep.subr.mxu0 0.0
      %734 = vmatpush1.msra.mxu0 0.0
      %735 = vmatprep.subr.mxu0 0.0
      %736 = vmatpush1.msra.mxu0 0.0
      %737 = vmatprep.subr.mxu0 0.0
      %738 = vmatpush1.msra.mxu0 0.0
      %739 = vmatprep.subr.mxu0 0.0
      %740 = vmatpush1.msra.mxu0 0.0
      %741 = vmatprep.subr.mxu0 0.0
      %742 = vmatpush1.msra.mxu0 0.0
      %743 = vmatprep.subr.mxu0 0.0
      %744 = vmatpush1.msra.mxu0 0.0
      %745 = vmatprep.subr.mxu0 0.0
      %746 = vmatpush1.msra.mxu0 0.0
      %747 = vmatprep.subr.mxu0 0.0
      %748 = vmatpush1.msra.mxu0 0.0
      %749 = vmatprep.subr.mxu0 0.0
      %750 = vmatpush1.msra.mxu0 0.0
      %751 = vmatprep.subr.mxu0 0.0
      %752 = vmatpush1.msra.mxu0 0.0
      %753 = vmatprep.subr.mxu0 0.0
      %754 = vmatpush1.msra.mxu0 0.0
      %755 = vmatprep.subr.mxu0 0.0
      %756 = vmatpush1.msra.mxu0 0.0
      %757 = vmatprep.subr.mxu0 0.0
      %758 = vmatpush1.msra.mxu0 0.0
      %759 = vmatprep.subr.mxu0 0.0
      %760 = vmatpush1.msra.mxu0 0.0
      %761 = vmatprep.subr.mxu0 0.0
      %762 = vmatpush1.msra.mxu0 0.0
      %763 = vmatprep.subr.mxu0 0.0
      %764 = vmatpush1.msra.mxu0 0.0
      %765 = vmatprep.subr.mxu0 0.0
      %766 = vmatpush1.msra.mxu0 0.0
      %767 = vmatprep.subr.mxu0 0.0
      %768 = vmatpush1.msra.mxu0 0.0
      %769 = vmatprep.subr.mxu0 0.0
      %770 = vmatpush1.msra.mxu0 0.0
      %771 = vmatprep.subr.mxu0 0.0
      %772 = vmatpush1.msra.mxu0 0.0
      %773 = vmatprep.subr.mxu0 0.0
      %774 = vmatpush1.msra.mxu0 0.0
      %775 = vmatprep.subr.mxu0 0.0
      %776 = vmatpush1.msra.mxu0 0.0
      %777 = vmatprep.subr.mxu0 0.0
      %778 = vmatpush1.msra.mxu0 0.0
      %779 = vmatprep.subr.mxu0 0.0
      %780 = vmatpush1.msra.mxu0 0.0
      %781 = vmatprep.subr.mxu0 0.0
      %782 = vmatpush1.msra.mxu0 0.0
      %783 = vmatprep.subr.mxu0 0.0
      %784 = vmatpush1.msra.mxu0 0.0
      %785 = vmatprep.subr.mxu0 0.0
      %786 = vmatpush1.msra.mxu0 0.0
      %787 = vmatprep.subr.mxu0 0.0
      %788 = vmatpush1.msra.mxu0 0.0
      %789 = vmatprep.mubr.f32.mxu0 0.0
      %790 = vmatmul.mubr.f32.gmra.mrb[0].mxu0 %v720
      %v791 = vpop.f32.mrb[0].mxu0
      %v792 = vadd.f32 %v469, %v791
      %v793 = vpop.f32.mrb[0].mxu0
      %794 = vmatprep.mubr.f32.mxu0 0.0
      %795 = vmatmul.mubr.f32.gmra.mrb[0].mxu0 %v723
      %v796 = vpop.f32.mrb[0].mxu0
      %v797 = vadd.f32 %v469, %v796
      %v798 = vpop.f32.mrb[0].mxu0
      %799 = vdwg.mxu0
      %vm800 = vcmp.gt.f32.partialorder %v792, 0.0
      %vm801 = vcmp.gt.f32.partialorder %v797, 0.0
      %v802 = vmul.f32 %v792, 0.01
      %v803 = vmul.f32 %v797, 0.01
      %v804 = vsel %vm800, %v792, %v802
      %v805 = vsel %vm801, %v797, %v803
      %v806 = vld [vmem:[%s431] sm:$0xff]
      %v807 = vld [vmem:[%s431 + $0x8] sm:$0xff]
      %v809 = vsel %vm471, %v806, 0
      %v812 = vsel %vm471, %v807, 0
      %814 = vmatprep.subr.mxu0 0.0
      %815 = vmatpush1.msra.mxu0 %v522
      %816 = vmatprep.subr.mxu0 0.0
      %817 = vmatpush1.msra.mxu0 0.0
      %818 = vmatprep.subr.mxu0 0.0
      %819 = vmatpush1.msra.mxu0 0.0
      %820 = vmatprep.subr.mxu0 0.0
      %821 = vmatpush1.msra.mxu0 0.0
      %822 = vmatprep.subr.mxu0 0.0
      %823 = vmatpush1.msra.mxu0 0.0
      %824 = vmatprep.subr.mxu0 0.0
      %825 = vmatpush1.msra.mxu0 0.0
      %826 = vmatprep.subr.mxu0 0.0
      %827 = vmatpush1.msra.mxu0 0.0
      %828 = vmatprep.subr.mxu0 0.0
      %829 = vmatpush1.msra.mxu0 0.0
      %830 = vmatprep.subr.mxu0 0.0
      %831 = vmatpush1.msra.mxu0 0.0
      %832 = vmatprep.subr.mxu0 0.0
      %833 = vmatpush1.msra.mxu0 0.0
      %834 = vmatprep.subr.mxu0 0.0
      %835 = vmatpush1.msra.mxu0 0.0
      %836 = vmatprep.subr.mxu0 0.0
      %837 = vmatpush1.msra.mxu0 0.0
      %838 = vmatprep.subr.mxu0 0.0
      %839 = vmatpush1.msra.mxu0 0.0
      %840 = vmatprep.subr.mxu0 0.0
      %841 = vmatpush1.msra.mxu0 0.0
      %842 = vmatprep.subr.mxu0 0.0
      %843 = vmatpush1.msra.mxu0 0.0
      %844 = vmatprep.subr.mxu0 0.0
      %845 = vmatpush1.msra.mxu0 0.0
      %846 = vmatprep.subr.mxu0 0.0
      %847 = vmatpush1.msra.mxu0 0.0
      %848 = vmatprep.subr.mxu0 0.0
      %849 = vmatpush1.msra.mxu0 0.0
      %850 = vmatprep.subr.mxu0 0.0
      %851 = vmatpush1.msra.mxu0 0.0
      %852 = vmatprep.subr.mxu0 0.0
      %853 = vmatpush1.msra.mxu0 0.0
      %854 = vmatprep.subr.mxu0 0.0
      %855 = vmatpush1.msra.mxu0 0.0
      %856 = vmatprep.subr.mxu0 0.0
      %857 = vmatpush1.msra.mxu0 0.0
      %858 = vmatprep.subr.mxu0 0.0
      %859 = vmatpush1.msra.mxu0 0.0
      %860 = vmatprep.subr.mxu0 0.0
      %861 = vmatpush1.msra.mxu0 0.0
      %862 = vmatprep.subr.mxu0 0.0
      %863 = vmatpush1.msra.mxu0 0.0
      %864 = vmatprep.subr.mxu0 0.0
      %865 = vmatpush1.msra.mxu0 0.0
      %866 = vmatprep.subr.mxu0 0.0
      %867 = vmatpush1.msra.mxu0 0.0
      %868 = vmatprep.subr.mxu0 0.0
      %869 = vmatpush1.msra.mxu0 0.0
      %870 = vmatprep.subr.mxu0 0.0
      %871 = vmatpush1.msra.mxu0 0.0
      %872 = vmatprep.subr.mxu0 0.0
      %873 = vmatpush1.msra.mxu0 0.0
      %874 = vmatprep.subr.mxu0 0.0
      %875 = vmatpush1.msra.mxu0 0.0
      %876 = vmatprep.subr.mxu0 0.0
      %877 = vmatpush1.msra.mxu0 0.0
      %878 = vmatprep.mubr.f32.mxu0 0.0
      %879 = vmatmul.mubr.f32.gmra.mrb[0].mxu0 %v809
      %v880 = vpop.f32.mrb[0].mxu0
      %v881 = vadd.f32 %v469, %v880
      %v882 = vpop.f32.mrb[0].mxu0
      %883 = vmatprep.mubr.f32.mxu0 0.0
      %884 = vmatmul.mubr.f32.gmra.mrb[0].mxu0 %v812
      %v885 = vpop.f32.mrb[0].mxu0
      %v886 = vadd.f32 %v469, %v885
      %v887 = vpop.f32.mrb[0].mxu0
      %888 = vdwg.mxu0
      %vm889 = vcmp.gt.f32.partialorder %v881, 0.0
      %vm890 = vcmp.gt.f32.partialorder %v886, 0.0
      %v891 = vmul.f32 %v881, 0.01
      %v892 = vmul.f32 %v886, 0.01
      %v893 = vsel %vm889, %v881, %v891
      %v894 = vsel %vm890, %v886, %v892
      %p895 = scmp.eq.s32.totalorder %s23, 0
      %s896 = scalar_select %p895, 1, 0
      %v897 = vstv %s896
      %vm898 = vcmp.eq.s32.totalorder %v897, 1
      %v899 = vsel %vm898, 0.0, %v804
      %v900 = vsel %vm898, 0.0, %v805
      %p901 = scmp.eq.s32.totalorder %s23, 1
      %s902 = scalar_select %p901, 1, 0
      %v903 = vstv %s902
      %vm904 = vcmp.eq.s32.totalorder %v903, 1
      %v905 = vsel %vm904, 0.0, %v893
      %v906 = vsel %vm904, 0.0, %v894
      %vm927 = vcmask 1040384
      %v928 = vrot.slane %v899, 7
      %v929 = vrot.slane %v900, 7
      %v930 = vsel %vm927, %v928, %v929
      %v931 = vrot.slane %v701, 7
      %v932 = vrot.slane %v702, 7
      %v933 = vsel %vm927, %v931, %v932
      %v934 = vrot.slane %v703, 7
      %v935 = vrot.slane %v704, 7
      %v936 = vsel %vm927, %v934, %v935
      %v937 = vrot.slane %v705, 7
      %v938 = vrot.slane %v706, 7
      %v939 = vsel %vm927, %v937, %v938
      %v940 = vrot.slane %v707, 7
      %v941 = vrot.slane %v708, 7
      %v942 = vsel %vm927, %v940, %v941
      %v943 = vrot.slane %v709, 7
      %v944 = vrot.slane %v710, 7
      %v945 = vsel %vm927, %v943, %v944
      %v946 = vrot.slane %v711, 7
      %v947 = vrot.slane %v712, 7
      %v948 = vsel %vm927, %v946, %v947
      %v949 = vrot.slane %v713, 7
      %v950 = vrot.slane %v714, 7
      %v951 = vsel %vm927, %v949, %v950
      %v952 = vrot.slane %v715, 7
      %v953 = vrot.slane %v716, 7
      %v954 = vsel %vm927, %v952, %v953
      %v955 = vrot.slane %v905, 7
      %v956 = vrot.slane %v906, 7
      %v957 = vsel %vm927, %v955, %v956
      %v978 = vsel %vm927, 0.0, %v928
      %v979 = vsel %vm927, 0.0, %v931
      %v980 = vsel %vm927, 0.0, %v934
      %v981 = vsel %vm927, 0.0, %v937
      %v982 = vsel %vm927, 0.0, %v940
      %v983 = vsel %vm927, 0.0, %v943
      %v984 = vsel %vm927, 0.0, %v946
      %v985 = vsel %vm927, 0.0, %v949
      %v986 = vsel %vm927, 0.0, %v952
      %v987 = vsel %vm927, 0.0, %v955
      %vm988 = vcmask 1046528
      %v989 = vrot.slane %v899, 1
      %v990 = vrot.slane %v900, 1
      %v991 = vsel %vm988, %v989, %v990
      %v992 = vrot.slane %v701, 1
      %v993 = vrot.slane %v702, 1
      %v994 = vsel %vm988, %v992, %v993
      %v995 = vrot.slane %v703, 1
      %v996 = vrot.slane %v704, 1
      %v997 = vsel %vm988, %v995, %v996
      %v998 = vrot.slane %v705, 1
      %v999 = vrot.slane %v706, 1
      %v1000 = vsel %vm988, %v998, %v999
      %v1001 = vrot.slane %v707, 1
      %v1002 = vrot.slane %v708, 1
      %v1003 = vsel %vm988, %v1001, %v1002
      %v1004 = vrot.slane %v709, 1
      %v1005 = vrot.slane %v710, 1
      %v1006 = vsel %vm988, %v1004, %v1005
      %v1007 = vrot.slane %v711, 1
      %v1008 = vrot.slane %v712, 1
      %v1009 = vsel %vm988, %v1007, %v1008
      %v1010 = vrot.slane %v713, 1
      %v1011 = vrot.slane %v714, 1
      %v1012 = vsel %vm988, %v1010, %v1011
      %v1013 = vrot.slane %v715, 1
      %v1014 = vrot.slane %v716, 1
      %v1015 = vsel %vm988, %v1013, %v1014
      %v1016 = vrot.slane %v905, 1
      %v1017 = vrot.slane %v906, 1
      %v1018 = vsel %vm988, %v1016, %v1017
      %v1029 = vsel %vm988, %v990, 0.0
      %v1030 = vsel %vm988, %v993, 0.0
      %v1031 = vsel %vm988, %v996, 0.0
      %v1032 = vsel %vm988, %v999, 0.0
      %v1033 = vsel %vm988, %v1002, 0.0
      %v1034 = vsel %vm988, %v1005, 0.0
      %v1035 = vsel %vm988, %v1008, 0.0
      %v1036 = vsel %vm988, %v1011, 0.0
      %v1037 = vsel %vm988, %v1014, 0.0
      %v1038 = vsel %vm988, %v1017, 0.0
      %1039 = vrot.lane.b32.xlu0 %v899, 8
      %v1040 = vpop.permute.xlu0 %1039
      %1041 = vrot.lane.b32.xlu0 %v900, 8
      %v1042 = vpop.permute.xlu0 %1041
      %1043 = vrot.lane.b32.xlu0 %v701, 8
      %v1044 = vpop.permute.xlu0 %1043
      %1045 = vrot.lane.b32.xlu0 %v702, 8
      %v1046 = vpop.permute.xlu0 %1045
      %1047 = vrot.lane.b32.xlu0 %v703, 8
      %v1048 = vpop.permute.xlu0 %1047
      %1049 = vrot.lane.b32.xlu0 %v704, 8
      %v1050 = vpop.permute.xlu0 %1049
      %1051 = vrot.lane.b32.xlu0 %v705, 8
      %v1052 = vpop.permute.xlu0 %1051
      %1053 = vrot.lane.b32.xlu0 %v706, 8
      %v1054 = vpop.permute.xlu0 %1053
      %1055 = vrot.lane.b32.xlu0 %v707, 8
      %v1056 = vpop.permute.xlu0 %1055
      %1057 = vrot.lane.b32.xlu0 %v708, 8
      %v1058 = vpop.permute.xlu0 %1057
      %1059 = vrot.lane.b32.xlu0 %v709, 8
      %v1060 = vpop.permute.xlu0 %1059
      %1061 = vrot.lane.b32.xlu0 %v710, 8
      %v1062 = vpop.permute.xlu0 %1061
      %1063 = vrot.lane.b32.xlu0 %v711, 8
      %v1064 = vpop.permute.xlu0 %1063
      %1065 = vrot.lane.b32.xlu0 %v712, 8
      %v1066 = vpop.permute.xlu0 %1065
      %1067 = vrot.lane.b32.xlu0 %v713, 8
      %v1068 = vpop.permute.xlu0 %1067
      %1069 = vrot.lane.b32.xlu0 %v714, 8
      %v1070 = vpop.permute.xlu0 %1069
      %1071 = vrot.lane.b32.xlu0 %v715, 8
      %v1072 = vpop.permute.xlu0 %1071
      %1073 = vrot.lane.b32.xlu0 %v716, 8
      %v1074 = vpop.permute.xlu0 %1073
      %1075 = vrot.lane.b32.xlu0 %v905, 8
      %v1076 = vpop.permute.xlu0 %1075
      %1077 = vrot.lane.b32.xlu0 %v906, 8
      %v1078 = vpop.permute.xlu0 %1077
      %1109 = vrot.lane.b32.xlu0 %v991, 16
      %v1110 = vpop.permute.xlu0 %1109
      %1111 = vrot.lane.b32.xlu0 %v1029, 16
      %v1112 = vpop.permute.xlu0 %1111
      %1113 = vrot.lane.b32.xlu0 %v994, 16
      %v1114 = vpop.permute.xlu0 %1113
      %1115 = vrot.lane.b32.xlu0 %v1030, 16
      %v1116 = vpop.permute.xlu0 %1115
      %1117 = vrot.lane.b32.xlu0 %v997, 16
      %v1118 = vpop.permute.xlu0 %1117
      %1119 = vrot.lane.b32.xlu0 %v1031, 16
      %v1120 = vpop.permute.xlu0 %1119
      %1121 = vrot.lane.b32.xlu0 %v1000, 16
      %v1122 = vpop.permute.xlu0 %1121
      %1123 = vrot.lane.b32.xlu0 %v1032, 16
      %v1124 = vpop.permute.xlu0 %1123
      %1125 = vrot.lane.b32.xlu0 %v1003, 16
      %v1126 = vpop.permute.xlu0 %1125
      %1127 = vrot.lane.b32.xlu0 %v1033, 16
      %v1128 = vpop.permute.xlu0 %1127
      %1129 = vrot.lane.b32.xlu0 %v1006, 16
      %v1130 = vpop.permute.xlu0 %1129
      %1131 = vrot.lane.b32.xlu0 %v1034, 16
      %v1132 = vpop.permute.xlu0 %1131
      %1133 = vrot.lane.b32.xlu0 %v1009, 16
      %v1134 = vpop.permute.xlu0 %1133
      %1135 = vrot.lane.b32.xlu0 %v1035, 16
      %v1136 = vpop.permute.xlu0 %1135
      %1137 = vrot.lane.b32.xlu0 %v1012, 16
      %v1138 = vpop.permute.xlu0 %1137
      %1139 = vrot.lane.b32.xlu0 %v1036, 16
      %v1140 = vpop.permute.xlu0 %1139
      %1141 = vrot.lane.b32.xlu0 %v1015, 16
      %v1142 = vpop.permute.xlu0 %1141
      %1143 = vrot.lane.b32.xlu0 %v1037, 16
      %v1144 = vpop.permute.xlu0 %1143
      %1145 = vrot.lane.b32.xlu0 %v1018, 16
      %v1146 = vpop.permute.xlu0 %1145
      %1147 = vrot.lane.b32.xlu0 %v1038, 16
      %v1148 = vpop.permute.xlu0 %1147
      %vm1169 = vcmask 64512
      %v1170 = vsel %vm1169, %v978, %v1040
      %v1171 = vsel %vm1169, %v930, %v1042
      %v1172 = vsel %vm1169, %v979, %v1044
      %v1173 = vsel %vm1169, %v933, %v1046
      %v1174 = vsel %vm1169, %v980, %v1048
      %v1175 = vsel %vm1169, %v936, %v1050
      %v1176 = vsel %vm1169, %v981, %v1052
      %v1177 = vsel %vm1169, %v939, %v1054
      %v1178 = vsel %vm1169, %v982, %v1056
      %v1179 = vsel %vm1169, %v942, %v1058
      %v1180 = vsel %vm1169, %v983, %v1060
      %v1181 = vsel %vm1169, %v945, %v1062
      %v1182 = vsel %vm1169, %v984, %v1064
      %v1183 = vsel %vm1169, %v948, %v1066
      %v1184 = vsel %vm1169, %v985, %v1068
      %v1185 = vsel %vm1169, %v951, %v1070
      %v1186 = vsel %vm1169, %v986, %v1072
      %v1187 = vsel %vm1169, %v954, %v1074
      %v1188 = vsel %vm1169, %v987, %v1076
      %v1189 = vsel %vm1169, %v957, %v1078
      %vm1190 = vcmask 130048
      %v1191 = vsel %vm1190, %v1170, %v1110
      %v1192 = vsel %vm1190, %v1171, %v1112
      %v1193 = vsel %vm1190, %v1172, %v1114
      %v1194 = vsel %vm1190, %v1173, %v1116
      %v1195 = vsel %vm1190, %v1174, %v1118
      %v1196 = vsel %vm1190, %v1175, %v1120
      %v1197 = vsel %vm1190, %v1176, %v1122
      %v1198 = vsel %vm1190, %v1177, %v1124
      %v1199 = vsel %vm1190, %v1178, %v1126
      %v1200 = vsel %vm1190, %v1179, %v1128
      %v1201 = vsel %vm1190, %v1180, %v1130
      %v1202 = vsel %vm1190, %v1181, %v1132
      %v1203 = vsel %vm1190, %v1182, %v1134
      %v1204 = vsel %vm1190, %v1183, %v1136
      %v1205 = vsel %vm1190, %v1184, %v1138
      %v1206 = vsel %vm1190, %v1185, %v1140
      %v1207 = vsel %vm1190, %v1186, %v1142
      %v1208 = vsel %vm1190, %v1187, %v1144
      %v1209 = vsel %vm1190, %v1188, %v1146
      %v1210 = vsel %vm1190, %v1189, %v1148
      %v1211 = vld [vmem:[%s5] sm:$0xff]
      %v1212 = vld [vmem:[%s5 + $0x8] sm:$0xff]
      %v1213 = vld [vmem:[%s5 + $0x10] sm:$0xff]
      %s1214 = scalar_lea.vmem %s5, 24
      %v1215 = vld [vmem:[%s1214] sm:$0xff]
      %v1216 = vld [vmem:[%s1214 + $0x8] sm:$0xff]
      %v1217 = vld [vmem:[%s1214 + $0x10] sm:$0xff]
      %vm1218 = vcmask 195584
      %v1220 = vsel %vm1218, %v1193, 0
      %v1223 = vsel %vm1218, %v1194, 0
      %v1226 = vsel %vm1218, %v1195, 0
      %v1229 = vsel %vm1218, %v1196, 0
      %v1232 = vsel %vm1218, %v1197, 0
      %v1235 = vsel %vm1218, %v1198, 0
      %v1238 = vsel %vm1218, %v1199, 0
      %v1241 = vsel %vm1218, %v1200, 0
      %v1244 = vsel %vm1218, %v1201, 0
      %v1247 = vsel %vm1218, %v1202, 0
      %v1250 = vsel %vm1218, %v1203, 0
      %v1253 = vsel %vm1218, %v1204, 0
      %v1256 = vsel %vm1218, %v1205, 0
      %v1259 = vsel %vm1218, %v1206, 0
      %v1262 = vsel %vm1218, %v1207, 0
      %v1265 = vsel %vm1218, %v1208, 0
      %1267 = vmatprep.subr.mxu0 0.0
      %1268 = vmatpush1.msra.mxu0 %v1215
      %1269 = vmatprep.subr.mxu0 0.0
      %1270 = vmatpush1.msra.mxu0 %v1216
      %1271 = vmatprep.subr.mxu0 0.0
      %1272 = vmatpush1.msra.mxu0 %v1217
      %1273 = vmatprep.subr.mxu0 0.0
      %1274 = vmatpush1.msra.mxu0 0.0
      %1275 = vmatprep.subr.mxu0 0.0
      %1276 = vmatpush1.msra.mxu0 0.0
      %1277 = vmatprep.subr.mxu0 0.0
      %1278 = vmatpush1.msra.mxu0 0.0
      %1279 = vmatprep.subr.mxu0 0.0
      %1280 = vmatpush1.msra.mxu0 0.0
      %1281 = vmatprep.subr.mxu0 0.0
      %1282 = vmatpush1.msra.mxu0 0.0
      %1283 = vmatprep.subr.mxu0 0.0
      %1284 = vmatpush1.msra.mxu0 0.0
      %1285 = vmatprep.subr.mxu0 0.0
      %1286 = vmatpush1.msra.mxu0 0.0
      %1287 = vmatprep.subr.mxu0 0.0
      %1288 = vmatpush1.msra.mxu0 0.0
      %1289 = vmatprep.subr.mxu0 0.0
      %1290 = vmatpush1.msra.mxu0 0.0
      %1291 = vmatprep.subr.mxu0 0.0
      %1292 = vmatpush1.msra.mxu0 0.0
      %1293 = vmatprep.subr.mxu0 0.0
      %1294 = vmatpush1.msra.mxu0 0.0
      %1295 = vmatprep.subr.mxu0 0.0
      %1296 = vmatpush1.msra.mxu0 0.0
      %1297 = vmatprep.subr.mxu0 0.0
      %1298 = vmatpush1.msra.mxu0 0.0
      %1299 = vmatprep.subr.mxu0 0.0
      %1300 = vmatpush1.msra.mxu0 0.0
      %1301 = vmatprep.subr.mxu0 0.0
      %1302 = vmatpush1.msra.mxu0 0.0
      %1303 = vmatprep.subr.mxu0 0.0
      %1304 = vmatpush1.msra.mxu0 0.0
      %1305 = vmatprep.subr.mxu0 0.0
      %1306 = vmatpush1.msra.mxu0 0.0
      %1307 = vmatprep.subr.mxu0 0.0
      %1308 = vmatpush1.msra.mxu0 0.0
      %1309 = vmatprep.subr.mxu0 0.0
      %1310 = vmatpush1.msra.mxu0 0.0
      %1311 = vmatprep.subr.mxu0 0.0
      %1312 = vmatpush1.msra.mxu0 0.0
      %1313 = vmatprep.subr.mxu0 0.0
      %1314 = vmatpush1.msra.mxu0 0.0
      %1315 = vmatprep.subr.mxu0 0.0
      %1316 = vmatpush1.msra.mxu0 0.0
      %1317 = vmatprep.subr.mxu0 0.0
      %1318 = vmatpush1.msra.mxu0 0.0
      %1319 = vmatprep.subr.mxu0 0.0
      %1320 = vmatpush1.msra.mxu0 0.0
      %1321 = vmatprep.subr.mxu0 0.0
      %1322 = vmatpush1.msra.mxu0 0.0
      %1323 = vmatprep.subr.mxu0 0.0
      %1324 = vmatpush1.msra.mxu0 0.0
      %1325 = vmatprep.subr.mxu0 0.0
      %1326 = vmatpush1.msra.mxu0 0.0
      %1327 = vmatprep.subr.mxu0 0.0
      %1328 = vmatpush1.msra.mxu0 0.0
      %1329 = vmatprep.subr.mxu0 0.0
      %1330 = vmatpush1.msra.mxu0 0.0
      %1331 = vmatprep.mubr.f32.mxu0 0.0
      %1332 = vmatmul.mubr.f32.gmra.mrb[0].mxu0 %v1220
      %v1333 = vpop.f32.mrb[0].mxu0
      %v1334 = vadd.f32 0.0, %v1333
      %v1335 = vpop.f32.mrb[0].mxu0
      %1336 = vmatprep.mubr.f32.mxu0 0.0
      %1337 = vmatmul.mubr.f32.gmra.mrb[0].mxu0 %v1223
      %v1338 = vpop.f32.mrb[0].mxu0
      %v1339 = vadd.f32 0.0, %v1338
      %v1340 = vpop.f32.mrb[0].mxu0
      %1341 = vmatprep.mubr.f32.mxu0 0.0
      %1342 = vmatmul.mubr.f32.gmra.mrb[0].mxu0 %v1226
      %v1343 = vpop.f32.mrb[0].mxu0
      %v1344 = vadd.f32 0.0, %v1343
      %v1345 = vpop.f32.mrb[0].mxu0
      %1346 = vmatprep.mubr.f32.mxu0 0.0
      %1347 = vmatmul.mubr.f32.gmra.mrb[0].mxu0 %v1229
      %v1348 = vpop.f32.mrb[0].mxu0
      %v1349 = vadd.f32 0.0, %v1348
      %v1350 = vpop.f32.mrb[0].mxu0
      %1351 = vmatprep.mubr.f32.mxu0 0.0
      %1352 = vmatmul.mubr.f32.gmra.mrb[0].mxu0 %v1232
      %v1353 = vpop.f32.mrb[0].mxu0
      %v1354 = vadd.f32 0.0, %v1353
      %v1355 = vpop.f32.mrb[0].mxu0
      %1356 = vmatprep.mubr.f32.mxu0 0.0
      %1357 = vmatmul.mubr.f32.gmra.mrb[0].mxu0 %v1235
      %v1358 = vpop.f32.mrb[0].mxu0
      %v1359 = vadd.f32 0.0, %v1358
      %v1360 = vpop.f32.mrb[0].mxu0
      %1361 = vmatprep.mubr.f32.mxu0 0.0
      %1362 = vmatmul.mubr.f32.gmra.mrb[0].mxu0 %v1238
      %v1363 = vpop.f32.mrb[0].mxu0
      %v1364 = vadd.f32 0.0, %v1363
      %v1365 = vpop.f32.mrb[0].mxu0
      %1366 = vmatprep.mubr.f32.mxu0 0.0
      %1367 = vmatmul.mubr.f32.gmra.mrb[0].mxu0 %v1241
      %v1368 = vpop.f32.mrb[0].mxu0
      %v1369 = vadd.f32 0.0, %v1368
      %v1370 = vpop.f32.mrb[0].mxu0
      %1371 = vmatprep.mubr.f32.mxu0 0.0
      %1372 = vmatmul.mubr.f32.gmra.mrb[0].mxu0 %v1244
      %v1373 = vpop.f32.mrb[0].mxu0
      %v1374 = vadd.f32 0.0, %v1373
      %v1375 = vpop.f32.mrb[0].mxu0
      %1376 = vmatprep.mubr.f32.mxu0 0.0
      %1377 = vmatmul.mubr.f32.gmra.mrb[0].mxu0 %v1247
      %v1378 = vpop.f32.mrb[0].mxu0
      %v1379 = vadd.f32 0.0, %v1378
      %v1380 = vpop.f32.mrb[0].mxu0
      %1381 = vmatprep.mubr.f32.mxu0 0.0
      %1382 = vmatmul.mubr.f32.gmra.mrb[0].mxu0 %v1250
      %v1383 = vpop.f32.mrb[0].mxu0
      %v1384 = vadd.f32 0.0, %v1383
      %v1385 = vpop.f32.mrb[0].mxu0
      %1386 = vmatprep.mubr.f32.mxu0 0.0
      %1387 = vmatmul.mubr.f32.gmra.mrb[0].mxu0 %v1253
      %v1388 = vpop.f32.mrb[0].mxu0
      %v1389 = vadd.f32 0.0, %v1388
      %v1390 = vpop.f32.mrb[0].mxu0
      %1391 = vmatprep.mubr.f32.mxu0 0.0
      %1392 = vmatmul.mubr.f32.gmra.mrb[0].mxu0 %v1256
      %v1393 = vpop.f32.mrb[0].mxu0
      %v1394 = vadd.f32 0.0, %v1393
      %v1395 = vpop.f32.mrb[0].mxu0
      %1396 = vmatprep.mubr.f32.mxu0 0.0
      %1397 = vmatmul.mubr.f32.gmra.mrb[0].mxu0 %v1259
      %v1398 = vpop.f32.mrb[0].mxu0
      %v1399 = vadd.f32 0.0, %v1398
      %v1400 = vpop.f32.mrb[0].mxu0
      %1401 = vmatprep.mubr.f32.mxu0 0.0
      %1402 = vmatmul.mubr.f32.gmra.mrb[0].mxu0 %v1262
      %v1403 = vpop.f32.mrb[0].mxu0
      %v1404 = vadd.f32 0.0, %v1403
      %v1405 = vpop.f32.mrb[0].mxu0
      %1406 = vmatprep.mubr.f32.mxu0 0.0
      %1407 = vmatmul.mubr.f32.gmra.mrb[0].mxu0 %v1265
      %v1408 = vpop.f32.mrb[0].mxu0
      %v1409 = vadd.f32 0.0, %v1408
      %v1410 = vpop.f32.mrb[0].mxu0
      %1411 = vdwg.mxu0
      %v1413 = vsel %vm1218, %v1191, 0
      %v1416 = vsel %vm1218, %v1192, 0
      %1418 = vmatprep.subr.mxu0 0.0
      %1419 = vmatpush1.msra.mxu0 %v1211
      %1420 = vmatprep.subr.mxu0 0.0
      %1421 = vmatpush1.msra.mxu0 %v1212
      %1422 = vmatprep.subr.mxu0 0.0
      %1423 = vmatpush1.msra.mxu0 %v1213
      %1424 = vmatprep.subr.mxu0 0.0
      %1425 = vmatpush1.msra.mxu0 0.0
      %1426 = vmatprep.subr.mxu0 0.0
      %1427 = vmatpush1.msra.mxu0 0.0
      %1428 = vmatprep.subr.mxu0 0.0
      %1429 = vmatpush1.msra.mxu0 0.0
      %1430 = vmatprep.subr.mxu0 0.0
      %1431 = vmatpush1.msra.mxu0 0.0
      %1432 = vmatprep.subr.mxu0 0.0
      %1433 = vmatpush1.msra.mxu0 0.0
      %1434 = vmatprep.subr.mxu0 0.0
      %1435 = vmatpush1.msra.mxu0 0.0
      %1436 = vmatprep.subr.mxu0 0.0
      %1437 = vmatpush1.msra.mxu0 0.0
      %1438 = vmatprep.subr.mxu0 0.0
      %1439 = vmatpush1.msra.mxu0 0.0
      %1440 = vmatprep.subr.mxu0 0.0
      %1441 = vmatpush1.msra.mxu0 0.0
      %1442 = vmatprep.subr.mxu0 0.0
      %1443 = vmatpush1.msra.mxu0 0.0
      %1444 = vmatprep.subr.mxu0 0.0
      %1445 = vmatpush1.msra.mxu0 0.0
      %1446 = vmatprep.subr.mxu0 0.0
      %1447 = vmatpush1.msra.mxu0 0.0
      %1448 = vmatprep.subr.mxu0 0.0
      %1449 = vmatpush1.msra.mxu0 0.0
      %1450 = vmatprep.subr.mxu0 0.0
      %1451 = vmatpush1.msra.mxu0 0.0
      %1452 = vmatprep.subr.mxu0 0.0
      %1453 = vmatpush1.msra.mxu0 0.0
      %1454 = vmatprep.subr.mxu0 0.0
      %1455 = vmatpush1.msra.mxu0 0.0
      %1456 = vmatprep.subr.mxu0 0.0
      %1457 = vmatpush1.msra.mxu0 0.0
      %1458 = vmatprep.subr.mxu0 0.0
      %1459 = vmatpush1.msra.mxu0 0.0
      %1460 = vmatprep.subr.mxu0 0.0
      %1461 = vmatpush1.msra.mxu0 0.0
      %1462 = vmatprep.subr.mxu0 0.0
      %1463 = vmatpush1.msra.mxu0 0.0
      %1464 = vmatprep.subr.mxu0 0.0
      %1465 = vmatpush1.msra.mxu0 0.0
      %1466 = vmatprep.subr.mxu0 0.0
      %1467 = vmatpush1.msra.mxu0 0.0
      %1468 = vmatprep.subr.mxu0 0.0
      %1469 = vmatpush1.msra.mxu0 0.0
      %1470 = vmatprep.subr.mxu0 0.0
      %1471 = vmatpush1.msra.mxu0 0.0
      %1472 = vmatprep.subr.mxu0 0.0
      %1473 = vmatpush1.msra.mxu0 0.0
      %1474 = vmatprep.subr.mxu0 0.0
      %1475 = vmatpush1.msra.mxu0 0.0
      %1476 = vmatprep.subr.mxu0 0.0
      %1477 = vmatpush1.msra.mxu0 0.0
      %1478 = vmatprep.subr.mxu0 0.0
      %1479 = vmatpush1.msra.mxu0 0.0
      %1480 = vmatprep.subr.mxu0 0.0
      %1481 = vmatpush1.msra.mxu0 0.0
      %1482 = vmatprep.mubr.f32.mxu0 0.0
      %1483 = vmatmul.mubr.f32.gmra.mrb[0].mxu0 %v1413
      %v1484 = vpop.f32.mrb[0].mxu0
      %v1485 = vadd.f32 %v1334, %v1484
      %v1486 = vpop.f32.mrb[0].mxu0
      %1487 = vmatprep.mubr.f32.mxu0 0.0
      %1488 = vmatmul.mubr.f32.gmra.mrb[0].mxu0 %v1416
      %v1489 = vpop.f32.mrb[0].mxu0
      %v1490 = vadd.f32 %v1339, %v1489
      %v1491 = vpop.f32.mrb[0].mxu0
      %1492 = vmatprep.mubr.f32.mxu0 0.0
      %1493 = vmatmul.mubr.f32.gmra.mrb[0].mxu0 %v1220
      %v1494 = vpop.f32.mrb[0].mxu0
      %v1495 = vadd.f32 %v1344, %v1494
      %v1496 = vpop.f32.mrb[0].mxu0
      %1497 = vmatprep.mubr.f32.mxu0 0.0
      %1498 = vmatmul.mubr.f32.gmra.mrb[0].mxu0 %v1223
      %v1499 = vpop.f32.mrb[0].mxu0
      %v1500 = vadd.f32 %v1349, %v1499
      %v1501 = vpop.f32.mrb[0].mxu0
      %1502 = vmatprep.mubr.f32.mxu0 0.0
      %1503 = vmatmul.mubr.f32.gmra.mrb[0].mxu0 %v1226
      %v1504 = vpop.f32.mrb[0].mxu0
      %v1505 = vadd.f32 %v1354, %v1504
      %v1506 = vpop.f32.mrb[0].mxu0
      %1507 = vmatprep.mubr.f32.mxu0 0.0
      %1508 = vmatmul.mubr.f32.gmra.mrb[0].mxu0 %v1229
      %v1509 = vpop.f32.mrb[0].mxu0
      %v1510 = vadd.f32 %v1359, %v1509
      %v1511 = vpop.f32.mrb[0].mxu0
      %1512 = vmatprep.mubr.f32.mxu0 0.0
      %1513 = vmatmul.mubr.f32.gmra.mrb[0].mxu0 %v1232
      %v1514 = vpop.f32.mrb[0].mxu0
      %v1515 = vadd.f32 %v1364, %v1514
      %v1516 = vpop.f32.mrb[0].mxu0
      %1517 = vmatprep.mubr.f32.mxu0 0.0
      %1518 = vmatmul.mubr.f32.gmra.mrb[0].mxu0 %v1235
      %v1519 = vpop.f32.mrb[0].mxu0
      %v1520 = vadd.f32 %v1369, %v1519
      %v1521 = vpop.f32.mrb[0].mxu0
      %1522 = vmatprep.mubr.f32.mxu0 0.0
      %1523 = vmatmul.mubr.f32.gmra.mrb[0].mxu0 %v1238
      %v1524 = vpop.f32.mrb[0].mxu0
      %v1525 = vadd.f32 %v1374, %v1524
      %v1526 = vpop.f32.mrb[0].mxu0
      %1527 = vmatprep.mubr.f32.mxu0 0.0
      %1528 = vmatmul.mubr.f32.gmra.mrb[0].mxu0 %v1241
      %v1529 = vpop.f32.mrb[0].mxu0
      %v1530 = vadd.f32 %v1379, %v1529
      %v1531 = vpop.f32.mrb[0].mxu0
      %1532 = vmatprep.mubr.f32.mxu0 0.0
      %1533 = vmatmul.mubr.f32.gmra.mrb[0].mxu0 %v1244
      %v1534 = vpop.f32.mrb[0].mxu0
      %v1535 = vadd.f32 %v1384, %v1534
      %v1536 = vpop.f32.mrb[0].mxu0
      %1537 = vmatprep.mubr.f32.mxu0 0.0
      %1538 = vmatmul.mubr.f32.gmra.mrb[0].mxu0 %v1247
      %v1539 = vpop.f32.mrb[0].mxu0
      %v1540 = vadd.f32 %v1389, %v1539
      %v1541 = vpop.f32.mrb[0].mxu0
      %1542 = vmatprep.mubr.f32.mxu0 0.0
      %1543 = vmatmul.mubr.f32.gmra.mrb[0].mxu0 %v1250
      %v1544 = vpop.f32.mrb[0].mxu0
      %v1545 = vadd.f32 %v1394, %v1544
      %v1546 = vpop.f32.mrb[0].mxu0
      %1547 = vmatprep.mubr.f32.mxu0 0.0
      %1548 = vmatmul.mubr.f32.gmra.mrb[0].mxu0 %v1253
      %v1549 = vpop.f32.mrb[0].mxu0
      %v1550 = vadd.f32 %v1399, %v1549
      %v1551 = vpop.f32.mrb[0].mxu0
      %1552 = vmatprep.mubr.f32.mxu0 0.0
      %1553 = vmatmul.mubr.f32.gmra.mrb[0].mxu0 %v1256
      %v1554 = vpop.f32.mrb[0].mxu0
      %v1555 = vadd.f32 %v1404, %v1554
      %v1556 = vpop.f32.mrb[0].mxu0
      %1557 = vmatprep.mubr.f32.mxu0 0.0
      %1558 = vmatmul.mubr.f32.gmra.mrb[0].mxu0 %v1259
      %v1559 = vpop.f32.mrb[0].mxu0
      %v1560 = vadd.f32 %v1409, %v1559
      %v1561 = vpop.f32.mrb[0].mxu0
      %1562 = vdwg.mxu0
      %s1563 = scalar_lea.vmem %s5, 48
      %v1564 = vld [vmem:[%s1563] sm:$0xff]
      %v1565 = vld [vmem:[%s1563 + $0x8] sm:$0xff]
      %v1566 = vld [vmem:[%s1563 + $0x10] sm:$0xff]
      %v1568 = vsel %vm1218, %v1209, 0
      %v1571 = vsel %vm1218, %v1210, 0
      %1573 = vmatprep.subr.mxu0 0.0
      %1574 = vmatpush1.msra.mxu0 %v1564
      %1575 = vmatprep.subr.mxu0 0.0
      %1576 = vmatpush1.msra.mxu0 %v1565
      %1577 = vmatprep.subr.mxu0 0.0
      %1578 = vmatpush1.msra.mxu0 %v1566
      %1579 = vmatprep.subr.mxu0 0.0
      %1580 = vmatpush1.msra.mxu0 0.0
      %1581 = vmatprep.subr.mxu0 0.0
      %1582 = vmatpush1.msra.mxu0 0.0
      %1583 = vmatprep.subr.mxu0 0.0
      %1584 = vmatpush1.msra.mxu0 0.0
      %1585 = vmatprep.subr.mxu0 0.0
      %1586 = vmatpush1.msra.mxu0 0.0
      %1587 = vmatprep.subr.mxu0 0.0
      %1588 = vmatpush1.msra.mxu0 0.0
      %1589 = vmatprep.subr.mxu0 0.0
      %1590 = vmatpush1.msra.mxu0 0.0
      %1591 = vmatprep.subr.mxu0 0.0
      %1592 = vmatpush1.msra.mxu0 0.0
      %1593 = vmatprep.subr.mxu0 0.0
      %1594 = vmatpush1.msra.mxu0 0.0
      %1595 = vmatprep.subr.mxu0 0.0
      %1596 = vmatpush1.msra.mxu0 0.0
      %1597 = vmatprep.subr.mxu0 0.0
      %1598 = vmatpush1.msra.mxu0 0.0
      %1599 = vmatprep.subr.mxu0 0.0
      %1600 = vmatpush1.msra.mxu0 0.0
      %1601 = vmatprep.subr.mxu0 0.0
      %1602 = vmatpush1.msra.mxu0 0.0
      %1603 = vmatprep.subr.mxu0 0.0
      %1604 = vmatpush1.msra.mxu0 0.0
      %1605 = vmatprep.subr.mxu0 0.0
      %1606 = vmatpush1.msra.mxu0 0.0
      %1607 = vmatprep.subr.mxu0 0.0
      %1608 = vmatpush1.msra.mxu0 0.0
      %1609 = vmatprep.subr.mxu0 0.0
      %1610 = vmatpush1.msra.mxu0 0.0
      %1611 = vmatprep.subr.mxu0 0.0
      %1612 = vmatpush1.msra.mxu0 0.0
      %1613 = vmatprep.subr.mxu0 0.0
      %1614 = vmatpush1.msra.mxu0 0.0
      %1615 = vmatprep.subr.mxu0 0.0
      %1616 = vmatpush1.msra.mxu0 0.0
      %1617 = vmatprep.subr.mxu0 0.0
      %1618 = vmatpush1.msra.mxu0 0.0
      %1619 = vmatprep.subr.mxu0 0.0
      %1620 = vmatpush1.msra.mxu0 0.0
      %1621 = vmatprep.subr.mxu0 0.0
      %1622 = vmatpush1.msra.mxu0 0.0
      %1623 = vmatprep.subr.mxu0 0.0
      %1624 = vmatpush1.msra.mxu0 0.0
      %1625 = vmatprep.subr.mxu0 0.0
      %1626 = vmatpush1.msra.mxu0 0.0
      %1627 = vmatprep.subr.mxu0 0.0
      %1628 = vmatpush1.msra.mxu0 0.0
      %1629 = vmatprep.subr.mxu0 0.0
      %1630 = vmatpush1.msra.mxu0 0.0
      %1631 = vmatprep.subr.mxu0 0.0
      %1632 = vmatpush1.msra.mxu0 0.0
      %1633 = vmatprep.subr.mxu0 0.0
      %1634 = vmatpush1.msra.mxu0 0.0
      %1635 = vmatprep.subr.mxu0 0.0
      %1636 = vmatpush1.msra.mxu0 0.0
      %1637 = vmatprep.mubr.f32.mxu0 0.0
      %1638 = vmatmul.mubr.f32.gmra.mrb[0].mxu0 %v1226
      %v1639 = vpop.f32.mrb[0].mxu0
      %v1640 = vadd.f32 0.0, %v1639
      %v1641 = vpop.f32.mrb[0].mxu0
      %1642 = vmatprep.mubr.f32.mxu0 0.0
      %1643 = vmatmul.mubr.f32.gmra.mrb[0].mxu0 %v1229
      %v1644 = vpop.f32.mrb[0].mxu0
      %v1645 = vadd.f32 0.0, %v1644
      %v1646 = vpop.f32.mrb[0].mxu0
      %1647 = vmatprep.mubr.f32.mxu0 0.0
      %1648 = vmatmul.mubr.f32.gmra.mrb[0].mxu0 %v1232
      %v1649 = vpop.f32.mrb[0].mxu0
      %v1650 = vadd.f32 0.0, %v1649
      %v1651 = vpop.f32.mrb[0].mxu0
      %1652 = vmatprep.mubr.f32.mxu0 0.0
      %1653 = vmatmul.mubr.f32.gmra.mrb[0].mxu0 %v1235
      %v1654 = vpop.f32.mrb[0].mxu0
      %v1655 = vadd.f32 0.0, %v1654
      %v1656 = vpop.f32.mrb[0].mxu0
      %1657 = vmatprep.mubr.f32.mxu0 0.0
      %1658 = vmatmul.mubr.f32.gmra.mrb[0].mxu0 %v1238
      %v1659 = vpop.f32.mrb[0].mxu0
      %v1660 = vadd.f32 0.0, %v1659
      %v1661 = vpop.f32.mrb[0].mxu0
      %1662 = vmatprep.mubr.f32.mxu0 0.0
      %1663 = vmatmul.mubr.f32.gmra.mrb[0].mxu0 %v1241
      %v1664 = vpop.f32.mrb[0].mxu0
      %v1665 = vadd.f32 0.0, %v1664
      %v1666 = vpop.f32.mrb[0].mxu0
      %1667 = vmatprep.mubr.f32.mxu0 0.0
      %1668 = vmatmul.mubr.f32.gmra.mrb[0].mxu0 %v1244
      %v1669 = vpop.f32.mrb[0].mxu0
      %v1670 = vadd.f32 0.0, %v1669
      %v1671 = vpop.f32.mrb[0].mxu0
      %1672 = vmatprep.mubr.f32.mxu0 0.0
      %1673 = vmatmul.mubr.f32.gmra.mrb[0].mxu0 %v1247
      %v1674 = vpop.f32.mrb[0].mxu0
      %v1675 = vadd.f32 0.0, %v1674
      %v1676 = vpop.f32.mrb[0].mxu0
      %1677 = vmatprep.mubr.f32.mxu0 0.0
      %1678 = vmatmul.mubr.f32.gmra.mrb[0].mxu0 %v1250
      %v1679 = vpop.f32.mrb[0].mxu0
      %v1680 = vadd.f32 0.0, %v1679
      %v1681 = vpop.f32.mrb[0].mxu0
      %1682 = vmatprep.mubr.f32.mxu0 0.0
      %1683 = vmatmul.mubr.f32.gmra.mrb[0].mxu0 %v1253
      %v1684 = vpop.f32.mrb[0].mxu0
      %v1685 = vadd.f32 0.0, %v1684
      %v1686 = vpop.f32.mrb[0].mxu0
      %1687 = vmatprep.mubr.f32.mxu0 0.0
      %1688 = vmatmul.mubr.f32.gmra.mrb[0].mxu0 %v1256
      %v1689 = vpop.f32.mrb[0].mxu0
      %v1690 = vadd.f32 0.0, %v1689
      %v1691 = vpop.f32.mrb[0].mxu0
      %1692 = vmatprep.mubr.f32.mxu0 0.0
      %1693 = vmatmul.mubr.f32.gmra.mrb[0].mxu0 %v1259
      %v1694 = vpop.f32.mrb[0].mxu0
      %v1695 = vadd.f32 0.0, %v1694
      %v1696 = vpop.f32.mrb[0].mxu0
      %1697 = vmatprep.mubr.f32.mxu0 0.0
      %1698 = vmatmul.mubr.f32.gmra.mrb[0].mxu0 %v1262
      %v1699 = vpop.f32.mrb[0].mxu0
      %v1700 = vadd.f32 0.0, %v1699
      %v1701 = vpop.f32.mrb[0].mxu0
      %1702 = vmatprep.mubr.f32.mxu0 0.0
      %1703 = vmatmul.mubr.f32.gmra.mrb[0].mxu0 %v1265
      %v1704 = vpop.f32.mrb[0].mxu0
      %v1705 = vadd.f32 0.0, %v1704
      %v1706 = vpop.f32.mrb[0].mxu0
      %1707 = vmatprep.mubr.f32.mxu0 0.0
      %1708 = vmatmul.mubr.f32.gmra.mrb[0].mxu0 %v1568
      %v1709 = vpop.f32.mrb[0].mxu0
      %v1710 = vadd.f32 0.0, %v1709
      %v1711 = vpop.f32.mrb[0].mxu0
      %1712 = vmatprep.mubr.f32.mxu0 0.0
      %1713 = vmatmul.mubr.f32.gmra.mrb[0].mxu0 %v1571
      %v1714 = vpop.f32.mrb[0].mxu0
      %v1715 = vadd.f32 0.0, %v1714
      %v1716 = vpop.f32.mrb[0].mxu0
      %1717 = vdwg.mxu0
      %v1718 = vadd.f32 %v1485, %v1640
      %v1719 = vadd.f32 %v1490, %v1645
      %v1720 = vadd.f32 %v1495, %v1650
      %v1721 = vadd.f32 %v1500, %v1655
      %v1722 = vadd.f32 %v1505, %v1660
      %v1723 = vadd.f32 %v1510, %v1665
      %v1724 = vadd.f32 %v1515, %v1670
      %v1725 = vadd.f32 %v1520, %v1675
      %v1726 = vadd.f32 %v1525, %v1680
      %v1727 = vadd.f32 %v1530, %v1685
      %v1728 = vadd.f32 %v1535, %v1690
      %v1729 = vadd.f32 %v1540, %v1695
      %v1730 = vadd.f32 %v1545, %v1700
      %v1731 = vadd.f32 %v1550, %v1705
      %v1732 = vadd.f32 %v1555, %v1710
      %v1733 = vadd.f32 %v1560, %v1715
      %v1734 = vld [vmem:[%s6] sm:$0x1]
      %v1736 = vlaneseq
      %v1737 = vshrl.u32 %v1736, 7
      %v1738 = vsub.s32 0, %v1737
      %v1739 = vrot.slane %v1734, %v1738
      %v1741 = vadd.f32 %v1718, %v1739
      %v1742 = vadd.f32 %v1719, %v1739
      %v1743 = vadd.f32 %v1720, %v1739
      %v1744 = vadd.f32 %v1721, %v1739
      %v1745 = vadd.f32 %v1722, %v1739
      %v1746 = vadd.f32 %v1723, %v1739
      %v1747 = vadd.f32 %v1724, %v1739
      %v1748 = vadd.f32 %v1725, %v1739
      %v1749 = vadd.f32 %v1726, %v1739
      %v1750 = vadd.f32 %v1727, %v1739
      %v1751 = vadd.f32 %v1728, %v1739
      %v1752 = vadd.f32 %v1729, %v1739
      %v1753 = vadd.f32 %v1730, %v1739
      %v1754 = vadd.f32 %v1731, %v1739
      %v1755 = vadd.f32 %v1732, %v1739
      %v1756 = vadd.f32 %v1733, %v1739
      %vm1757 = vcmp.gt.f32.partialorder %v1741, 0.0
      %vm1758 = vcmp.gt.f32.partialorder %v1742, 0.0
      %vm1759 = vcmp.gt.f32.partialorder %v1743, 0.0
      %vm1760 = vcmp.gt.f32.partialorder %v1744, 0.0
      %vm1761 = vcmp.gt.f32.partialorder %v1745, 0.0
      %vm1762 = vcmp.gt.f32.partialorder %v1746, 0.0
      %vm1763 = vcmp.gt.f32.partialorder %v1747, 0.0
      %vm1764 = vcmp.gt.f32.partialorder %v1748, 0.0
      %vm1765 = vcmp.gt.f32.partialorder %v1749, 0.0
      %vm1766 = vcmp.gt.f32.partialorder %v1750, 0.0
      %vm1767 = vcmp.gt.f32.partialorder %v1751, 0.0
      %vm1768 = vcmp.gt.f32.partialorder %v1752, 0.0
      %vm1769 = vcmp.gt.f32.partialorder %v1753, 0.0
      %vm1770 = vcmp.gt.f32.partialorder %v1754, 0.0
      %vm1771 = vcmp.gt.f32.partialorder %v1755, 0.0
      %vm1772 = vcmp.gt.f32.partialorder %v1756, 0.0
      %v1773 = vmul.f32 %v1741, 0.01
      %v1774 = vmul.f32 %v1742, 0.01
      %v1775 = vmul.f32 %v1743, 0.01
      %v1776 = vmul.f32 %v1744, 0.01
      %v1777 = vmul.f32 %v1745, 0.01
      %v1778 = vmul.f32 %v1746, 0.01
      %v1779 = vmul.f32 %v1747, 0.01
      %v1780 = vmul.f32 %v1748, 0.01
      %v1781 = vmul.f32 %v1749, 0.01
      %v1782 = vmul.f32 %v1750, 0.01
      %v1783 = vmul.f32 %v1751, 0.01
      %v1784 = vmul.f32 %v1752, 0.01
      %v1785 = vmul.f32 %v1753, 0.01
      %v1786 = vmul.f32 %v1754, 0.01
      %v1787 = vmul.f32 %v1755, 0.01
      %v1788 = vmul.f32 %v1756, 0.01
      %v1789 = vsel %vm1757, %v1741, %v1773
      %v1790 = vsel %vm1758, %v1742, %v1774
      %v1791 = vsel %vm1759, %v1743, %v1775
      %v1792 = vsel %vm1760, %v1744, %v1776
      %v1793 = vsel %vm1761, %v1745, %v1777
      %v1794 = vsel %vm1762, %v1746, %v1778
      %v1795 = vsel %vm1763, %v1747, %v1779
      %v1796 = vsel %vm1764, %v1748, %v1780
      %v1797 = vsel %vm1765, %v1749, %v1781
      %v1798 = vsel %vm1766, %v1750, %v1782
      %v1799 = vsel %vm1767, %v1751, %v1783
      %v1800 = vsel %vm1768, %v1752, %v1784
      %v1801 = vsel %vm1769, %v1753, %v1785
      %v1802 = vsel %vm1770, %v1754, %v1786
      %v1803 = vsel %vm1771, %v1755, %v1787
      %v1804 = vsel %vm1772, %v1756, %v1788
      %v1805 = vadd.f32 %v447, %v1789
      %v1806 = vadd.f32 %v448, %v1790
      %v1807 = vadd.f32 %v449, %v1791
      %v1808 = vadd.f32 %v450, %v1792
      %v1809 = vadd.f32 %v451, %v1793
      %v1810 = vadd.f32 %v452, %v1794
      %v1811 = vadd.f32 %v453, %v1795
      %v1812 = vadd.f32 %v454, %v1796
      %v1813 = vadd.f32 %v455, %v1797
      %v1814 = vadd.f32 %v456, %v1798
      %v1815 = vadd.f32 %v457, %v1799
      %v1816 = vadd.f32 %v458, %v1800
      %v1817 = vadd.f32 %v459, %v1801
      %v1818 = vadd.f32 %v460, %v1802
      %v1819 = vadd.f32 %v461, %v1803
      %v1820 = vadd.f32 %v462, %v1804
      %1821 = vst.msk [vmem:[%s445] sm:$0xff] %vm471, %v1805
      %1822 = vst.msk [vmem:[%s445 + $0x8] sm:$0xff] %vm471, %v1806
      %1823 = vst.msk [vmem:[%s445 + $0x10] sm:$0xff] %vm471, %v1807
      %1824 = vst.msk [vmem:[%s445 + $0x18] sm:$0xff] %vm471, %v1808
      %1825 = vst.msk [vmem:[%s445 + $0x20] sm:$0xff] %vm471, %v1809
      %1826 = vst.msk [vmem:[%s445 + $0x28] sm:$0xff] %vm471, %v1810
      %1827 = vst.msk [vmem:[%s445 + $0x30] sm:$0xff] %vm471, %v1811
      %1828 = vst.msk [vmem:[%s445 + $0x38] sm:$0xff] %vm471, %v1812
      %1829 = vst.msk [vmem:[%s445 + $0x40] sm:$0xff] %vm471, %v1813
      %1830 = vst.msk [vmem:[%s445 + $0x48] sm:$0xff] %vm471, %v1814
      %1831 = vst.msk [vmem:[%s445 + $0x50] sm:$0xff] %vm471, %v1815
      %1832 = vst.msk [vmem:[%s445 + $0x58] sm:$0xff] %vm471, %v1816
      %1833 = vst.msk [vmem:[%s445 + $0x60] sm:$0xff] %vm471, %v1817
      %1834 = vst.msk [vmem:[%s445 + $0x68] sm:$0xff] %vm471, %v1818
      %1835 = vst.msk [vmem:[%s445 + $0x70] sm:$0xff] %vm471, %v1819
      %1836 = vst.msk [vmem:[%s445 + $0x78] sm:$0xff] %vm471, %v1820
      %s1837 = smul.u32 8, %s23
      %p1838 = scmp.lt.s32.totalorder %s22, 1
      %s1839 = scalar_select %p1838, %s22, 1
      %p1840 = scmp.lt.s32.totalorder %s1837, 15
      %s1841 = scalar_select %p1840, %s1837, 15
      %s1842 = smul.addr %s1841, 2
      %s1843 = smul.addr %s1839, 32
      %s1844 = sadd.s32 %s1842, %s1843
      %s1845 = smul.addr %s1844, 8
      %s1846 = scalar_lea.vmem %s7, %s1845
      // Predicated region
      $region49: #{tpu_custom_call.1} parent=47 // pred_check
        %p1847 = pneg %p234
      $region50: #{tpu_custom_call.1} parent=47 // pred_check_branch
        %1849 = sbr.rel (%p1847) target = $region52
      $region51: #{tpu_custom_call.1} parent=47 // pred_region
        %s1850 = smul.u32 8, %s23
      $region52: #{tpu_custom_call.1} parent=47 // pred_fallthru
        _
    $region48: #{tpu_custom_call.1} parent=5 // pred_fallthru
      _
    %p1851 = scmp.le.s32.totalorder 2, %s13
    // Predicated region
    $region53: #{tpu_custom_call.1} parent=5 // pred_check
      %p1852 = pneg %p1851
    $region54: #{tpu_custom_call.1} parent=5 // pred_check_branch
      %1854 = sbr.rel (%p1852) target = $region56
    $region55: #{tpu_custom_call.1} parent=5 // pred_region
      %s1855 = ssub.s32 %s13, 2
      // Predicated region
      $region57: #{tpu_custom_call.1} parent=55 // pred_check
        %p1856 = pneg %p240
      $region58: #{tpu_custom_call.1} parent=55 // pred_check_branch
        %1858 = sbr.rel (%p1856) target = $region60
      $region59: #{tpu_custom_call.1} parent=55 // pred_region
        %s1859 = smul.u32 8, %s25
        %p1860 = scmp.lt.s32.totalorder %s24, 1
        %s1861 = scalar_select %p1860, %s24, 1
        %p1862 = scmp.lt.s32.totalorder %s1859, 15
        %s1863 = scalar_select %p1862, %s1859, 15
        %s1864 = smul.addr %s1863, 2
        %s1865 = smul.addr %s1861, 32
        %s1866 = sadd.s32 %s1864, %s1865
        %s1867 = smul.addr %s1866, 8
        %s1868 = scalar_lea.vmem %s7, %s1867
      $region60: #{tpu_custom_call.1} parent=55 // pred_fallthru
        _
    $region56: #{tpu_custom_call.1} parent=5 // pred_fallthru
      _
  $region6: #{tpu_custom_call.1} parent=0 // loop_footer
    %s17 = sadd.s32 1, %s13
  $region7: #{tpu_custom_call.1} parent=0 // loop_footer_branch
    %12 = sbr.rel target = $region3
  $region8: #{tpu_custom_call.1} parent=0 // loop_exit
    _

// kernel: tpu_custom_call.1
$region0: #{tpu_custom_call.1}
  #allocation0 [shape = 'u32[]', space=smem, size = 0x4, offset = 0x4, fixed_abs, tag = 'smem constant byte address 0x4 - core index']
  #allocation1 [shape = 'u32[144,128]{1,0:T(1,128)}', space=vmem, size = 0x12000, scoped, tag = 'internal scratch']
  %s0 = inlined_call_operand.vmem [shape: f32[2,16,16,4], index: 0, kind: input, shape index: {}]
  %s1 = inlined_call_operand.vmem [shape: f32[2,16,16,4], index: 1, kind: input, shape index: {}]
  %s2 = inlined_call_operand.vmem [shape: f32[2,16,16,4], index: 2, kind: input, shape index: {}]
  %s3 = inlined_call_operand.vmem [shape: f32[4,8], index: 3, kind: input, shape index: {}]
  %s4 = inlined_call_operand.vmem [shape: f32[1,8], index: 4, kind: input, shape index: {}]
  %s5 = inlined_call_operand.vmem [shape: f32[3,24,4], index: 5, kind: input, shape index: {}]
  %s6 = inlined_call_operand.vmem [shape: f32[1,4], index: 6, kind: input, shape index: {}]
  %s7 = inlined_call_operand.vmem [shape: f32[2,16,16,4], index: 7, kind: output, shape index: {}]
  %s8 = sld [smem:[#allocation0]]
  $region61: #{tpu_custom_call.1} parent=0
    _
  %s10 = ssub.s32 1, %s8
  %s11 = scalar_select 0, %s10, %s8
  loop: start=0, step=1, limit=6
  $region2: #{tpu_custom_call.1} parent=0 // loop_pre_header
    _
  $region3: #{tpu_custom_call.1} parent=0 // loop_header
    %s13 = sphi 0, %s17
    %p14 = scmp.ge.s32.totalorder %s13, 6
    %s20 = sphi 0, %s32
    %s21 = sphi 0, %s28
    %s22 = sphi 0, %s20
    %s23 = sphi 0, %s21
    %s24 = sphi 0, %s22
    %s25 = sphi 0, %s23
    %s37 = sphi 0, %s39
    %s40 = sphi 0, %s37
    %s41 = sphi 0, %s40
    %s57 = sphi 0, %s41
    %s73 = sphi 0, %s75
    %s76 = sphi 0, %s73
    %s77 = sphi 0, %s76
    %s93 = sphi 0, %s77
    %s109 = sphi 0, %s111
    %s112 = sphi 0, %s109
    %s113 = sphi 0, %s112
    %s129 = sphi 0, %s113
    %s133 = sphi 0, %s133
    %s135 = sphi 0, %s133
    %s136 = sphi 0, %s135
    %s150 = sphi 0, %s136
    %s154 = sphi 0, %s154
    %s156 = sphi 0, %s154
    %s157 = sphi 0, %s156
    %s171 = sphi 0, %s157
    %s175 = sphi 0, %s175
    %s177 = sphi 0, %s175
    %s178 = sphi 0, %s177
    %s192 = sphi 0, %s178
    %s196 = sphi 0, %s196
    %s198 = sphi 0, %s196
    %s199 = sphi 0, %s198
    %s213 = sphi 0, %s199
    %s221 = sphi 0, %s223
    %s224 = sphi 0, %s221
    %s225 = sphi 0, %s224
    %s241 = sphi 0, %s225
  $region4: #{tpu_custom_call.1} parent=0 // loop_header_branch
    %16 = sbr.rel (%p14) target = $region8
  $region5: #{tpu_custom_call.1} parent=0 // loop_body
    %s18 = ssub.s32 %s13, 1
    %s19 = ssub.s32 %s13, 2
    %s26 = sadd.s32 1, %s21
    %p27 = scmp.ge.s32.totalorder %s26, 2
    %s28 = scalar_select %p27, 0, %s26
    %s29 = sadd.s32 1, %s20
    %s30 = scalar_select %p27, %s29, %s20
    %p31 = scmp.ge.s32.totalorder %s30, 2
    %s32 = scalar_select %p31, 0, %s30
    %s33 = ssub.s32 %s20, %s32
    %s34 = ssub.s32 %s21, %s28
    %s35 = sor.u32 %s33, %s34
    %p36 = scmp.eq.s32.totalorder %s35, 0
    %s38 = sadd.s32 %s37, 1
    %s39 = scalar_select %p36, %s37, %s38
    %p42 = pneg %p36
    %p43 = scmp.eq.s32.totalorder %s13, 3
    %p44 = por %p42, %p43
    %p45 = scmp.ne.s32.totalorder %s37, %s40
    %p46 = scmp.eq.s32.totalorder %s13, 0
    %p47 = por %p45, %p46
    %p48 = scmp.ne.s32.totalorder %s37, %s40
    %p49 = scmp.eq.s32.totalorder %s18, 3
    %p50 = por %p48, %p49
    %p51 = scmp.ne.s32.totalorder %s40, %s41
    %p52 = scmp.eq.s32.totalorder %s18, 0
    %p53 = por %p51, %p52
    %p54 = scmp.ne.s32.totalorder %s40, %s41
    %p55 = scmp.eq.s32.totalorder %s19, 3
    %p56 = por %p54, %p55
    %p58 = scmp.ne.s32.totalorder %s41, %s57
    %p59 = scmp.eq.s32.totalorder %s19, 0
    %p60 = por %p58, %p59
    %s61 = smul.u32 %s21, 8
    %s62 = ssub.s32 %s61, 1
    %p63 = scmp.gt.s32.totalorder %s62, 0
    %s64 = scalar_select %p63, %s62, 0
    %s65 = smul.u32 %s28, 8
    %s66 = ssub.s32 %s65, 1
    %p67 = scmp.gt.s32.totalorder %s66, 0
    %s68 = scalar_select %p67, %s66, 0
    %s69 = ssub.s32 %s20, %s32
    %s70 = ssub.s32 %s64, %s68
    %s71 = sor.u32 %s69, %s70
    %p72 = scmp.eq.s32.totalorder %s71, 0
    %s74 = sadd.s32 %s73, 1
    %s75 = scalar_select %p72, %s73, %s74
    %p78 = pneg %p72
    %p79 = scmp.eq.s32.totalorder %s13, 3
    %p80 = por %p78, %p79
    %p81 = scmp.ne.s32.totalorder %s73, %s76
    %p82 = scmp.eq.s32.totalorder %s13, 0
    %p83 = por %p81, %p82
    %p84 = scmp.ne.s32.totalorder %s73, %s76
    %p85 = scmp.eq.s32.totalorder %s18, 3
    %p86 = por %p84, %p85
    %p87 = scmp.ne.s32.totalorder %s76, %s77
    %p88 = scmp.eq.s32.totalorder %s18, 0
    %p89 = por %p87, %p88
    %p90 = scmp.ne.s32.totalorder %s76, %s77
    %p91 = scmp.eq.s32.totalorder %s19, 3
    %p92 = por %p90, %p91
    %p94 = scmp.ne.s32.totalorder %s77, %s93
    %p95 = scmp.eq.s32.totalorder %s19, 0
    %p96 = por %p94, %p95
    %s97 = sadd.s32 %s21, 1
    %s98 = smul.u32 %s97, 8
    %p99 = scmp.lt.s32.totalorder %s98, 15
    %s100 = scalar_select %p99, %s98, 15
    %s101 = sadd.s32 %s28, 1
    %s102 = smul.u32 %s101, 8
    %p103 = scmp.lt.s32.totalorder %s102, 15
    %s104 = scalar_select %p103, %s102, 15
    %s105 = ssub.s32 %s20, %s32
    %s106 = ssub.s32 %s100, %s104
    %s107 = sor.u32 %s105, %s106
    %p108 = scmp.eq.s32.totalorder %s107, 0
    %s110 = sadd.s32 %s109, 1
    %s111 = scalar_select %p108, %s109, %s110
    %p114 = pneg %p108
    %p115 = scmp.eq.s32.totalorder %s13, 3
    %p116 = por %p114, %p115
    %p117 = scmp.ne.s32.totalorder %s109, %s112
    %p118 = scmp.eq.s32.totalorder %s13, 0
    %p119 = por %p117, %p118
    %p120 = scmp.ne.s32.totalorder %s109, %s112
    %p121 = scmp.eq.s32.totalorder %s18, 3
    %p122 = por %p120, %p121
    %p123 = scmp.ne.s32.totalorder %s112, %s113
    %p124 = scmp.eq.s32.totalorder %s18, 0
    %p125 = por %p123, %p124
    %p126 = scmp.ne.s32.totalorder %s112, %s113
    %p127 = scmp.eq.s32.totalorder %s19, 3
    %p128 = por %p126, %p127
    %p130 = scmp.ne.s32.totalorder %s113, %s129
    %p131 = scmp.eq.s32.totalorder %s19, 0
    %p132 = por %p130, %p131
    %s134 = sadd.s32 %s133, 1
    %p137 = scmp.eq.s32.totalorder %s13, 3
    %p138 = scmp.ne.s32.totalorder %s133, %s135
    %p139 = scmp.eq.s32.totalorder %s13, 0
    %p140 = por %p138, %p139
    %p141 = scmp.ne.s32.totalorder %s133, %s135
    %p142 = scmp.eq.s32.totalorder %s18, 3
    %p143 = por %p141, %p142
    %p144 = scmp.ne.s32.totalorder %s135, %s136
    %p145 = scmp.eq.s32.totalorder %s18, 0
    %p146 = por %p144, %p145
    %p147 = scmp.ne.s32.totalorder %s135, %s136
    %p148 = scmp.eq.s32.totalorder %s19, 3
    %p149 = por %p147, %p148
    %p151 = scmp.ne.s32.totalorder %s136, %s150
    %p152 = scmp.eq.s32.totalorder %s19, 0
    %p153 = por %p151, %p152
    %s155 = sadd.s32 %s154, 1
    %p158 = scmp.eq.s32.totalorder %s13, 3
    %p159 = scmp.ne.s32.totalorder %s154, %s156
    %p160 = scmp.eq.s32.totalorder %s13, 0
    %p161 = por %p159, %p160
    %p162 = scmp.ne.s32.totalorder %s154, %s156
    %p163 = scmp.eq.s32.totalorder %s18, 3
    %p164 = por %p162, %p163
    %p165 = scmp.ne.s32.totalorder %s156, %s157
    %p166 = scmp.eq.s32.totalorder %s18, 0
    %p167 = por %p165, %p166
    %p168 = scmp.ne.s32.totalorder %s156, %s157
    %p169 = scmp.eq.s32.totalorder %s19, 3
    %p170 = por %p168, %p169
    %p172 = scmp.ne.s32.totalorder %s157, %s171
    %p173 = scmp.eq.s32.totalorder %s19, 0
    %p174 = por %p172, %p173
    %s176 = sadd.s32 %s175, 1
    %p179 = scmp.eq.s32.totalorder %s13, 3
    %p180 = scmp.ne.s32.totalorder %s175, %s177
    %p181 = scmp.eq.s32.totalorder %s13, 0
    %p182 = por %p180, %p181
    %p183 = scmp.ne.s32.totalorder %s175, %s177
    %p184 = scmp.eq.s32.totalorder %s18, 3
    %p185 = por %p183, %p184
    %p186 = scmp.ne.s32.totalorder %s177, %s178
    %p187 = scmp.eq.s32.totalorder %s18, 0
    %p188 = por %p186, %p187
    %p189 = scmp.ne.s32.totalorder %s177, %s178
    %p190 = scmp.eq.s32.totalorder %s19, 3
    %p191 = por %p189, %p190
    %p193 = scmp.ne.s32.totalorder %s178, %s192
    %p194 = scmp.eq.s32.totalorder %s19, 0
    %p195 = por %p193, %p194
    %s197 = sadd.s32 %s196, 1
    %p200 = scmp.eq.s32.totalorder %s13, 3
    %p201 = scmp.ne.s32.totalorder %s196, %s198
    %p202 = scmp.eq.s32.totalorder %s13, 0
    %p203 = por %p201, %p202
    %p204 = scmp.ne.s32.totalorder %s196, %s198
    %p205 = scmp.eq.s32.totalorder %s18, 3
    %p206 = por %p204, %p205
    %p207 = scmp.ne.s32.totalorder %s198, %s199
    %p208 = scmp.eq.s32.totalorder %s18, 0
    %p209 = por %p207, %p208
    %p210 = scmp.ne.s32.totalorder %s198, %s199
    %p211 = scmp.eq.s32.totalorder %s19, 3
    %p212 = por %p210, %p211
    %p214 = scmp.ne.s32.totalorder %s199, %s213
    %p215 = scmp.eq.s32.totalorder %s19, 0
    %p216 = por %p214, %p215
    %s217 = ssub.s32 %s20, %s32
    %s218 = ssub.s32 %s21, %s28
    %s219 = sor.u32 %s217, %s218
    %p220 = scmp.eq.s32.totalorder %s219, 0
    %s222 = sadd.s32 %s221, 1
    %s223 = scalar_select %p220, %s221, %s222
    %p226 = pneg %p220
    %p227 = scmp.eq.s32.totalorder %s13, 3
    %p228 = por %p226, %p227
    %p229 = scmp.ne.s32.totalorder %s221, %s224
    %p230 = scmp.eq.s32.totalorder %s13, 0
    %p231 = por %p229, %p230
    %p232 = scmp.ne.s32.totalorder %s221, %s224
    %p233 = scmp.eq.s32.totalorder %s18, 3
    %p234 = por %p232, %p233
    %p235 = scmp.ne.s32.totalorder %s224, %s225
    %p236 = scmp.eq.s32.totalorder %s18, 0
    %p237 = por %p235, %p236
    %p238 = scmp.ne.s32.totalorder %s224, %s225
    %p239 = scmp.eq.s32.totalorder %s19, 3
    %p240 = por %p238, %p239
    %p242 = scmp.ne.s32.totalorder %s225, %s241
    %p243 = scmp.eq.s32.totalorder %s19, 0
    %p244 = por %p242, %p243
    %p245 = scmp.le.s32.totalorder 1, %s13
    %p246 = scmp.lt.s32.totalorder %s13, 5
    %p247 = pnand %p245, %p246
    %p248 = pneg %p247
    // Predicated region
    $region9: #{tpu_custom_call.1} parent=5 // pred_check
      _
    $region10: #{tpu_custom_call.1} parent=5 // pred_check_branch
      %250 = sbr.rel (%p247) target = $region12
    $region11: #{tpu_custom_call.1} parent=5 // pred_region
      %s251 = ssub.s32 %s13, 1
      // Predicated region
      $region13: #{tpu_custom_call.1} parent=11 // pred_check
        %p252 = pneg %p146
      $region14: #{tpu_custom_call.1} parent=11 // pred_check_branch
        %254 = sbr.rel (%p252) target = $region16
      $region15: #{tpu_custom_call.1} parent=11 // pred_region
        _
      $region16: #{tpu_custom_call.1} parent=11 // pred_fallthru
        _
      // Predicated region
      $region17: #{tpu_custom_call.1} parent=11 // pred_check
        %p255 = pneg %p167
      $region18: #{tpu_custom_call.1} parent=11 // pred_check_branch
        %257 = sbr.rel (%p255) target = $region20
      $region19: #{tpu_custom_call.1} parent=11 // pred_region
        _
      $region20: #{tpu_custom_call.1} parent=11 // pred_fallthru
        _
      // Predicated region
      $region21: #{tpu_custom_call.1} parent=11 // pred_check
        %p258 = pneg %p188
      $region22: #{tpu_custom_call.1} parent=11 // pred_check_branch
        %260 = sbr.rel (%p258) target = $region24
      $region23: #{tpu_custom_call.1} parent=11 // pred_region
        _
      $region24: #{tpu_custom_call.1} parent=11 // pred_fallthru
        _
      // Predicated region
      $region25: #{tpu_custom_call.1} parent=11 // pred_check
        %p261 = pneg %p209
      $region26: #{tpu_custom_call.1} parent=11 // pred_check_branch
        %263 = sbr.rel (%p261) target = $region28
      $region27: #{tpu_custom_call.1} parent=11 // pred_region
        _
      $region28: #{tpu_custom_call.1} parent=11 // pred_fallthru
        _
    $region12: #{tpu_custom_call.1} parent=5 // pred_fallthru
      _
    %p264 = scmp.lt.s32.totalorder %s13, 4
    // Predicated region
    $region29: #{tpu_custom_call.1} parent=5 // pred_check
      %p265 = pneg %p264
    $region30: #{tpu_custom_call.1} parent=5 // pred_check_branch
      %267 = sbr.rel (%p265) target = $region32
    $region31: #{tpu_custom_call.1} parent=5 // pred_region
      // Predicated region
      $region33: #{tpu_custom_call.1} parent=31 // pred_check
        %p268 = pneg %p47
      $region34: #{tpu_custom_call.1} parent=31 // pred_check_branch
        %270 = sbr.rel (%p268) target = $region36
      $region35: #{tpu_custom_call.1} parent=31 // pred_region
        %s271 = smul.u32 8, %s21
        %p272 = scmp.lt.s32.totalorder %s20, 1
        %s273 = scalar_select %p272, %s20, 1
        %p274 = scmp.lt.s32.totalorder %s271, 15
        %s275 = scalar_select %p274, %s271, 15
        %s276 = smul.addr %s275, 2
        %s277 = smul.addr %s273, 32
        %s278 = sadd.s32 %s276, %s277
        %s279 = smul.addr %s278, 8
        %s280 = scalar_lea.vmem %s0, %s279
        %s281 = smul.u32 8, %s21
      $region36: #{tpu_custom_call.1} parent=31 // pred_fallthru
        _
      // Predicated region
      $region37: #{tpu_custom_call.1} parent=31 // pred_check
        %p282 = pneg %p83
      $region38: #{tpu_custom_call.1} parent=31 // pred_check_branch
        %284 = sbr.rel (%p282) target = $region40
      $region39: #{tpu_custom_call.1} parent=31 // pred_region
        %s285 = smul.u32 %s21, 8
        %s286 = ssub.s32 %s285, 1
        %p287 = scmp.gt.s32.totalorder %s286, 0
        %s288 = scalar_select %p287, %s286, 0
        %p289 = scmp.lt.s32.totalorder %s20, 1
        %s290 = scalar_select %p289, %s20, 1
        %p291 = scmp.lt.s32.totalorder %s288, 15
        %s292 = scalar_select %p291, %s288, 15
        %s293 = smul.addr %s292, 2
        %s294 = smul.addr %s290, 32
        %s295 = sadd.s32 %s293, %s294
        %s296 = smul.addr %s295, 8
        %s297 = scalar_lea.vmem %s1, %s296
        %s298 = smul.u32 %s21, 8
        %s299 = ssub.s32 %s298, 1
        %p300 = scmp.gt.s32.totalorder %s299, 0
        %s301 = scalar_select %p300, %s299, 0
      $region40: #{tpu_custom_call.1} parent=31 // pred_fallthru
        _
      // Predicated region
      $region41: #{tpu_custom_call.1} parent=31 // pred_check
        %p302 = pneg %p119
      $region42: #{tpu_custom_call.1} parent=31 // pred_check_branch
        %304 = sbr.rel (%p302) target = $region44
      $region43: #{tpu_custom_call.1} parent=31 // pred_region
        %s305 = sadd.s32 %s21, 1
        %s306 = smul.u32 %s305, 8
        %p307 = scmp.lt.s32.totalorder %s306, 15
        %s308 = scalar_select %p307, %s306, 15
        %p309 = scmp.lt.s32.totalorder %s20, 1
        %s310 = scalar_select %p309, %s20, 1
        %p311 = scmp.lt.s32.totalorder %s308, 15
        %s312 = scalar_select %p311, %s308, 15
        %s313 = smul.addr %s312, 2
        %s314 = smul.addr %s310, 32
        %s315 = sadd.s32 %s313, %s314
        %s316 = smul.addr %s315, 8
        %s317 = scalar_lea.vmem %s2, %s316
        %s318 = sadd.s32 %s21, 1
        %s319 = smul.u32 %s318, 8
        %p320 = scmp.lt.s32.totalorder %s319, 15
        %s321 = scalar_select %p320, %s319, 15
      $region44: #{tpu_custom_call.1} parent=31 // pred_fallthru
        _
    $region32: #{tpu_custom_call.1} parent=5 // pred_fallthru
      _
    %p322 = scmp.le.s32.totalorder 1, %s13
    %p323 = scmp.lt.s32.totalorder %s13, 5
    %p324 = pnand %p322, %p323
    %p325 = pneg %p324
    // Predicated region
    $region45: #{tpu_custom_call.1} parent=5 // pred_check
      _
    $region46: #{tpu_custom_call.1} parent=5 // pred_check_branch
      %327 = sbr.rel (%p324) target = $region48
    $region47: #{tpu_custom_call.1} parent=5 // pred_region
      %s328 = ssub.s32 %s13, 1
      %s329 = smul.u32 8, %s23
      %p330 = scmp.lt.s32.totalorder %s22, 1
      %s331 = scalar_select %p330, %s22, 1
      %p332 = scmp.lt.s32.totalorder %s329, 15
      %s333 = scalar_select %p332, %s329, 15
      %s334 = smul.addr %s333, 2
      %s335 = smul.addr %s331, 32
      %s336 = sadd.s32 %s334, %s335
      %s337 = smul.addr %s336, 8
      %s338 = scalar_lea.vmem %s0, %s337
      %p339 = pneg %p53
      %p340 = pneg %p50
      %s341 = smul.u32 %s23, 8
      %s342 = ssub.s32 %s341, 1
      %p343 = scmp.gt.s32.totalorder %s342, 0
      %s344 = scalar_select %p343, %s342, 0
      %p345 = scmp.lt.s32.totalorder %s22, 1
      %s346 = scalar_select %p345, %s22, 1
      %p347 = scmp.lt.s32.totalorder %s344, 15
      %s348 = scalar_select %p347, %s344, 15
      %s349 = smul.addr %s348, 2
      %s350 = smul.addr %s346, 32
      %s351 = sadd.s32 %s349, %s350
      %s352 = smul.addr %s351, 8
      %s353 = scalar_lea.vmem %s1, %s352
      %p354 = pneg %p89
      %p355 = pneg %p86
      %s356 = sadd.s32 %s23, 1
      %s357 = smul.u32 %s356, 8
      %p358 = scmp.lt.s32.totalorder %s357, 15
      %s359 = scalar_select %p358, %s357, 15
      %p360 = scmp.lt.s32.totalorder %s22, 1
      %s361 = scalar_select %p360, %s22, 1
      %p362 = scmp.lt.s32.totalorder %s359, 15
      %s363 = scalar_select %p362, %s359, 15
      %s364 = smul.addr %s363, 2
      %s365 = smul.addr %s361, 32
      %s366 = sadd.s32 %s364, %s365
      %s367 = smul.addr %s366, 8
      %s368 = scalar_lea.vmem %s2, %s367
      %p369 = pneg %p125
      %p370 = pneg %p122
      %p371 = pneg %p146
      %p372 = pneg %p143
      %p373 = pneg %p167
      %p374 = pneg %p164
      %p375 = pneg %p188
      %p376 = pneg %p185
      %p377 = pneg %p209
      %p378 = pneg %p206
      %p379 = pneg %p237
      %p380 = pneg %p234
      %s381 = smul.u32 8, %s23
      %p382 = scmp.lt.s32.totalorder %s22, 1
      %s383 = scalar_select %p382, %s22, 1
      %p384 = scmp.lt.s32.totalorder %s381, 15
      %s385 = scalar_select %p384, %s381, 15
      %s386 = smul.addr %s385, 2
      %s387 = smul.addr %s383, 32
      %s388 = sadd.s32 %s386, %s387
      %s389 = smul.addr %s388, 8
      %s390 = scalar_lea.vmem %s7, %s389
      %s391 = smul.u32 8, %s23
      %p392 = scmp.lt.s32.totalorder %s22, 1
      %s393 = scalar_select %p392, %s22, 1
      %p394 = scmp.lt.s32.totalorder %s391, 15
      %s395 = scalar_select %p394, %s391, 15
      %s396 = smul.addr %s395, 2
      %s397 = smul.addr %s393, 32
      %s398 = sadd.s32 %s396, %s397
      %s399 = smul.addr %s398, 8
      %s400 = scalar_lea.vmem %s0, %s399
      %s401 = smul.u32 8, %s23
      %s402 = smul.u32 %s23, 8
      %s403 = ssub.s32 %s402, 1
      %p404 = scmp.gt.s32.totalorder %s403, 0
      %s405 = scalar_select %p404, %s403, 0
      %p406 = scmp.lt.s32.totalorder %s22, 1
      %s407 = scalar_select %p406, %s22, 1
      %p408 = scmp.lt.s32.totalorder %s405, 15
      %s409 = scalar_select %p408, %s405, 15
      %s410 = smul.addr %s409, 2
      %s411 = smul.addr %s407, 32
      %s412 = sadd.s32 %s410, %s411
      %s413 = smul.addr %s412, 8
      %s414 = scalar_lea.vmem %s1, %s413
      %s415 = smul.u32 %s23, 8
      %s416 = ssub.s32 %s415, 1
      %p417 = scmp.gt.s32.totalorder %s416, 0
      %s418 = scalar_select %p417, %s416, 0
      %s419 = sadd.s32 %s23, 1
      %s420 = smul.u32 %s419, 8
      %p421 = scmp.lt.s32.totalorder %s420, 15
      %s422 = scalar_select %p421, %s420, 15
      %p423 = scmp.lt.s32.totalorder %s22, 1
      %s424 = scalar_select %p423, %s22, 1
      %p425 = scmp.lt.s32.totalorder %s422, 15
      %s426 = scalar_select %p425, %s422, 15
      %s427 = smul.addr %s426, 2
      %s428 = smul.addr %s424, 32
      %s429 = sadd.s32 %s427, %s428
      %s430 = smul.addr %s429, 8
      %s431 = scalar_lea.vmem %s2, %s430
      %s432 = sadd.s32 %s23, 1
      %s433 = smul.u32 %s432, 8
      %p434 = scmp.lt.s32.totalorder %s433, 15
      %s435 = scalar_select %p434, %s433, 15
      %s436 = smul.u32 8, %s23
      %p437 = scmp.lt.s32.totalorder %s22, 1
      %s438 = scalar_select %p437, %s22, 1
      %p439 = scmp.lt.s32.totalorder %s436, 15
      %s440 = scalar_select %p439, %s436, 15
      %s441 = smul.addr %s440, 2
      %s442 = smul.addr %s438, 32
      %s443 = sadd.s32 %s441, %s442
      %s444 = smul.addr %s443, 8
      %s445 = scalar_lea.vmem %s7, %s444
      %s446 = smul.u32 8, %s23
      %v447 = vld [vmem:[%s400] sm:$0xff]
      %v448 = vld [vmem:[%s400 + $0x8] sm:$0xff]
      %v449 = vld [vmem:[%s400 + $0x10] sm:$0xff]
      %v450 = vld [vmem:[%s400 + $0x18] sm:$0xff]
      %v451 = vld [vmem:[%s400 + $0x20] sm:$0xff]
      %v452 = vld [vmem:[%s400 + $0x28] sm:$0xff]
      %v453 = vld [vmem:[%s400 + $0x30] sm:$0xff]
      %v454 = vld [vmem:[%s400 + $0x38] sm:$0xff]
      %v455 = vld [vmem:[%s400 + $0x40] sm:$0xff]
      %v456 = vld [vmem:[%s400 + $0x48] sm:$0xff]
      %v457 = vld [vmem:[%s400 + $0x50] sm:$0xff]
      %v458 = vld [vmem:[%s400 + $0x58] sm:$0xff]
      %v459 = vld [vmem:[%s400 + $0x60] sm:$0xff]
      %v460 = vld [vmem:[%s400 + $0x68] sm:$0xff]
      %v461 = vld [vmem:[%s400 + $0x70] sm:$0xff]
      %v462 = vld [vmem:[%s400 + $0x78] sm:$0xff]
      %v463 = vld [vmem:[%s3] sm:$0xf]
      %v464 = vld [vmem:[%s4] sm:$0x1]
      %v466 = vlaneseq
      %v467 = vshrl.u32 %v466, 7
      %v468 = vsub.s32 0, %v467
      %v469 = vrot.slane %v464, %v468
      %vm471 = vcmask 31744
      %v473 = vsel %vm471, %v447, 0
      %v476 = vsel %vm471, %v448, 0
      %v479 = vsel %vm471, %v449, 0
      %v482 = vsel %vm471, %v450, 0
      %v485 = vsel %vm471, %v451, 0
      %v488 = vsel %vm471, %v452, 0
      %v491 = vsel %vm471, %v453, 0
      %v494 = vsel %vm471, %v454, 0
      %v497 = vsel %vm471, %v455, 0
      %v500 = vsel %vm471, %v456, 0
      %v503 = vsel %vm471, %v457, 0
      %v506 = vsel %vm471, %v458, 0
      %v509 = vsel %vm471, %v459, 0
      %v512 = vsel %vm471, %v460, 0
      %v515 = vsel %vm471, %v461, 0
      %v518 = vsel %vm471, %v462, 0
      %vm520 = vcmask 1043456
      %v522 = vsel %vm520, %v463, 0
      %524 = vmatprep.subr.mxu0 0.0
      %525 = vmatpush1.msra.mxu0 %v522
      %526 = vmatprep.subr.mxu0 0.0
      %527 = vmatpush1.msra.mxu0 0.0
      %528 = vmatprep.subr.mxu0 0.0
      %529 = vmatpush1.msra.mxu0 0.0
      %530 = vmatprep.subr.mxu0 0.0
      %531 = vmatpush1.msra.mxu0 0.0
      %532 = vmatprep.subr.mxu0 0.0
      %533 = vmatpush1.msra.mxu0 0.0
      %534 = vmatprep.subr.mxu0 0.0
      %535 = vmatpush1.msra.mxu0 0.0
      %536 = vmatprep.subr.mxu0 0.0
      %537 = vmatpush1.msra.mxu0 0.0
      %538 = vmatprep.subr.mxu0 0.0
      %539 = vmatpush1.msra.mxu0 0.0
      %540 = vmatprep.subr.mxu0 0.0
      %541 = vmatpush1.msra.mxu0 0.0
      %542 = vmatprep.subr.mxu0 0.0
      %543 = vmatpush1.msra.mxu0 0.0
      %544 = vmatprep.subr.mxu0 0.0
      %545 = vmatpush1.msra.mxu0 0.0
      %546 = vmatprep.subr.mxu0 0.0
      %547 = vmatpush1.msra.mxu0 0.0
      %548 = vmatprep.subr.mxu0 0.0
      %549 = vmatpush1.msra.mxu0 0.0
      %550 = vmatprep.subr.mxu0 0.0
      %551 = vmatpush1.msra.mxu0 0.0
      %552 = vmatprep.subr.mxu0 0.0
      %553 = vmatpush1.msra.mxu0 0.0
      %554 = vmatprep.subr.mxu0 0.0
      %555 = vmatpush1.msra.mxu0 0.0
      %556 = vmatprep.subr.mxu0 0.0
      %557 = vmatpush1.msra.mxu0 0.0
      %558 = vmatprep.subr.mxu0 0.0
      %559 = vmatpush1.msra.mxu0 0.0
      %560 = vmatprep.subr.mxu0 0.0
      %561 = vmatpush1.msra.mxu0 0.0
      %562 = vmatprep.subr.mxu0 0.0
      %563 = vmatpush1.msra.mxu0 0.0
      %564 = vmatprep.subr.mxu0 0.0
      %565 = vmatpush1.msra.mxu0 0.0
      %566 = vmatprep.subr.mxu0 0.0
      %567 = vmatpush1.msra.mxu0 0.0
      %568 = vmatprep.subr.mxu0 0.0
      %569 = vmatpush1.msra.mxu0 0.0
      %570 = vmatprep.subr.mxu0 0.0
      %571 = vmatpush1.msra.mxu0 0.0
      %572 = vmatprep.subr.mxu0 0.0
      %573 = vmatpush1.msra.mxu0 0.0
      %574 = vmatprep.subr.mxu0 0.0
      %575 = vmatpush1.msra.mxu0 0.0
      %576 = vmatprep.subr.mxu0 0.0
      %577 = vmatpush1.msra.mxu0 0.0
      %578 = vmatprep.subr.mxu0 0.0
      %579 = vmatpush1.msra.mxu0 0.0
      %580 = vmatprep.subr.mxu0 0.0
      %581 = vmatpush1.msra.mxu0 0.0
      %582 = vmatprep.subr.mxu0 0.0
      %583 = vmatpush1.msra.mxu0 0.0
      %584 = vmatprep.subr.mxu0 0.0
      %585 = vmatpush1.msra.mxu0 0.0
      %586 = vmatprep.subr.mxu0 0.0
      %587 = vmatpush1.msra.mxu0 0.0
      %588 = vmatprep.mubr.f32.mxu0 0.0
      %589 = vmatmul.mubr.f32.gmra.mrb[0].mxu0 %v473
      %v590 = vpop.f32.mrb[0].mxu0
      %v591 = vadd.f32 %v469, %v590
      %v592 = vpop.f32.mrb[0].mxu0
      %593 = vmatprep.mubr.f32.mxu0 0.0
      %594 = vmatmul.mubr.f32.gmra.mrb[0].mxu0 %v476
      %v595 = vpop.f32.mrb[0].mxu0
      %v596 = vadd.f32 %v469, %v595
      %v597 = vpop.f32.mrb[0].mxu0
      %598 = vmatprep.mubr.f32.mxu0 0.0
      %599 = vmatmul.mubr.f32.gmra.mrb[0].mxu0 %v479
      %v600 = vpop.f32.mrb[0].mxu0
      %v601 = vadd.f32 %v469, %v600
      %v602 = vpop.f32.mrb[0].mxu0
      %603 = vmatprep.mubr.f32.mxu0 0.0
      %604 = vmatmul.mubr.f32.gmra.mrb[0].mxu0 %v482
      %v605 = vpop.f32.mrb[0].mxu0
      %v606 = vadd.f32 %v469, %v605
      %v607 = vpop.f32.mrb[0].mxu0
      %608 = vmatprep.mubr.f32.mxu0 0.0
      %609 = vmatmul.mubr.f32.gmra.mrb[0].mxu0 %v485
      %v610 = vpop.f32.mrb[0].mxu0
      %v611 = vadd.f32 %v469, %v610
      %v612 = vpop.f32.mrb[0].mxu0
      %613 = vmatprep.mubr.f32.mxu0 0.0
      %614 = vmatmul.mubr.f32.gmra.mrb[0].mxu0 %v488
      %v615 = vpop.f32.mrb[0].mxu0
      %v616 = vadd.f32 %v469, %v615
      %v617 = vpop.f32.mrb[0].mxu0
      %618 = vmatprep.mubr.f32.mxu0 0.0
      %619 = vmatmul.mubr.f32.gmra.mrb[0].mxu0 %v491
      %v620 = vpop.f32.mrb[0].mxu0
      %v621 = vadd.f32 %v469, %v620
      %v622 = vpop.f32.mrb[0].mxu0
      %623 = vmatprep.mubr.f32.mxu0 0.0
      %624 = vmatmul.mubr.f32.gmra.mrb[0].mxu0 %v494
      %v625 = vpop.f32.mrb[0].mxu0
      %v626 = vadd.f32 %v469, %v625
      %v627 = vpop.f32.mrb[0].mxu0
      %628 = vmatprep.mubr.f32.mxu0 0.0
      %629 = vmatmul.mubr.f32.gmra.mrb[0].mxu0 %v497
      %v630 = vpop.f32.mrb[0].mxu0
      %v631 = vadd.f32 %v469, %v630
      %v632 = vpop.f32.mrb[0].mxu0
      %633 = vmatprep.mubr.f32.mxu0 0.0
      %634 = vmatmul.mubr.f32.gmra.mrb[0].mxu0 %v500
      %v635 = vpop.f32.mrb[0].mxu0
      %v636 = vadd.f32 %v469, %v635
      %v637 = vpop.f32.mrb[0].mxu0
      %638 = vmatprep.mubr.f32.mxu0 0.0
      %639 = vmatmul.mubr.f32.gmra.mrb[0].mxu0 %v503
      %v640 = vpop.f32.mrb[0].mxu0
      %v641 = vadd.f32 %v469, %v640
      %v642 = vpop.f32.mrb[0].mxu0
      %643 = vmatprep.mubr.f32.mxu0 0.0
      %644 = vmatmul.mubr.f32.gmra.mrb[0].mxu0 %v506
      %v645 = vpop.f32.mrb[0].mxu0
      %v646 = vadd.f32 %v469, %v645
      %v647 = vpop.f32.mrb[0].mxu0
      %648 = vmatprep.mubr.f32.mxu0 0.0
      %649 = vmatmul.mubr.f32.gmra.mrb[0].mxu0 %v509
      %v650 = vpop.f32.mrb[0].mxu0
      %v651 = vadd.f32 %v469, %v650
      %v652 = vpop.f32.mrb[0].mxu0
      %653 = vmatprep.mubr.f32.mxu0 0.0
      %654 = vmatmul.mubr.f32.gmra.mrb[0].mxu0 %v512
      %v655 = vpop.f32.mrb[0].mxu0
      %v656 = vadd.f32 %v469, %v655
      %v657 = vpop.f32.mrb[0].mxu0
      %658 = vmatprep.mubr.f32.mxu0 0.0
      %659 = vmatmul.mubr.f32.gmra.mrb[0].mxu0 %v515
      %v660 = vpop.f32.mrb[0].mxu0
      %v661 = vadd.f32 %v469, %v660
      %v662 = vpop.f32.mrb[0].mxu0
      %663 = vmatprep.mubr.f32.mxu0 0.0
      %664 = vmatmul.mubr.f32.gmra.mrb[0].mxu0 %v518
      %v665 = vpop.f32.mrb[0].mxu0
      %v666 = vadd.f32 %v469, %v665
      %v667 = vpop.f32.mrb[0].mxu0
      %668 = vdwg.mxu0
      %vm669 = vcmp.gt.f32.partialorder %v591, 0.0
      %vm670 = vcmp.gt.f32.partialorder %v596, 0.0
      %vm671 = vcmp.gt.f32.partialorder %v601, 0.0
      %vm672 = vcmp.gt.f32.partialorder %v606, 0.0
      %vm673 = vcmp.gt.f32.partialorder %v611, 0.0
      %vm674 = vcmp.gt.f32.partialorder %v616, 0.0
      %vm675 = vcmp.gt.f32.partialorder %v621, 0.0
      %vm676 = vcmp.gt.f32.partialorder %v626, 0.0
      %vm677 = vcmp.gt.f32.partialorder %v631, 0.0
      %vm678 = vcmp.gt.f32.partialorder %v636, 0.0
      %vm679 = vcmp.gt.f32.partialorder %v641, 0.0
      %vm680 = vcmp.gt.f32.partialorder %v646, 0.0
      %vm681 = vcmp.gt.f32.partialorder %v651, 0.0
      %vm682 = vcmp.gt.f32.partialorder %v656, 0.0
      %vm683 = vcmp.gt.f32.partialorder %v661, 0.0
      %vm684 = vcmp.gt.f32.partialorder %v666, 0.0
      %v685 = vmul.f32 %v591, 0.01
      %v686 = vmul.f32 %v596, 0.01
      %v687 = vmul.f32 %v601, 0.01
      %v688 = vmul.f32 %v606, 0.01
      %v689 = vmul.f32 %v611, 0.01
      %v690 = vmul.f32 %v616, 0.01
      %v691 = vmul.f32 %v621, 0.01
      %v692 = vmul.f32 %v626, 0.01
      %v693 = vmul.f32 %v631, 0.01
      %v694 = vmul.f32 %v636, 0.01
      %v695 = vmul.f32 %v641, 0.01
      %v696 = vmul.f32 %v646, 0.01
      %v697 = vmul.f32 %v651, 0.01
      %v698 = vmul.f32 %v656, 0.01
      %v699 = vmul.f32 %v661, 0.01
      %v700 = vmul.f32 %v666, 0.01
      %v701 = vsel %vm669, %v591, %v685
      %v702 = vsel %vm670, %v596, %v686
      %v703 = vsel %vm671, %v601, %v687
      %v704 = vsel %vm672, %v606, %v688
      %v705 = vsel %vm673, %v611, %v689
      %v706 = vsel %vm674, %v616, %v690
      %v707 = vsel %vm675, %v621, %v691
      %v708 = vsel %vm676, %v626, %v692
      %v709 = vsel %vm677, %v631, %v693
      %v710 = vsel %vm678, %v636, %v694
      %v711 = vsel %vm679, %v641, %v695
      %v712 = vsel %vm680, %v646, %v696
      %v713 = vsel %vm681, %v651, %v697
      %v714 = vsel %vm682, %v656, %v698
      %v715 = vsel %vm683, %v661, %v699
      %v716 = vsel %vm684, %v666, %v700
      %v717 = vld [vmem:[%s414] sm:$0xff]
      %v718 = vld [vmem:[%s414 + $0x8] sm:$0xff]
      %v720 = vsel %vm471, %v717, 0
      %v723 = vsel %vm471, %v718, 0
      %725 = vmatprep.subr.mxu0 0.0
      %726 = vmatpush1.msra.mxu0 %v522
      %727 = vmatprep.subr.mxu0 0.0
      %728 = vmatpush1.msra.mxu0 0.0
      %729 = vmatprep.subr.mxu0 0.0
      %730 = vmatpush1.msra.mxu0 0.0
      %731 = vmatprep.subr.mxu0 0.0
      %732 = vmatpush1.msra.mxu0 0.0
      %733 = vmatprep.subr.mxu0 0.0
      %734 = vmatpush1.msra.mxu0 0.0
      %735 = vmatprep.subr.mxu0 0.0
      %736 = vmatpush1.msra.mxu0 0.0
      %737 = vmatprep.subr.mxu0 0.0
      %738 = vmatpush1.msra.mxu0 0.0
      %739 = vmatprep.subr.mxu0 0.0
      %740 = vmatpush1.msra.mxu0 0.0
      %741 = vmatprep.subr.mxu0 0.0
      %742 = vmatpush1.msra.mxu0 0.0
      %743 = vmatprep.subr.mxu0 0.0
      %744 = vmatpush1.msra.mxu0 0.0
      %745 = vmatprep.subr.mxu0 0.0
      %746 = vmatpush1.msra.mxu0 0.0
      %747 = vmatprep.subr.mxu0 0.0
      %748 = vmatpush1.msra.mxu0 0.0
      %749 = vmatprep.subr.mxu0 0.0
      %750 = vmatpush1.msra.mxu0 0.0
      %751 = vmatprep.subr.mxu0 0.0
      %752 = vmatpush1.msra.mxu0 0.0
      %753 = vmatprep.subr.mxu0 0.0
      %754 = vmatpush1.msra.mxu0 0.0
      %755 = vmatprep.subr.mxu0 0.0
      %756 = vmatpush1.msra.mxu0 0.0
      %757 = vmatprep.subr.mxu0 0.0
      %758 = vmatpush1.msra.mxu0 0.0
      %759 = vmatprep.subr.mxu0 0.0
      %760 = vmatpush1.msra.mxu0 0.0
      %761 = vmatprep.subr.mxu0 0.0
      %762 = vmatpush1.msra.mxu0 0.0
      %763 = vmatprep.subr.mxu0 0.0
      %764 = vmatpush1.msra.mxu0 0.0
      %765 = vmatprep.subr.mxu0 0.0
      %766 = vmatpush1.msra.mxu0 0.0
      %767 = vmatprep.subr.mxu0 0.0
      %768 = vmatpush1.msra.mxu0 0.0
      %769 = vmatprep.subr.mxu0 0.0
      %770 = vmatpush1.msra.mxu0 0.0
      %771 = vmatprep.subr.mxu0 0.0
      %772 = vmatpush1.msra.mxu0 0.0
      %773 = vmatprep.subr.mxu0 0.0
      %774 = vmatpush1.msra.mxu0 0.0
      %775 = vmatprep.subr.mxu0 0.0
      %776 = vmatpush1.msra.mxu0 0.0
      %777 = vmatprep.subr.mxu0 0.0
      %778 = vmatpush1.msra.mxu0 0.0
      %779 = vmatprep.subr.mxu0 0.0
      %780 = vmatpush1.msra.mxu0 0.0
      %781 = vmatprep.subr.mxu0 0.0
      %782 = vmatpush1.msra.mxu0 0.0
      %783 = vmatprep.subr.mxu0 0.0
      %784 = vmatpush1.msra.mxu0 0.0
      %785 = vmatprep.subr.mxu0 0.0
      %786 = vmatpush1.msra.mxu0 0.0
      %787 = vmatprep.subr.mxu0 0.0
      %788 = vmatpush1.msra.mxu0 0.0
      %789 = vmatprep.mubr.f32.mxu0 0.0
      %790 = vmatmul.mubr.f32.gmra.mrb[0].mxu0 %v720
      %v791 = vpop.f32.mrb[0].mxu0
      %v792 = vadd.f32 %v469, %v791
      %v793 = vpop.f32.mrb[0].mxu0
      %794 = vmatprep.mubr.f32.mxu0 0.0
      %795 = vmatmul.mubr.f32.gmra.mrb[0].mxu0 %v723
      %v796 = vpop.f32.mrb[0].mxu0
      %v797 = vadd.f32 %v469, %v796
      %v798 = vpop.f32.mrb[0].mxu0
      %799 = vdwg.mxu0
      %vm800 = vcmp.gt.f32.partialorder %v792, 0.0
      %vm801 = vcmp.gt.f32.partialorder %v797, 0.0
      %v802 = vmul.f32 %v792, 0.01
      %v803 = vmul.f32 %v797, 0.01
      %v804 = vsel %vm800, %v792, %v802
      %v805 = vsel %vm801, %v797, %v803
      %v806 = vld [vmem:[%s431] sm:$0xff]
      %v807 = vld [vmem:[%s431 + $0x8] sm:$0xff]
      %v809 = vsel %vm471, %v806, 0
      %v812 = vsel %vm471, %v807, 0
      %814 = vmatprep.subr.mxu0 0.0
      %815 = vmatpush1.msra.mxu0 %v522
      %816 = vmatprep.subr.mxu0 0.0
      %817 = vmatpush1.msra.mxu0 0.0
      %818 = vmatprep.subr.mxu0 0.0
      %819 = vmatpush1.msra.mxu0 0.0
      %820 = vmatprep.subr.mxu0 0.0
      %821 = vmatpush1.msra.mxu0 0.0
      %822 = vmatprep.subr.mxu0 0.0
      %823 = vmatpush1.msra.mxu0 0.0
      %824 = vmatprep.subr.mxu0 0.0
      %825 = vmatpush1.msra.mxu0 0.0
      %826 = vmatprep.subr.mxu0 0.0
      %827 = vmatpush1.msra.mxu0 0.0
      %828 = vmatprep.subr.mxu0 0.0
      %829 = vmatpush1.msra.mxu0 0.0
      %830 = vmatprep.subr.mxu0 0.0
      %831 = vmatpush1.msra.mxu0 0.0
      %832 = vmatprep.subr.mxu0 0.0
      %833 = vmatpush1.msra.mxu0 0.0
      %834 = vmatprep.subr.mxu0 0.0
      %835 = vmatpush1.msra.mxu0 0.0
      %836 = vmatprep.subr.mxu0 0.0
      %837 = vmatpush1.msra.mxu0 0.0
      %838 = vmatprep.subr.mxu0 0.0
      %839 = vmatpush1.msra.mxu0 0.0
      %840 = vmatprep.subr.mxu0 0.0
      %841 = vmatpush1.msra.mxu0 0.0
      %842 = vmatprep.subr.mxu0 0.0
      %843 = vmatpush1.msra.mxu0 0.0
      %844 = vmatprep.subr.mxu0 0.0
      %845 = vmatpush1.msra.mxu0 0.0
      %846 = vmatprep.subr.mxu0 0.0
      %847 = vmatpush1.msra.mxu0 0.0
      %848 = vmatprep.subr.mxu0 0.0
      %849 = vmatpush1.msra.mxu0 0.0
      %850 = vmatprep.subr.mxu0 0.0
      %851 = vmatpush1.msra.mxu0 0.0
      %852 = vmatprep.subr.mxu0 0.0
      %853 = vmatpush1.msra.mxu0 0.0
      %854 = vmatprep.subr.mxu0 0.0
      %855 = vmatpush1.msra.mxu0 0.0
      %856 = vmatprep.subr.mxu0 0.0
      %857 = vmatpush1.msra.mxu0 0.0
      %858 = vmatprep.subr.mxu0 0.0
      %859 = vmatpush1.msra.mxu0 0.0
      %860 = vmatprep.subr.mxu0 0.0
      %861 = vmatpush1.msra.mxu0 0.0
      %862 = vmatprep.subr.mxu0 0.0
      %863 = vmatpush1.msra.mxu0 0.0
      %864 = vmatprep.subr.mxu0 0.0
      %865 = vmatpush1.msra.mxu0 0.0
      %866 = vmatprep.subr.mxu0 0.0
      %867 = vmatpush1.msra.mxu0 0.0
      %868 = vmatprep.subr.mxu0 0.0
      %869 = vmatpush1.msra.mxu0 0.0
      %870 = vmatprep.subr.mxu0 0.0
      %871 = vmatpush1.msra.mxu0 0.0
      %872 = vmatprep.subr.mxu0 0.0
      %873 = vmatpush1.msra.mxu0 0.0
      %874 = vmatprep.subr.mxu0 0.0
      %875 = vmatpush1.msra.mxu0 0.0
      %876 = vmatprep.subr.mxu0 0.0
      %877 = vmatpush1.msra.mxu0 0.0
      %878 = vmatprep.mubr.f32.mxu0 0.0
      %879 = vmatmul.mubr.f32.gmra.mrb[0].mxu0 %v809
      %v880 = vpop.f32.mrb[0].mxu0
      %v881 = vadd.f32 %v469, %v880
      %v882 = vpop.f32.mrb[0].mxu0
      %883 = vmatprep.mubr.f32.mxu0 0.0
      %884 = vmatmul.mubr.f32.gmra.mrb[0].mxu0 %v812
      %v885 = vpop.f32.mrb[0].mxu0
      %v886 = vadd.f32 %v469, %v885
      %v887 = vpop.f32.mrb[0].mxu0
      %888 = vdwg.mxu0
      %vm889 = vcmp.gt.f32.partialorder %v881, 0.0
      %vm890 = vcmp.gt.f32.partialorder %v886, 0.0
      %v891 = vmul.f32 %v881, 0.01
      %v892 = vmul.f32 %v886, 0.01
      %v893 = vsel %vm889, %v881, %v891
      %v894 = vsel %vm890, %v886, %v892
      %p895 = scmp.eq.s32.totalorder %s23, 0
      %s896 = scalar_select %p895, 1, 0
      %v897 = vstv %s896
      %vm898 = vcmp.eq.s32.totalorder %v897, 1
      %v899 = vsel %vm898, 0.0, %v804
      %v900 = vsel %vm898, 0.0, %v805
      %p901 = scmp.eq.s32.totalorder %s23, 1
      %s902 = scalar_select %p901, 1, 0
      %v903 = vstv %s902
      %vm904 = vcmp.eq.s32.totalorder %v903, 1
      %v905 = vsel %vm904, 0.0, %v893
      %v906 = vsel %vm904, 0.0, %v894
      %vm927 = vcmask 1040384
      %v928 = vrot.slane %v899, 7
      %v929 = vrot.slane %v900, 7
      %v930 = vsel %vm927, %v928, %v929
      %v931 = vrot.slane %v701, 7
      %v932 = vrot.slane %v702, 7
      %v933 = vsel %vm927, %v931, %v932
      %v934 = vrot.slane %v703, 7
      %v935 = vrot.slane %v704, 7
      %v936 = vsel %vm927, %v934, %v935
      %v937 = vrot.slane %v705, 7
      %v938 = vrot.slane %v706, 7
      %v939 = vsel %vm927, %v937, %v938
      %v940 = vrot.slane %v707, 7
      %v941 = vrot.slane %v708, 7
      %v942 = vsel %vm927, %v940, %v941
      %v943 = vrot.slane %v709, 7
      %v944 = vrot.slane %v710, 7
      %v945 = vsel %vm927, %v943, %v944
      %v946 = vrot.slane %v711, 7
      %v947 = vrot.slane %v712, 7
      %v948 = vsel %vm927, %v946, %v947
      %v949 = vrot.slane %v713, 7
      %v950 = vrot.slane %v714, 7
      %v951 = vsel %vm927, %v949, %v950
      %v952 = vrot.slane %v715, 7
      %v953 = vrot.slane %v716, 7
      %v954 = vsel %vm927, %v952, %v953
      %v955 = vrot.slane %v905, 7
      %v956 = vrot.slane %v906, 7
      %v957 = vsel %vm927, %v955, %v956
      %v978 = vsel %vm927, 0.0, %v928
      %v979 = vsel %vm927, 0.0, %v931
      %v980 = vsel %vm927, 0.0, %v934
      %v981 = vsel %vm927, 0.0, %v937
      %v982 = vsel %vm927, 0.0, %v940
      %v983 = vsel %vm927, 0.0, %v943
      %v984 = vsel %vm927, 0.0, %v946
      %v985 = vsel %vm927, 0.0, %v949
      %v986 = vsel %vm927, 0.0, %v952
      %v987 = vsel %vm927, 0.0, %v955
      %vm988 = vcmask 1046528
      %v989 = vrot.slane %v899, 1
      %v990 = vrot.slane %v900, 1
      %v991 = vsel %vm988, %v989, %v990
      %v992 = vrot.slane %v701, 1
      %v993 = vrot.slane %v702, 1
      %v994 = vsel %vm988, %v992, %v993
      %v995 = vrot.slane %v703, 1
      %v996 = vrot.slane %v704, 1
      %v997 = vsel %vm988, %v995, %v996
      %v998 = vrot.slane %v705, 1
      %v999 = vrot.slane %v706, 1
      %v1000 = vsel %vm988, %v998, %v999
      %v1001 = vrot.slane %v707, 1
      %v1002 = vrot.slane %v708, 1
      %v1003 = vsel %vm988, %v1001, %v1002
      %v1004 = vrot.slane %v709, 1
      %v1005 = vrot.slane %v710, 1
      %v1006 = vsel %vm988, %v1004, %v1005
      %v1007 = vrot.slane %v711, 1
      %v1008 = vrot.slane %v712, 1
      %v1009 = vsel %vm988, %v1007, %v1008
      %v1010 = vrot.slane %v713, 1
      %v1011 = vrot.slane %v714, 1
      %v1012 = vsel %vm988, %v1010, %v1011
      %v1013 = vrot.slane %v715, 1
      %v1014 = vrot.slane %v716, 1
      %v1015 = vsel %vm988, %v1013, %v1014
      %v1016 = vrot.slane %v905, 1
      %v1017 = vrot.slane %v906, 1
      %v1018 = vsel %vm988, %v1016, %v1017
      %v1029 = vsel %vm988, %v990, 0.0
      %v1030 = vsel %vm988, %v993, 0.0
      %v1031 = vsel %vm988, %v996, 0.0
      %v1032 = vsel %vm988, %v999, 0.0
      %v1033 = vsel %vm988, %v1002, 0.0
      %v1034 = vsel %vm988, %v1005, 0.0
      %v1035 = vsel %vm988, %v1008, 0.0
      %v1036 = vsel %vm988, %v1011, 0.0
      %v1037 = vsel %vm988, %v1014, 0.0
      %v1038 = vsel %vm988, %v1017, 0.0
      %1039 = vrot.lane.b32.xlu0 %v899, 8
      %v1040 = vpop.permute.xlu0 %1039
      %1041 = vrot.lane.b32.xlu0 %v900, 8
      %v1042 = vpop.permute.xlu0 %1041
      %1043 = vrot.lane.b32.xlu0 %v701, 8
      %v1044 = vpop.permute.xlu0 %1043
      %1045 = vrot.lane.b32.xlu0 %v702, 8
      %v1046 = vpop.permute.xlu0 %1045
      %1047 = vrot.lane.b32.xlu0 %v703, 8
      %v1048 = vpop.permute.xlu0 %1047
      %1049 = vrot.lane.b32.xlu0 %v704, 8
      %v1050 = vpop.permute.xlu0 %1049
      %1051 = vrot.lane.b32.xlu0 %v705, 8
      %v1052 = vpop.permute.xlu0 %1051
      %1053 = vrot.lane.b32.xlu0 %v706, 8
      %v1054 = vpop.permute.xlu0 %1053
      %1055 = vrot.lane.b32.xlu0 %v707, 8
      %v1056 = vpop.permute.xlu0 %1055
      %1057 = vrot.lane.b32.xlu0 %v708, 8
      %v1058 = vpop.permute.xlu0 %1057
      %1059 = vrot.lane.b32.xlu0 %v709, 8
      %v1060 = vpop.permute.xlu0 %1059
      %1061 = vrot.lane.b32.xlu0 %v710, 8
      %v1062 = vpop.permute.xlu0 %1061
      %1063 = vrot.lane.b32.xlu0 %v711, 8
      %v1064 = vpop.permute.xlu0 %1063
      %1065 = vrot.lane.b32.xlu0 %v712, 8
      %v1066 = vpop.permute.xlu0 %1065
      %1067 = vrot.lane.b32.xlu0 %v713, 8
      %v1068 = vpop.permute.xlu0 %1067
      %1069 = vrot.lane.b32.xlu0 %v714, 8
      %v1070 = vpop.permute.xlu0 %1069
      %1071 = vrot.lane.b32.xlu0 %v715, 8
      %v1072 = vpop.permute.xlu0 %1071
      %1073 = vrot.lane.b32.xlu0 %v716, 8
      %v1074 = vpop.permute.xlu0 %1073
      %1075 = vrot.lane.b32.xlu0 %v905, 8
      %v1076 = vpop.permute.xlu0 %1075
      %1077 = vrot.lane.b32.xlu0 %v906, 8
      %v1078 = vpop.permute.xlu0 %1077
      %1109 = vrot.lane.b32.xlu0 %v991, 16
      %v1110 = vpop.permute.xlu0 %1109
      %1111 = vrot.lane.b32.xlu0 %v1029, 16
      %v1112 = vpop.permute.xlu0 %1111
      %1113 = vrot.lane.b32.xlu0 %v994, 16
      %v1114 = vpop.permute.xlu0 %1113
      %1115 = vrot.lane.b32.xlu0 %v1030, 16
      %v1116 = vpop.permute.xlu0 %1115
      %1117 = vrot.lane.b32.xlu0 %v997, 16
      %v1118 = vpop.permute.xlu0 %1117
      %1119 = vrot.lane.b32.xlu0 %v1031, 16
      %v1120 = vpop.permute.xlu0 %1119
      %1121 = vrot.lane.b32.xlu0 %v1000, 16
      %v1122 = vpop.permute.xlu0 %1121
      %1123 = vrot.lane.b32.xlu0 %v1032, 16
      %v1124 = vpop.permute.xlu0 %1123
      %1125 = vrot.lane.b32.xlu0 %v1003, 16
      %v1126 = vpop.permute.xlu0 %1125
      %1127 = vrot.lane.b32.xlu0 %v1033, 16
      %v1128 = vpop.permute.xlu0 %1127
      %1129 = vrot.lane.b32.xlu0 %v1006, 16
      %v1130 = vpop.permute.xlu0 %1129
      %1131 = vrot.lane.b32.xlu0 %v1034, 16
      %v1132 = vpop.permute.xlu0 %1131
      %1133 = vrot.lane.b32.xlu0 %v1009, 16
      %v1134 = vpop.permute.xlu0 %1133
      %1135 = vrot.lane.b32.xlu0 %v1035, 16
      %v1136 = vpop.permute.xlu0 %1135
      %1137 = vrot.lane.b32.xlu0 %v1012, 16
      %v1138 = vpop.permute.xlu0 %1137
      %1139 = vrot.lane.b32.xlu0 %v1036, 16
      %v1140 = vpop.permute.xlu0 %1139
      %1141 = vrot.lane.b32.xlu0 %v1015, 16
      %v1142 = vpop.permute.xlu0 %1141
      %1143 = vrot.lane.b32.xlu0 %v1037, 16
      %v1144 = vpop.permute.xlu0 %1143
      %1145 = vrot.lane.b32.xlu0 %v1018, 16
      %v1146 = vpop.permute.xlu0 %1145
      %1147 = vrot.lane.b32.xlu0 %v1038, 16
      %v1148 = vpop.permute.xlu0 %1147
      %vm1169 = vcmask 64512
      %v1170 = vsel %vm1169, %v978, %v1040
      %v1171 = vsel %vm1169, %v930, %v1042
      %v1172 = vsel %vm1169, %v979, %v1044
      %v1173 = vsel %vm1169, %v933, %v1046
      %v1174 = vsel %vm1169, %v980, %v1048
      %v1175 = vsel %vm1169, %v936, %v1050
      %v1176 = vsel %vm1169, %v981, %v1052
      %v1177 = vsel %vm1169, %v939, %v1054
      %v1178 = vsel %vm1169, %v982, %v1056
      %v1179 = vsel %vm1169, %v942, %v1058
      %v1180 = vsel %vm1169, %v983, %v1060
      %v1181 = vsel %vm1169, %v945, %v1062
      %v1182 = vsel %vm1169, %v984, %v1064
      %v1183 = vsel %vm1169, %v948, %v1066
      %v1184 = vsel %vm1169, %v985, %v1068
      %v1185 = vsel %vm1169, %v951, %v1070
      %v1186 = vsel %vm1169, %v986, %v1072
      %v1187 = vsel %vm1169, %v954, %v1074
      %v1188 = vsel %vm1169, %v987, %v1076
      %v1189 = vsel %vm1169, %v957, %v1078
      %vm1190 = vcmask 130048
      %v1191 = vsel %vm1190, %v1170, %v1110
      %v1192 = vsel %vm1190, %v1171, %v1112
      %v1193 = vsel %vm1190, %v1172, %v1114
      %v1194 = vsel %vm1190, %v1173, %v1116
      %v1195 = vsel %vm1190, %v1174, %v1118
      %v1196 = vsel %vm1190, %v1175, %v1120
      %v1197 = vsel %vm1190, %v1176, %v1122
      %v1198 = vsel %vm1190, %v1177, %v1124
      %v1199 = vsel %vm1190, %v1178, %v1126
      %v1200 = vsel %vm1190, %v1179, %v1128
      %v1201 = vsel %vm1190, %v1180, %v1130
      %v1202 = vsel %vm1190, %v1181, %v1132
      %v1203 = vsel %vm1190, %v1182, %v1134
      %v1204 = vsel %vm1190, %v1183, %v1136
      %v1205 = vsel %vm1190, %v1184, %v1138
      %v1206 = vsel %vm1190, %v1185, %v1140
      %v1207 = vsel %vm1190, %v1186, %v1142
      %v1208 = vsel %vm1190, %v1187, %v1144
      %v1209 = vsel %vm1190, %v1188, %v1146
      %v1210 = vsel %vm1190, %v1189, %v1148
      %v1211 = vld [vmem:[%s5] sm:$0xff]
      %v1212 = vld [vmem:[%s5 + $0x8] sm:$0xff]
      %v1213 = vld [vmem:[%s5 + $0x10] sm:$0xff]
      %s1214 = scalar_lea.vmem %s5, 24
      %v1215 = vld [vmem:[%s1214] sm:$0xff]
      %v1216 = vld [vmem:[%s1214 + $0x8] sm:$0xff]
      %v1217 = vld [vmem:[%s1214 + $0x10] sm:$0xff]
      %vm1218 = vcmask 195584
      %v1220 = vsel %vm1218, %v1193, 0
      %v1223 = vsel %vm1218, %v1194, 0
      %v1226 = vsel %vm1218, %v1195, 0
      %v1229 = vsel %vm1218, %v1196, 0
      %v1232 = vsel %vm1218, %v1197, 0
      %v1235 = vsel %vm1218, %v1198, 0
      %v1238 = vsel %vm1218, %v1199, 0
      %v1241 = vsel %vm1218, %v1200, 0
      %v1244 = vsel %vm1218, %v1201, 0
      %v1247 = vsel %vm1218, %v1202, 0
      %v1250 = vsel %vm1218, %v1203, 0
      %v1253 = vsel %vm1218, %v1204, 0
      %v1256 = vsel %vm1218, %v1205, 0
      %v1259 = vsel %vm1218, %v1206, 0
      %v1262 = vsel %vm1218, %v1207, 0
      %v1265 = vsel %vm1218, %v1208, 0
      %1267 = vmatprep.subr.mxu0 0.0
      %1268 = vmatpush1.msra.mxu0 %v1215
      %1269 = vmatprep.subr.mxu0 0.0
      %1270 = vmatpush1.msra.mxu0 %v1216
      %1271 = vmatprep.subr.mxu0 0.0
      %1272 = vmatpush1.msra.mxu0 %v1217
      %1273 = vmatprep.subr.mxu0 0.0
      %1274 = vmatpush1.msra.mxu0 0.0
      %1275 = vmatprep.subr.mxu0 0.0
      %1276 = vmatpush1.msra.mxu0 0.0
      %1277 = vmatprep.subr.mxu0 0.0
      %1278 = vmatpush1.msra.mxu0 0.0
      %1279 = vmatprep.subr.mxu0 0.0
      %1280 = vmatpush1.msra.mxu0 0.0
      %1281 = vmatprep.subr.mxu0 0.0
      %1282 = vmatpush1.msra.mxu0 0.0
      %1283 = vmatprep.subr.mxu0 0.0
      %1284 = vmatpush1.msra.mxu0 0.0
      %1285 = vmatprep.subr.mxu0 0.0
      %1286 = vmatpush1.msra.mxu0 0.0
      %1287 = vmatprep.subr.mxu0 0.0
      %1288 = vmatpush1.msra.mxu0 0.0
      %1289 = vmatprep.subr.mxu0 0.0
      %1290 = vmatpush1.msra.mxu0 0.0
      %1291 = vmatprep.subr.mxu0 0.0
      %1292 = vmatpush1.msra.mxu0 0.0
      %1293 = vmatprep.subr.mxu0 0.0
      %1294 = vmatpush1.msra.mxu0 0.0
      %1295 = vmatprep.subr.mxu0 0.0
      %1296 = vmatpush1.msra.mxu0 0.0
      %1297 = vmatprep.subr.mxu0 0.0
      %1298 = vmatpush1.msra.mxu0 0.0
      %1299 = vmatprep.subr.mxu0 0.0
      %1300 = vmatpush1.msra.mxu0 0.0
      %1301 = vmatprep.subr.mxu0 0.0
      %1302 = vmatpush1.msra.mxu0 0.0
      %1303 = vmatprep.subr.mxu0 0.0
      %1304 = vmatpush1.msra.mxu0 0.0
      %1305 = vmatprep.subr.mxu0 0.0
      %1306 = vmatpush1.msra.mxu0 0.0
      %1307 = vmatprep.subr.mxu0 0.0
      %1308 = vmatpush1.msra.mxu0 0.0
      %1309 = vmatprep.subr.mxu0 0.0
      %1310 = vmatpush1.msra.mxu0 0.0
      %1311 = vmatprep.subr.mxu0 0.0
      %1312 = vmatpush1.msra.mxu0 0.0
      %1313 = vmatprep.subr.mxu0 0.0
      %1314 = vmatpush1.msra.mxu0 0.0
      %1315 = vmatprep.subr.mxu0 0.0
      %1316 = vmatpush1.msra.mxu0 0.0
      %1317 = vmatprep.subr.mxu0 0.0
      %1318 = vmatpush1.msra.mxu0 0.0
      %1319 = vmatprep.subr.mxu0 0.0
      %1320 = vmatpush1.msra.mxu0 0.0
      %1321 = vmatprep.subr.mxu0 0.0
      %1322 = vmatpush1.msra.mxu0 0.0
      %1323 = vmatprep.subr.mxu0 0.0
      %1324 = vmatpush1.msra.mxu0 0.0
      %1325 = vmatprep.subr.mxu0 0.0
      %1326 = vmatpush1.msra.mxu0 0.0
      %1327 = vmatprep.subr.mxu0 0.0
      %1328 = vmatpush1.msra.mxu0 0.0
      %1329 = vmatprep.subr.mxu0 0.0
      %1330 = vmatpush1.msra.mxu0 0.0
      %1331 = vmatprep.mubr.f32.mxu0 0.0
      %1332 = vmatmul.mubr.f32.gmra.mrb[0].mxu0 %v1220
      %v1333 = vpop.f32.mrb[0].mxu0
      %v1334 = vadd.f32 0.0, %v1333
      %v1335 = vpop.f32.mrb[0].mxu0
      %1336 = vmatprep.mubr.f32.mxu0 0.0
      %1337 = vmatmul.mubr.f32.gmra.mrb[0].mxu0 %v1223
      %v1338 = vpop.f32.mrb[0].mxu0
      %v1339 = vadd.f32 0.0, %v1338
      %v1340 = vpop.f32.mrb[0].mxu0
      %1341 = vmatprep.mubr.f32.mxu0 0.0
      %1342 = vmatmul.mubr.f32.gmra.mrb[0].mxu0 %v1226
      %v1343 = vpop.f32.mrb[0].mxu0
      %v1344 = vadd.f32 0.0, %v1343
      %v1345 = vpop.f32.mrb[0].mxu0
      %1346 = vmatprep.mubr.f32.mxu0 0.0
      %1347 = vmatmul.mubr.f32.gmra.mrb[0].mxu0 %v1229
      %v1348 = vpop.f32.mrb[0].mxu0
      %v1349 = vadd.f32 0.0, %v1348
      %v1350 = vpop.f32.mrb[0].mxu0
      %1351 = vmatprep.mubr.f32.mxu0 0.0
      %1352 = vmatmul.mubr.f32.gmra.mrb[0].mxu0 %v1232
      %v1353 = vpop.f32.mrb[0].mxu0
      %v1354 = vadd.f32 0.0, %v1353
      %v1355 = vpop.f32.mrb[0].mxu0
      %1356 = vmatprep.mubr.f32.mxu0 0.0
      %1357 = vmatmul.mubr.f32.gmra.mrb[0].mxu0 %v1235
      %v1358 = vpop.f32.mrb[0].mxu0
      %v1359 = vadd.f32 0.0, %v1358
      %v1360 = vpop.f32.mrb[0].mxu0
      %1361 = vmatprep.mubr.f32.mxu0 0.0
      %1362 = vmatmul.mubr.f32.gmra.mrb[0].mxu0 %v1238
      %v1363 = vpop.f32.mrb[0].mxu0
      %v1364 = vadd.f32 0.0, %v1363
      %v1365 = vpop.f32.mrb[0].mxu0
      %1366 = vmatprep.mubr.f32.mxu0 0.0
      %1367 = vmatmul.mubr.f32.gmra.mrb[0].mxu0 %v1241
      %v1368 = vpop.f32.mrb[0].mxu0
      %v1369 = vadd.f32 0.0, %v1368
      %v1370 = vpop.f32.mrb[0].mxu0
      %1371 = vmatprep.mubr.f32.mxu0 0.0
      %1372 = vmatmul.mubr.f32.gmra.mrb[0].mxu0 %v1244
      %v1373 = vpop.f32.mrb[0].mxu0
      %v1374 = vadd.f32 0.0, %v1373
      %v1375 = vpop.f32.mrb[0].mxu0
      %1376 = vmatprep.mubr.f32.mxu0 0.0
      %1377 = vmatmul.mubr.f32.gmra.mrb[0].mxu0 %v1247
      %v1378 = vpop.f32.mrb[0].mxu0
      %v1379 = vadd.f32 0.0, %v1378
      %v1380 = vpop.f32.mrb[0].mxu0
      %1381 = vmatprep.mubr.f32.mxu0 0.0
      %1382 = vmatmul.mubr.f32.gmra.mrb[0].mxu0 %v1250
      %v1383 = vpop.f32.mrb[0].mxu0
      %v1384 = vadd.f32 0.0, %v1383
      %v1385 = vpop.f32.mrb[0].mxu0
      %1386 = vmatprep.mubr.f32.mxu0 0.0
      %1387 = vmatmul.mubr.f32.gmra.mrb[0].mxu0 %v1253
      %v1388 = vpop.f32.mrb[0].mxu0
      %v1389 = vadd.f32 0.0, %v1388
      %v1390 = vpop.f32.mrb[0].mxu0
      %1391 = vmatprep.mubr.f32.mxu0 0.0
      %1392 = vmatmul.mubr.f32.gmra.mrb[0].mxu0 %v1256
      %v1393 = vpop.f32.mrb[0].mxu0
      %v1394 = vadd.f32 0.0, %v1393
      %v1395 = vpop.f32.mrb[0].mxu0
      %1396 = vmatprep.mubr.f32.mxu0 0.0
      %1397 = vmatmul.mubr.f32.gmra.mrb[0].mxu0 %v1259
      %v1398 = vpop.f32.mrb[0].mxu0
      %v1399 = vadd.f32 0.0, %v1398
      %v1400 = vpop.f32.mrb[0].mxu0
      %1401 = vmatprep.mubr.f32.mxu0 0.0
      %1402 = vmatmul.mubr.f32.gmra.mrb[0].mxu0 %v1262
      %v1403 = vpop.f32.mrb[0].mxu0
      %v1404 = vadd.f32 0.0, %v1403
      %v1405 = vpop.f32.mrb[0].mxu0
      %1406 = vmatprep.mubr.f32.mxu0 0.0
      %1407 = vmatmul.mubr.f32.gmra.mrb[0].mxu0 %v1265
      %v1408 = vpop.f32.mrb[0].mxu0
      %v1409 = vadd.f32 0.0, %v1408
      %v1410 = vpop.f32.mrb[0].mxu0
      %1411 = vdwg.mxu0
      %v1413 = vsel %vm1218, %v1191, 0
      %v1416 = vsel %vm1218, %v1192, 0
      %1418 = vmatprep.subr.mxu0 0.0
      %1419 = vmatpush1.msra.mxu0 %v1211
      %1420 = vmatprep.subr.mxu0 0.0
      %1421 = vmatpush1.msra.mxu0 %v1212
      %1422 = vmatprep.subr.mxu0 0.0
      %1423 = vmatpush1.msra.mxu0 %v1213
      %1424 = vmatprep.subr.mxu0 0.0
      %1425 = vmatpush1.msra.mxu0 0.0
      %1426 = vmatprep.subr.mxu0 0.0
      %1427 = vmatpush1.msra.mxu0 0.0
      %1428 = vmatprep.subr.mxu0 0.0
      %1429 = vmatpush1.msra.mxu0 0.0
      %1430 = vmatprep.subr.mxu0 0.0
      %1431 = vmatpush1.msra.mxu0 0.0
      %1432 = vmatprep.subr.mxu0 0.0
      %1433 = vmatpush1.msra.mxu0 0.0
      %1434 = vmatprep.subr.mxu0 0.0
      %1435 = vmatpush1.msra.mxu0 0.0
      %1436 = vmatprep.subr.mxu0 0.0
      %1437 = vmatpush1.msra.mxu0 0.0
      %1438 = vmatprep.subr.mxu0 0.0
      %1439 = vmatpush1.msra.mxu0 0.0
      %1440 = vmatprep.subr.mxu0 0.0
      %1441 = vmatpush1.msra.mxu0 0.0
      %1442 = vmatprep.subr.mxu0 0.0
      %1443 = vmatpush1.msra.mxu0 0.0
      %1444 = vmatprep.subr.mxu0 0.0
      %1445 = vmatpush1.msra.mxu0 0.0
      %1446 = vmatprep.subr.mxu0 0.0
      %1447 = vmatpush1.msra.mxu0 0.0
      %1448 = vmatprep.subr.mxu0 0.0
      %1449 = vmatpush1.msra.mxu0 0.0
      %1450 = vmatprep.subr.mxu0 0.0
      %1451 = vmatpush1.msra.mxu0 0.0
      %1452 = vmatprep.subr.mxu0 0.0
      %1453 = vmatpush1.msra.mxu0 0.0
      %1454 = vmatprep.subr.mxu0 0.0
      %1455 = vmatpush1.msra.mxu0 0.0
      %1456 = vmatprep.subr.mxu0 0.0
      %1457 = vmatpush1.msra.mxu0 0.0
      %1458 = vmatprep.subr.mxu0 0.0
      %1459 = vmatpush1.msra.mxu0 0.0
      %1460 = vmatprep.subr.mxu0 0.0
      %1461 = vmatpush1.msra.mxu0 0.0
      %1462 = vmatprep.subr.mxu0 0.0
      %1463 = vmatpush1.msra.mxu0 0.0
      %1464 = vmatprep.subr.mxu0 0.0
      %1465 = vmatpush1.msra.mxu0 0.0
      %1466 = vmatprep.subr.mxu0 0.0
      %1467 = vmatpush1.msra.mxu0 0.0
      %1468 = vmatprep.subr.mxu0 0.0
      %1469 = vmatpush1.msra.mxu0 0.0
      %1470 = vmatprep.subr.mxu0 0.0
      %1471 = vmatpush1.msra.mxu0 0.0
      %1472 = vmatprep.subr.mxu0 0.0
      %1473 = vmatpush1.msra.mxu0 0.0
      %1474 = vmatprep.subr.mxu0 0.0
      %1475 = vmatpush1.msra.mxu0 0.0
      %1476 = vmatprep.subr.mxu0 0.0
      %1477 = vmatpush1.msra.mxu0 0.0
      %1478 = vmatprep.subr.mxu0 0.0
      %1479 = vmatpush1.msra.mxu0 0.0
      %1480 = vmatprep.subr.mxu0 0.0
      %1481 = vmatpush1.msra.mxu0 0.0
      %1482 = vmatprep.mubr.f32.mxu0 0.0
      %1483 = vmatmul.mubr.f32.gmra.mrb[0].mxu0 %v1413
      %v1484 = vpop.f32.mrb[0].mxu0
      %v1485 = vadd.f32 %v1334, %v1484
      %v1486 = vpop.f32.mrb[0].mxu0
      %1487 = vmatprep.mubr.f32.mxu0 0.0
      %1488 = vmatmul.mubr.f32.gmra.mrb[0].mxu0 %v1416
      %v1489 = vpop.f32.mrb[0].mxu0
      %v1490 = vadd.f32 %v1339, %v1489
      %v1491 = vpop.f32.mrb[0].mxu0
      %1492 = vmatprep.mubr.f32.mxu0 0.0
      %1493 = vmatmul.mubr.f32.gmra.mrb[0].mxu0 %v1220
      %v1494 = vpop.f32.mrb[0].mxu0
      %v1495 = vadd.f32 %v1344, %v1494
      %v1496 = vpop.f32.mrb[0].mxu0
      %1497 = vmatprep.mubr.f32.mxu0 0.0
      %1498 = vmatmul.mubr.f32.gmra.mrb[0].mxu0 %v1223
      %v1499 = vpop.f32.mrb[0].mxu0
      %v1500 = vadd.f32 %v1349, %v1499
      %v1501 = vpop.f32.mrb[0].mxu0
      %1502 = vmatprep.mubr.f32.mxu0 0.0
      %1503 = vmatmul.mubr.f32.gmra.mrb[0].mxu0 %v1226
      %v1504 = vpop.f32.mrb[0].mxu0
      %v1505 = vadd.f32 %v1354, %v1504
      %v1506 = vpop.f32.mrb[0].mxu0
      %1507 = vmatprep.mubr.f32.mxu0 0.0
      %1508 = vmatmul.mubr.f32.gmra.mrb[0].mxu0 %v1229
      %v1509 = vpop.f32.mrb[0].mxu0
      %v1510 = vadd.f32 %v1359, %v1509
      %v1511 = vpop.f32.mrb[0].mxu0
      %1512 = vmatprep.mubr.f32.mxu0 0.0
      %1513 = vmatmul.mubr.f32.gmra.mrb[0].mxu0 %v1232
      %v1514 = vpop.f32.mrb[0].mxu0
      %v1515 = vadd.f32 %v1364, %v1514
      %v1516 = vpop.f32.mrb[0].mxu0
      %1517 = vmatprep.mubr.f32.mxu0 0.0
      %1518 = vmatmul.mubr.f32.gmra.mrb[0].mxu0 %v1235
      %v1519 = vpop.f32.mrb[0].mxu0
      %v1520 = vadd.f32 %v1369, %v1519
      %v1521 = vpop.f32.mrb[0].mxu0
      %1522 = vmatprep.mubr.f32.mxu0 0.0
      %1523 = vmatmul.mubr.f32.gmra.mrb[0].mxu0 %v1238
      %v1524 = vpop.f32.mrb[0].mxu0
      %v1525 = vadd.f32 %v1374, %v1524
      %v1526 = vpop.f32.mrb[0].mxu0
      %1527 = vmatprep.mubr.f32.mxu0 0.0
      %1528 = vmatmul.mubr.f32.gmra.mrb[0].mxu0 %v1241
      %v1529 = vpop.f32.mrb[0].mxu0
      %v1530 = vadd.f32 %v1379, %v1529
      %v1531 = vpop.f32.mrb[0].mxu0
      %1532 = vmatprep.mubr.f32.mxu0 0.0
      %1533 = vmatmul.mubr.f32.gmra.mrb[0].mxu0 %v1244
      %v1534 = vpop.f32.mrb[0].mxu0
      %v1535 = vadd.f32 %v1384, %v1534
      %v1536 = vpop.f32.mrb[0].mxu0
      %1537 = vmatprep.mubr.f32.mxu0 0.0
      %1538 = vmatmul.mubr.f32.gmra.mrb[0].mxu0 %v1247
      %v1539 = vpop.f32.mrb[0].mxu0
      %v1540 = vadd.f32 %v1389, %v1539
      %v1541 = vpop.f32.mrb[0].mxu0
      %1542 = vmatprep.mubr.f32.mxu0 0.0
      %1543 = vmatmul.mubr.f32.gmra.mrb[0].mxu0 %v1250
      %v1544 = vpop.f32.mrb[0].mxu0
      %v1545 = vadd.f32 %v1394, %v1544
      %v1546 = vpop.f32.mrb[0].mxu0
      %1547 = vmatprep.mubr.f32.mxu0 0.0
      %1548 = vmatmul.mubr.f32.gmra.mrb[0].mxu0 %v1253
      %v1549 = vpop.f32.mrb[0].mxu0
      %v1550 = vadd.f32 %v1399, %v1549
      %v1551 = vpop.f32.mrb[0].mxu0
      %1552 = vmatprep.mubr.f32.mxu0 0.0
      %1553 = vmatmul.mubr.f32.gmra.mrb[0].mxu0 %v1256
      %v1554 = vpop.f32.mrb[0].mxu0
      %v1555 = vadd.f32 %v1404, %v1554
      %v1556 = vpop.f32.mrb[0].mxu0
      %1557 = vmatprep.mubr.f32.mxu0 0.0
      %1558 = vmatmul.mubr.f32.gmra.mrb[0].mxu0 %v1259
      %v1559 = vpop.f32.mrb[0].mxu0
      %v1560 = vadd.f32 %v1409, %v1559
      %v1561 = vpop.f32.mrb[0].mxu0
      %1562 = vdwg.mxu0
      %s1563 = scalar_lea.vmem %s5, 48
      %v1564 = vld [vmem:[%s1563] sm:$0xff]
      %v1565 = vld [vmem:[%s1563 + $0x8] sm:$0xff]
      %v1566 = vld [vmem:[%s1563 + $0x10] sm:$0xff]
      %v1568 = vsel %vm1218, %v1209, 0
      %v1571 = vsel %vm1218, %v1210, 0
      %1573 = vmatprep.subr.mxu0 0.0
      %1574 = vmatpush1.msra.mxu0 %v1564
      %1575 = vmatprep.subr.mxu0 0.0
      %1576 = vmatpush1.msra.mxu0 %v1565
      %1577 = vmatprep.subr.mxu0 0.0
      %1578 = vmatpush1.msra.mxu0 %v1566
      %1579 = vmatprep.subr.mxu0 0.0
      %1580 = vmatpush1.msra.mxu0 0.0
      %1581 = vmatprep.subr.mxu0 0.0
      %1582 = vmatpush1.msra.mxu0 0.0
      %1583 = vmatprep.subr.mxu0 0.0
      %1584 = vmatpush1.msra.mxu0 0.0
      %1585 = vmatprep.subr.mxu0 0.0
      %1586 = vmatpush1.msra.mxu0 0.0
      %1587 = vmatprep.subr.mxu0 0.0
      %1588 = vmatpush1.msra.mxu0 0.0
      %1589 = vmatprep.subr.mxu0 0.0
      %1590 = vmatpush1.msra.mxu0 0.0
      %1591 = vmatprep.subr.mxu0 0.0
      %1592 = vmatpush1.msra.mxu0 0.0
      %1593 = vmatprep.subr.mxu0 0.0
      %1594 = vmatpush1.msra.mxu0 0.0
      %1595 = vmatprep.subr.mxu0 0.0
      %1596 = vmatpush1.msra.mxu0 0.0
      %1597 = vmatprep.subr.mxu0 0.0
      %1598 = vmatpush1.msra.mxu0 0.0
      %1599 = vmatprep.subr.mxu0 0.0
      %1600 = vmatpush1.msra.mxu0 0.0
      %1601 = vmatprep.subr.mxu0 0.0
      %1602 = vmatpush1.msra.mxu0 0.0
      %1603 = vmatprep.subr.mxu0 0.0
      %1604 = vmatpush1.msra.mxu0 0.0
      %1605 = vmatprep.subr.mxu0 0.0
      %1606 = vmatpush1.msra.mxu0 0.0
      %1607 = vmatprep.subr.mxu0 0.0
      %1608 = vmatpush1.msra.mxu0 0.0
      %1609 = vmatprep.subr.mxu0 0.0
      %1610 = vmatpush1.msra.mxu0 0.0
      %1611 = vmatprep.subr.mxu0 0.0
      %1612 = vmatpush1.msra.mxu0 0.0
      %1613 = vmatprep.subr.mxu0 0.0
      %1614 = vmatpush1.msra.mxu0 0.0
      %1615 = vmatprep.subr.mxu0 0.0
      %1616 = vmatpush1.msra.mxu0 0.0
      %1617 = vmatprep.subr.mxu0 0.0
      %1618 = vmatpush1.msra.mxu0 0.0
      %1619 = vmatprep.subr.mxu0 0.0
      %1620 = vmatpush1.msra.mxu0 0.0
      %1621 = vmatprep.subr.mxu0 0.0
      %1622 = vmatpush1.msra.mxu0 0.0
      %1623 = vmatprep.subr.mxu0 0.0
      %1624 = vmatpush1.msra.mxu0 0.0
      %1625 = vmatprep.subr.mxu0 0.0
      %1626 = vmatpush1.msra.mxu0 0.0
      %1627 = vmatprep.subr.mxu0 0.0
      %1628 = vmatpush1.msra.mxu0 0.0
      %1629 = vmatprep.subr.mxu0 0.0
      %1630 = vmatpush1.msra.mxu0 0.0
      %1631 = vmatprep.subr.mxu0 0.0
      %1632 = vmatpush1.msra.mxu0 0.0
      %1633 = vmatprep.subr.mxu0 0.0
      %1634 = vmatpush1.msra.mxu0 0.0
      %1635 = vmatprep.subr.mxu0 0.0
      %1636 = vmatpush1.msra.mxu0 0.0
      %1637 = vmatprep.mubr.f32.mxu0 0.0
      %1638 = vmatmul.mubr.f32.gmra.mrb[0].mxu0 %v1226
      %v1639 = vpop.f32.mrb[0].mxu0
      %v1640 = vadd.f32 0.0, %v1639
      %v1641 = vpop.f32.mrb[0].mxu0
      %1642 = vmatprep.mubr.f32.mxu0 0.0
      %1643 = vmatmul.mubr.f32.gmra.mrb[0].mxu0 %v1229
      %v1644 = vpop.f32.mrb[0].mxu0
      %v1645 = vadd.f32 0.0, %v1644
      %v1646 = vpop.f32.mrb[0].mxu0
      %1647 = vmatprep.mubr.f32.mxu0 0.0
      %1648 = vmatmul.mubr.f32.gmra.mrb[0].mxu0 %v1232
      %v1649 = vpop.f32.mrb[0].mxu0
      %v1650 = vadd.f32 0.0, %v1649
      %v1651 = vpop.f32.mrb[0].mxu0
      %1652 = vmatprep.mubr.f32.mxu0 0.0
      %1653 = vmatmul.mubr.f32.gmra.mrb[0].mxu0 %v1235
      %v1654 = vpop.f32.mrb[0].mxu0
      %v1655 = vadd.f32 0.0, %v1654
      %v1656 = vpop.f32.mrb[0].mxu0
      %1657 = vmatprep.mubr.f32.mxu0 0.0
      %1658 = vmatmul.mubr.f32.gmra.mrb[0].mxu0 %v1238
      %v1659 = vpop.f32.mrb[0].mxu0
      %v1660 = vadd.f32 0.0, %v1659
      %v1661 = vpop.f32.mrb[0].mxu0
      %1662 = vmatprep.mubr.f32.mxu0 0.0
      %1663 = vmatmul.mubr.f32.gmra.mrb[0].mxu0 %v1241
      %v1664 = vpop.f32.mrb[0].mxu0
      %v1665 = vadd.f32 0.0, %v1664
      %v1666 = vpop.f32.mrb[0].mxu0
      %1667 = vmatprep.mubr.f32.mxu0 0.0
      %1668 = vmatmul.mubr.f32.gmra.mrb[0].mxu0 %v1244
      %v1669 = vpop.f32.mrb[0].mxu0
      %v1670 = vadd.f32 0.0, %v1669
      %v1671 = vpop.f32.mrb[0].mxu0
      %1672 = vmatprep.mubr.f32.mxu0 0.0
      %1673 = vmatmul.mubr.f32.gmra.mrb[0].mxu0 %v1247
      %v1674 = vpop.f32.mrb[0].mxu0
      %v1675 = vadd.f32 0.0, %v1674
      %v1676 = vpop.f32.mrb[0].mxu0
      %1677 = vmatprep.mubr.f32.mxu0 0.0
      %1678 = vmatmul.mubr.f32.gmra.mrb[0].mxu0 %v1250
      %v1679 = vpop.f32.mrb[0].mxu0
      %v1680 = vadd.f32 0.0, %v1679
      %v1681 = vpop.f32.mrb[0].mxu0
      %1682 = vmatprep.mubr.f32.mxu0 0.0
      %1683 = vmatmul.mubr.f32.gmra.mrb[0].mxu0 %v1253
      %v1684 = vpop.f32.mrb[0].mxu0
      %v1685 = vadd.f32 0.0, %v1684
      %v1686 = vpop.f32.mrb[0].mxu0
      %1687 = vmatprep.mubr.f32.mxu0 0.0
      %1688 = vmatmul.mubr.f32.gmra.mrb[0].mxu0 %v1256
      %v1689 = vpop.f32.mrb[0].mxu0
      %v1690 = vadd.f32 0.0, %v1689
      %v1691 = vpop.f32.mrb[0].mxu0
      %1692 = vmatprep.mubr.f32.mxu0 0.0
      %1693 = vmatmul.mubr.f32.gmra.mrb[0].mxu0 %v1259
      %v1694 = vpop.f32.mrb[0].mxu0
      %v1695 = vadd.f32 0.0, %v1694
      %v1696 = vpop.f32.mrb[0].mxu0
      %1697 = vmatprep.mubr.f32.mxu0 0.0
      %1698 = vmatmul.mubr.f32.gmra.mrb[0].mxu0 %v1262
      %v1699 = vpop.f32.mrb[0].mxu0
      %v1700 = vadd.f32 0.0, %v1699
      %v1701 = vpop.f32.mrb[0].mxu0
      %1702 = vmatprep.mubr.f32.mxu0 0.0
      %1703 = vmatmul.mubr.f32.gmra.mrb[0].mxu0 %v1265
      %v1704 = vpop.f32.mrb[0].mxu0
      %v1705 = vadd.f32 0.0, %v1704
      %v1706 = vpop.f32.mrb[0].mxu0
      %1707 = vmatprep.mubr.f32.mxu0 0.0
      %1708 = vmatmul.mubr.f32.gmra.mrb[0].mxu0 %v1568
      %v1709 = vpop.f32.mrb[0].mxu0
      %v1710 = vadd.f32 0.0, %v1709
      %v1711 = vpop.f32.mrb[0].mxu0
      %1712 = vmatprep.mubr.f32.mxu0 0.0
      %1713 = vmatmul.mubr.f32.gmra.mrb[0].mxu0 %v1571
      %v1714 = vpop.f32.mrb[0].mxu0
      %v1715 = vadd.f32 0.0, %v1714
      %v1716 = vpop.f32.mrb[0].mxu0
      %1717 = vdwg.mxu0
      %v1718 = vadd.f32 %v1485, %v1640
      %v1719 = vadd.f32 %v1490, %v1645
      %v1720 = vadd.f32 %v1495, %v1650
      %v1721 = vadd.f32 %v1500, %v1655
      %v1722 = vadd.f32 %v1505, %v1660
      %v1723 = vadd.f32 %v1510, %v1665
      %v1724 = vadd.f32 %v1515, %v1670
      %v1725 = vadd.f32 %v1520, %v1675
      %v1726 = vadd.f32 %v1525, %v1680
      %v1727 = vadd.f32 %v1530, %v1685
      %v1728 = vadd.f32 %v1535, %v1690
      %v1729 = vadd.f32 %v1540, %v1695
      %v1730 = vadd.f32 %v1545, %v1700
      %v1731 = vadd.f32 %v1550, %v1705
      %v1732 = vadd.f32 %v1555, %v1710
      %v1733 = vadd.f32 %v1560, %v1715
      %v1734 = vld [vmem:[%s6] sm:$0x1]
      %v1736 = vlaneseq
      %v1737 = vshrl.u32 %v1736, 7
      %v1738 = vsub.s32 0, %v1737
      %v1739 = vrot.slane %v1734, %v1738
      %v1741 = vadd.f32 %v1718, %v1739
      %v1742 = vadd.f32 %v1719, %v1739
      %v1743 = vadd.f32 %v1720, %v1739
      %v1744 = vadd.f32 %v1721, %v1739
      %v1745 = vadd.f32 %v1722, %v1739
      %v1746 = vadd.f32 %v1723, %v1739
      %v1747 = vadd.f32 %v1724, %v1739
      %v1748 = vadd.f32 %v1725, %v1739
      %v1749 = vadd.f32 %v1726, %v1739
      %v1750 = vadd.f32 %v1727, %v1739
      %v1751 = vadd.f32 %v1728, %v1739
      %v1752 = vadd.f32 %v1729, %v1739
      %v1753 = vadd.f32 %v1730, %v1739
      %v1754 = vadd.f32 %v1731, %v1739
      %v1755 = vadd.f32 %v1732, %v1739
      %v1756 = vadd.f32 %v1733, %v1739
      %vm1757 = vcmp.gt.f32.partialorder %v1741, 0.0
      %vm1758 = vcmp.gt.f32.partialorder %v1742, 0.0
      %vm1759 = vcmp.gt.f32.partialorder %v1743, 0.0
      %vm1760 = vcmp.gt.f32.partialorder %v1744, 0.0
      %vm1761 = vcmp.gt.f32.partialorder %v1745, 0.0
      %vm1762 = vcmp.gt.f32.partialorder %v1746, 0.0
      %vm1763 = vcmp.gt.f32.partialorder %v1747, 0.0
      %vm1764 = vcmp.gt.f32.partialorder %v1748, 0.0
      %vm1765 = vcmp.gt.f32.partialorder %v1749, 0.0
      %vm1766 = vcmp.gt.f32.partialorder %v1750, 0.0
      %vm1767 = vcmp.gt.f32.partialorder %v1751, 0.0
      %vm1768 = vcmp.gt.f32.partialorder %v1752, 0.0
      %vm1769 = vcmp.gt.f32.partialorder %v1753, 0.0
      %vm1770 = vcmp.gt.f32.partialorder %v1754, 0.0
      %vm1771 = vcmp.gt.f32.partialorder %v1755, 0.0
      %vm1772 = vcmp.gt.f32.partialorder %v1756, 0.0
      %v1773 = vmul.f32 %v1741, 0.01
      %v1774 = vmul.f32 %v1742, 0.01
      %v1775 = vmul.f32 %v1743, 0.01
      %v1776 = vmul.f32 %v1744, 0.01
      %v1777 = vmul.f32 %v1745, 0.01
      %v1778 = vmul.f32 %v1746, 0.01
      %v1779 = vmul.f32 %v1747, 0.01
      %v1780 = vmul.f32 %v1748, 0.01
      %v1781 = vmul.f32 %v1749, 0.01
      %v1782 = vmul.f32 %v1750, 0.01
      %v1783 = vmul.f32 %v1751, 0.01
      %v1784 = vmul.f32 %v1752, 0.01
      %v1785 = vmul.f32 %v1753, 0.01
      %v1786 = vmul.f32 %v1754, 0.01
      %v1787 = vmul.f32 %v1755, 0.01
      %v1788 = vmul.f32 %v1756, 0.01
      %v1789 = vsel %vm1757, %v1741, %v1773
      %v1790 = vsel %vm1758, %v1742, %v1774
      %v1791 = vsel %vm1759, %v1743, %v1775
      %v1792 = vsel %vm1760, %v1744, %v1776
      %v1793 = vsel %vm1761, %v1745, %v1777
      %v1794 = vsel %vm1762, %v1746, %v1778
      %v1795 = vsel %vm1763, %v1747, %v1779
      %v1796 = vsel %vm1764, %v1748, %v1780
      %v1797 = vsel %vm1765, %v1749, %v1781
      %v1798 = vsel %vm1766, %v1750, %v1782
      %v1799 = vsel %vm1767, %v1751, %v1783
      %v1800 = vsel %vm1768, %v1752, %v1784
      %v1801 = vsel %vm1769, %v1753, %v1785
      %v1802 = vsel %vm1770, %v1754, %v1786
      %v1803 = vsel %vm1771, %v1755, %v1787
      %v1804 = vsel %vm1772, %v1756, %v1788
      %v1805 = vadd.f32 %v447, %v1789
      %v1806 = vadd.f32 %v448, %v1790
      %v1807 = vadd.f32 %v449, %v1791
      %v1808 = vadd.f32 %v450, %v1792
      %v1809 = vadd.f32 %v451, %v1793
      %v1810 = vadd.f32 %v452, %v1794
      %v1811 = vadd.f32 %v453, %v1795
      %v1812 = vadd.f32 %v454, %v1796
      %v1813 = vadd.f32 %v455, %v1797
      %v1814 = vadd.f32 %v456, %v1798
      %v1815 = vadd.f32 %v457, %v1799
      %v1816 = vadd.f32 %v458, %v1800
      %v1817 = vadd.f32 %v459, %v1801
      %v1818 = vadd.f32 %v460, %v1802
      %v1819 = vadd.f32 %v461, %v1803
      %v1820 = vadd.f32 %v462, %v1804
      %1821 = vst.msk [vmem:[%s445] sm:$0xff] %vm471, %v1805
      %1822 = vst.msk [vmem:[%s445 + $0x8] sm:$0xff] %vm471, %v1806
      %1823 = vst.msk [vmem:[%s445 + $0x10] sm:$0xff] %vm471, %v1807
      %1824 = vst.msk [vmem:[%s445 + $0x18] sm:$0xff] %vm471, %v1808
      %1825 = vst.msk [vmem:[%s445 + $0x20] sm:$0xff] %vm471, %v1809
      %1826 = vst.msk [vmem:[%s445 + $0x28] sm:$0xff] %vm471, %v1810
      %1827 = vst.msk [vmem:[%s445 + $0x30] sm:$0xff] %vm471, %v1811
      %1828 = vst.msk [vmem:[%s445 + $0x38] sm:$0xff] %vm471, %v1812
      %1829 = vst.msk [vmem:[%s445 + $0x40] sm:$0xff] %vm471, %v1813
      %1830 = vst.msk [vmem:[%s445 + $0x48] sm:$0xff] %vm471, %v1814
      %1831 = vst.msk [vmem:[%s445 + $0x50] sm:$0xff] %vm471, %v1815
      %1832 = vst.msk [vmem:[%s445 + $0x58] sm:$0xff] %vm471, %v1816
      %1833 = vst.msk [vmem:[%s445 + $0x60] sm:$0xff] %vm471, %v1817
      %1834 = vst.msk [vmem:[%s445 + $0x68] sm:$0xff] %vm471, %v1818
      %1835 = vst.msk [vmem:[%s445 + $0x70] sm:$0xff] %vm471, %v1819
      %1836 = vst.msk [vmem:[%s445 + $0x78] sm:$0xff] %vm471, %v1820
      %s1837 = smul.u32 8, %s23
      %p1838 = scmp.lt.s32.totalorder %s22, 1
      %s1839 = scalar_select %p1838, %s22, 1
      %p1840 = scmp.lt.s32.totalorder %s1837, 15
      %s1841 = scalar_select %p1840, %s1837, 15
      %s1842 = smul.addr %s1841, 2
      %s1843 = smul.addr %s1839, 32
      %s1844 = sadd.s32 %s1842, %s1843
      %s1845 = smul.addr %s1844, 8
      %s1846 = scalar_lea.vmem %s7, %s1845
      // Predicated region
      $region49: #{tpu_custom_call.1} parent=47 // pred_check
        %p1847 = pneg %p234
      $region50: #{tpu_custom_call.1} parent=47 // pred_check_branch
        %1849 = sbr.rel (%p1847) target = $region52
      $region51: #{tpu_custom_call.1} parent=47 // pred_region
        %s1850 = smul.u32 8, %s23
      $region52: #{tpu_custom_call.1} parent=47 // pred_fallthru
        _
    $region48: #{tpu_custom_call.1} parent=5 // pred_fallthru
      _
    %p1851 = scmp.le.s32.totalorder 2, %s13
    // Predicated region
    $region53: #{tpu_custom_call.1} parent=5 // pred_check
      %p1852 = pneg %p1851
    $region54: #{tpu_custom_call.1} parent=5 // pred_check_branch
      %1854 = sbr.rel (%p1852) target = $region56
    $region55: #{tpu_custom_call.1} parent=5 // pred_region
      %s1855 = ssub.s32 %s13, 2
      // Predicated region
      $region57: #{tpu_custom_call.1} parent=55 // pred_check
        %p1856 = pneg %p240
      $region58: #{tpu_custom_call.1} parent=55 // pred_check_branch
        %1858 = sbr.rel (%p1856) target = $region60
      $region59: #{tpu_custom_call.1} parent=55 // pred_region
        %s1859 = smul.u32 8, %s25
        %p1860 = scmp.lt.s32.totalorder %s24, 1
        %s1861 = scalar_select %p1860, %s24, 1
        %p1862 = scmp.lt.s32.totalorder %s1859, 15
        %s1863 = scalar_select %p1862, %s1859, 15
        %s1864 = smul.addr %s1863, 2
        %s1865 = smul.addr %s1861, 32
        %s1866 = sadd.s32 %s1864, %s1865
        %s1867 = smul.addr %s1866, 8
        %s1868 = scalar_lea.vmem %s7, %s1867
      $region60: #{tpu_custom_call.1} parent=55 // pred_fallthru
        _
    $region56: #{tpu_custom_call.1} parent=5 // pred_fallthru
      _
  $region6: #{tpu_custom_call.1} parent=0 // loop_footer
    %s17 = sadd.s32 1, %s13
  $region7: #{tpu_custom_call.1} parent=0 // loop_footer_branch
    %12 = sbr.rel target = $region3
  $region8: #{tpu_custom_call.1} parent=0 // loop_exit
    _

</llo_original>
